<compile_context>
chip_gen: v7x
topology: tpu7x:2x2x1
jax: 0.10.0
libtpu: 0.0.40
codegen_flags: <defaults>
</compile_context>

<pallas_src>
import functools

import jax
import jax.numpy as jnp
from jax import lax
from jax.experimental import pallas as pl
from jax.experimental.pallas import tpu as pltpu


def _hybrid_skip_kernel(dec_ref, encp_ref, wr_ref, rs_ref, rb_ref,
                        wa_dec_ref, wa_enc_ref, asc_ref, abi_ref,
                        w1_ref, w2_ref, out_ref, *, rows_per_out):
    # dec_ref    : (H, W, Cd)        decoder feature (one batch element), f32
    # encp_ref   : (H+2, W+2, Ce)    encoder feature, reflection-padded, f32
    # wr_ref     : (9*Ce, Ce)        3x3 refine conv weights (tap-major, IO), bf16
    # rs/rb      : (1, Ce)           folded BN scale / bias for refine, f32
    # wa_dec_ref : (Cd, Ct)          top rows of 1x1 attention weight, bf16
    # wa_enc_ref : (Ce, Ct)          bottom rows of 1x1 attention weight, bf16
    # asc/abi    : (1, Ct)           folded BN scale / bias for attention, f32
    # w1_ref     : (Ct, Cr), w2_ref: (Cr, Ct)   SE MLP weights (bias-free), f32
    # out_ref    : (HW*Ct/128, 128) lane-dense slab (or (HW, Ct) fallback)
    H, W, Cd = dec_ref.shape
    Ce = encp_ref.shape[-1]
    Ct = Cd + Ce
    HW = H * W

    # ---- border_refine: im2col -> single K=9*Ce matmul (bf16 in, f32 acc) ----
    encp = encp_ref[...]                                     # (H+2, W+2, Ce)
    windows = [encp[dy:dy + H, dx:dx + W, :].reshape(HW, Ce)
               for dy in range(3) for dx in range(3)]
    patches = jnp.concatenate(windows, axis=-1).astype(jnp.bfloat16)  # (HW, 9*Ce)
    conv = jnp.dot(patches, wr_ref[...], preferred_element_type=jnp.float32)
    enc_r = jnp.maximum(conv * rs_ref[...] + rb_ref[...], 0.0)        # (HW, Ce) f32

    # ---- 1x1 attention conv on split weights (no channel concat) -------------
    dec = dec_ref[...].reshape(HW, Cd)                                 # (HW, Cd) f32
    attn = (jnp.dot(dec.astype(jnp.bfloat16), wa_dec_ref[...],
                    preferred_element_type=jnp.float32)
            + jnp.dot(enc_r.astype(jnp.bfloat16), wa_enc_ref[...],
                      preferred_element_type=jnp.float32))             # (HW, Ct)
    attn = jax.nn.sigmoid(attn * asc_ref[...] + abi_ref[...])          # f32
    x_dec = dec * attn[:, :Cd]
    x_enc = enc_r * attn[:, Cd:]

    # ---- Squeeze-and-Excitation (pool -> fc -> relu -> fc -> sigmoid) --------
    pooled = jnp.concatenate(
        [jnp.mean(x_dec, axis=0, keepdims=True),
         jnp.mean(x_enc, axis=0, keepdims=True)], axis=-1)             # (1, Ct)
    h = jnp.maximum(jnp.dot(pooled, w1_ref[...],
                            preferred_element_type=jnp.float32), 0.0)
    s = jax.nn.sigmoid(jnp.dot(h, w2_ref[...],
                               preferred_element_type=jnp.float32))    # (1, Ct)
    y_dec = x_dec * s[:, :Cd]
    y_enc = x_enc * s[:, Cd:]
    y = jnp.concatenate([y_dec, y_enc], axis=-1)                       # (HW, Ct)

    # ---- lane-dense store: pack `rows_per_out` pixels per 128-lane row -------
    if rows_per_out > 1:
        y = y.reshape(HW // rows_per_out, rows_per_out, Ct)
        y = jnp.concatenate([y[:, i, :] for i in range(rows_per_out)], axis=-1)
    out_ref[...] = y.astype(out_ref.dtype)


def hybrid_skip_block(dec_nhwc, enc_nhwc, p):
    """dec_nhwc: (B,H,W,Cd), enc_nhwc: (B,H,W,Ce) -> (B,H,W,Cd+Ce)."""
    B, H, W, Cd = dec_nhwc.shape
    Ce = enc_nhwc.shape[-1]
    Ct = Cd + Ce
    Cr = p["w_se1"].shape[-1]
    HW = H * W

    # Reflection padding (pure data movement) stays wrapper-side; see TODO above.
    enc_pad = jnp.pad(enc_nhwc, ((0, 0), (1, 1), (1, 1), (0, 0)), mode="reflect")

    # MXU-facing weights -> bf16 (accumulation is f32 inside the kernel).
    w_refine = p["w_refine"].reshape(9 * Ce, Ce).astype(jnp.bfloat16)  # tap-major, IO
    wa_dec = p["w_attn"][:Cd, :].astype(jnp.bfloat16)
    wa_enc = p["w_attn"][Cd:, :].astype(jnp.bfloat16)

    # Lane-dense output slab when Ct divides 128; otherwise plain (HW, Ct).
    if Ct < 128 and 128 % Ct == 0 and HW % (128 // Ct) == 0:
        rows_per_out = 128 // Ct
        out_rows, out_cols = HW * Ct // 128, 128
    else:
        rows_per_out = 1
        out_rows, out_cols = HW, Ct

    kernel = functools.partial(_hybrid_skip_kernel, rows_per_out=rows_per_out)

    def full(shape):
        return pl.BlockSpec(shape, lambda b: (0,) * len(shape))

    out = pl.pallas_call(
        kernel,
        out_shape=jax.ShapeDtypeStruct((B, out_rows, out_cols), jnp.float32),
        grid=(B,),
        in_specs=[
            pl.BlockSpec((None, H, W, Cd), lambda b: (b, 0, 0, 0)),
            pl.BlockSpec((None, H + 2, W + 2, Ce), lambda b: (b, 0, 0, 0)),
            full((9 * Ce, Ce)),
            full((1, Ce)),
            full((1, Ce)),
            full((Cd, Ct)),
            full((Ce, Ct)),
            full((1, Ct)),
            full((1, Ct)),
            full((Ct, Cr)),
            full((Cr, Ct)),
        ],
        out_specs=pl.BlockSpec((None, out_rows, out_cols), lambda b: (b, 0, 0)),
        compiler_params=pltpu.CompilerParams(
            dimension_semantics=("parallel",),
            # Raise/tune once spatial tiles grow; tiny blocks fit easily today.
            vmem_limit_bytes=32 * 1024 * 1024,
        ),
    )(dec_nhwc, enc_pad, w_refine, p["refine_scale"], p["refine_bias"],
      wa_dec, wa_enc, p["attn_scale"], p["attn_bias"], p["w_se1"], p["w_se2"])
    return out.reshape(B, H, W, Ct)


def make_params(key, dec_ch, enc_ch, reduction=16, eps=1e-5):
    """Deterministic synthetic parameters (inference-mode BN folded)."""
    Ct = dec_ch + enc_ch
    Cr = max(Ct // reduction, 1)
    ks = jax.random.split(key, 12)

    def fold_bn(kg, kb, km, kv, c):
        gamma = 1.0 + 0.1 * jax.random.normal(kg, (c,), jnp.float32)
        beta = 0.1 * jax.random.normal(kb, (c,), jnp.float32)
        mean = 0.05 * jax.random.normal(km, (c,), jnp.float32)
        var = 1.0 + 0.2 * jax.random.uniform(kv, (c,), jnp.float32)
        scale = gamma / jnp.sqrt(var + eps)
        bias = beta - mean * scale
        return scale.reshape(1, c), bias.reshape(1, c)

    w_refine = 0.1 * jax.random.normal(ks[0], (3, 3, enc_ch, enc_ch), jnp.float32)
    refine_scale, refine_bias = fold_bn(ks[1], ks[2], ks[3], ks[4], enc_ch)
    w_attn = 0.1 * jax.random.normal(ks[5], (Ct, Ct), jnp.float32)
    attn_scale, attn_bias = fold_bn(ks[6], ks[7], ks[8], ks[9], Ct)
    w_se1 = 0.2 * jax.random.normal(ks[10], (Ct, Cr), jnp.float32)
    w_se2 = 0.2 * jax.random.normal(ks[11], (Cr, Ct), jnp.float32)
    return dict(w_refine=w_refine, refine_scale=refine_scale,
                refine_bias=refine_bias, w_attn=w_attn,
                attn_scale=attn_scale, attn_bias=attn_bias,
                w_se1=w_se1, w_se2=w_se2)


def reference(dec, enc, p):
    """Pure-JAX f32 reference mirroring the PyTorch forward (NHWC)."""
    encp = jnp.pad(enc, ((0, 0), (1, 1), (1, 1), (0, 0)), mode="reflect")
    conv = lax.conv_general_dilated(
        encp, p["w_refine"], window_strides=(1, 1), padding="VALID",
        dimension_numbers=("NHWC", "HWIO", "NHWC"))
    refined = jnp.maximum(
        conv * p["refine_scale"].reshape(1, 1, 1, -1)
        + p["refine_bias"].reshape(1, 1, 1, -1), 0.0)
    x_cat = jnp.concatenate([dec, refined], axis=-1)
    attn = jnp.einsum("bhwc,cd->bhwd", x_cat, p["w_attn"])
    attn = jax.nn.sigmoid(attn * p["attn_scale"].reshape(1, 1, 1, -1)
                          + p["attn_bias"].reshape(1, 1, 1, -1))
    x_out = x_cat * attn
    pooled = jnp.mean(x_out, axis=(1, 2))
    h = jnp.maximum(pooled @ p["w_se1"], 0.0)
    s = jax.nn.sigmoid(h @ p["w_se2"])
    return x_out * s[:, None, None, :]


if __name__ == "__main__":
    B, H, W = 2, 16, 16
    dec_ch, enc_ch = 16, 16

    key = jax.random.PRNGKey(0)
    k_dec, k_enc, k_par = jax.random.split(key, 3)
    dec_feat = jax.random.normal(k_dec, (B, H, W, dec_ch), jnp.float32)
    enc_feat = jax.random.normal(k_enc, (B, H, W, enc_ch), jnp.float32)
    params = make_params(k_par, dec_ch, enc_ch, reduction=16)

    out = hybrid_skip_block(dec_feat, enc_feat, params)
    out = jax.block_until_ready(out)

    ref = jax.block_until_ready(reference(dec_feat, enc_feat, params))
    assert out.shape == (B, H, W, dec_ch + enc_ch)
    # Tolerance loosened vs. pure-f32 reference because MXU matmul inputs are
    # bf16 (accumulation stays f32); structural bugs would show O(1) errors.
    max_err = float(jnp.max(jnp.abs(out - ref)))
    assert jnp.allclose(out, ref, rtol=5e-2, atol=5e-2), max_err

    print("KERNEL_OK")
</pallas_src>

<mosaic_0001>
module attributes {stable_mosaic.version = 11 : i64} {
  func.func @_hybrid_skip_kernel(%arg0: i32, %arg1: memref<1x16x16x16xf32, #tpu.memory_space<vmem>>, %arg2: memref<1x18x18x16xf32, #tpu.memory_space<vmem>>, %arg3: memref<144x16xbf16, #tpu.memory_space<vmem>>, %arg4: memref<1x16xf32, #tpu.memory_space<vmem>>, %arg5: memref<1x16xf32, #tpu.memory_space<vmem>>, %arg6: memref<16x32xbf16, #tpu.memory_space<vmem>>, %arg7: memref<16x32xbf16, #tpu.memory_space<vmem>>, %arg8: memref<1x32xf32, #tpu.memory_space<vmem>>, %arg9: memref<1x32xf32, #tpu.memory_space<vmem>>, %arg10: memref<32x2xf32, #tpu.memory_space<vmem>>, %arg11: memref<2x32xf32, #tpu.memory_space<vmem>>, %arg12: memref<1x64x128xf32, #tpu.memory_space<vmem>>) attributes {dimension_semantics = [#tpu.dimension_semantics<parallel>], iteration_bounds = array<i64: 2>, scalar_prefetch = 0 : i64, scratch_operands = 0 : i64, tpu.core_type = #tpu.core_type<tc>, window_params = [{transform_indices = @transform_0, window_bounds = array<i64: 1, 16, 16, 16>}, {transform_indices = @transform_1, window_bounds = array<i64: 1, 18, 18, 16>}, {pipeline_mode = #tpu.pipeline_mode<synchronous>, transform_indices = @transform_2, window_bounds = array<i64: 144, 16>}, {pipeline_mode = #tpu.pipeline_mode<synchronous>, transform_indices = @transform_3, window_bounds = array<i64: 1, 16>}, {pipeline_mode = #tpu.pipeline_mode<synchronous>, transform_indices = @transform_4, window_bounds = array<i64: 1, 16>}, {pipeline_mode = #tpu.pipeline_mode<synchronous>, transform_indices = @transform_5, window_bounds = array<i64: 16, 32>}, {pipeline_mode = #tpu.pipeline_mode<synchronous>, transform_indices = @transform_6, window_bounds = array<i64: 16, 32>}, {pipeline_mode = #tpu.pipeline_mode<synchronous>, transform_indices = @transform_7, window_bounds = array<i64: 1, 32>}, {pipeline_mode = #tpu.pipeline_mode<synchronous>, transform_indices = @transform_8, window_bounds = array<i64: 1, 32>}, {pipeline_mode = #tpu.pipeline_mode<synchronous>, transform_indices = @transform_9, window_bounds = array<i64: 32, 2>}, {pipeline_mode = #tpu.pipeline_mode<synchronous>, transform_indices = @transform_10, window_bounds = array<i64: 2, 32>}, {transform_indices = @transform_11, window_bounds = array<i64: 1, 64, 128>}]} {
    %c0 = arith.constant 0 : index
    %c0_0 = arith.constant 0 : index
    %c0_1 = arith.constant 0 : index
    %c0_2 = arith.constant 0 : index
    %0 = vector.load %arg2[%c0, %c0_0, %c0_1, %c0_2] : memref<1x18x18x16xf32, #tpu.memory_space<vmem>>, vector<1x18x18x16xf32>
    %1 = vector.shape_cast %0 : vector<1x18x18x16xf32> to vector<18x18x16xf32>
    %2 = vector.extract_strided_slice %1 {offsets = [0, 0, 0], sizes = [16, 16, 16], strides = [1, 1, 1]} : vector<18x18x16xf32> to vector<16x16x16xf32>
    %3 = vector.shape_cast %2 : vector<16x16x16xf32> to vector<256x16xf32>
    %4 = vector.extract_strided_slice %1 {offsets = [0, 1, 0], sizes = [16, 16, 16], strides = [1, 1, 1]} : vector<18x18x16xf32> to vector<16x16x16xf32>
    %5 = vector.shape_cast %4 : vector<16x16x16xf32> to vector<256x16xf32>
    %6 = vector.extract_strided_slice %1 {offsets = [0, 2, 0], sizes = [16, 16, 16], strides = [1, 1, 1]} : vector<18x18x16xf32> to vector<16x16x16xf32>
    %7 = vector.shape_cast %6 : vector<16x16x16xf32> to vector<256x16xf32>
    %8 = vector.extract_strided_slice %1 {offsets = [1, 0, 0], sizes = [16, 16, 16], strides = [1, 1, 1]} : vector<18x18x16xf32> to vector<16x16x16xf32>
    %9 = vector.shape_cast %8 : vector<16x16x16xf32> to vector<256x16xf32>
    %10 = vector.extract_strided_slice %1 {offsets = [1, 1, 0], sizes = [16, 16, 16], strides = [1, 1, 1]} : vector<18x18x16xf32> to vector<16x16x16xf32>
    %11 = vector.shape_cast %10 : vector<16x16x16xf32> to vector<256x16xf32>
    %12 = vector.extract_strided_slice %1 {offsets = [1, 2, 0], sizes = [16, 16, 16], strides = [1, 1, 1]} : vector<18x18x16xf32> to vector<16x16x16xf32>
    %13 = vector.shape_cast %12 : vector<16x16x16xf32> to vector<256x16xf32>
    %14 = vector.extract_strided_slice %1 {offsets = [2, 0, 0], sizes = [16, 16, 16], strides = [1, 1, 1]} : vector<18x18x16xf32> to vector<16x16x16xf32>
    %15 = vector.shape_cast %14 : vector<16x16x16xf32> to vector<256x16xf32>
    %16 = vector.extract_strided_slice %1 {offsets = [2, 1, 0], sizes = [16, 16, 16], strides = [1, 1, 1]} : vector<18x18x16xf32> to vector<16x16x16xf32>
    %17 = vector.shape_cast %16 : vector<16x16x16xf32> to vector<256x16xf32>
    %18 = vector.extract_strided_slice %1 {offsets = [2, 2, 0], sizes = [16, 16, 16], strides = [1, 1, 1]} : vector<18x18x16xf32> to vector<16x16x16xf32>
    %19 = vector.shape_cast %18 : vector<16x16x16xf32> to vector<256x16xf32>
    %20 = tpu.concatenate %3, %5, %7, %9, %11, %13, %15, %17, %19 in 1 : vector<256x16xf32>, vector<256x16xf32>, vector<256x16xf32>, vector<256x16xf32>, vector<256x16xf32>, vector<256x16xf32>, vector<256x16xf32>, vector<256x16xf32>, vector<256x16xf32> -> vector<256x144xf32>
    %21 = arith.truncf %20 : vector<256x144xf32> to vector<256x144xbf16>
    %c0_3 = arith.constant 0 : index
    %c0_4 = arith.constant 0 : index
    %22 = vector.load %arg3[%c0_3, %c0_4] : memref<144x16xbf16, #tpu.memory_space<vmem>>, vector<144x16xbf16>
    %cst = arith.constant dense<0.000000e+00> : vector<256x16xf32>
    %23 = tpu.matmul %21, %22, %cst {dimension_numbers = #tpu.dot_dimension_numbers<[1], [0], [0], [1], [0, 0, 1, 1], [], []>} : vector<256x144xbf16>, vector<144x16xbf16>, vector<256x16xf32> -> vector<256x16xf32>
    %c0_5 = arith.constant 0 : index
    %c0_6 = arith.constant 0 : index
    %24 = vector.load %arg4[%c0_5, %c0_6] : memref<1x16xf32, #tpu.memory_space<vmem>>, vector<1x16xf32>
    %25 = vector.broadcast %24 : vector<1x16xf32> to vector<256x16xf32>
    %26 = arith.mulf %23, %25 : vector<256x16xf32>
    %c0_7 = arith.constant 0 : index
    %c0_8 = arith.constant 0 : index
    %27 = vector.load %arg5[%c0_7, %c0_8] : memref<1x16xf32, #tpu.memory_space<vmem>>, vector<1x16xf32>
    %28 = vector.broadcast %27 : vector<1x16xf32> to vector<256x16xf32>
    %29 = arith.addf %26, %28 : vector<256x16xf32>
    %cst_9 = arith.constant 0.000000e+00 : f32
    %30 = vector.broadcast %cst_9 : f32 to vector<256x16xf32>
    %31 = arith.maximumf %29, %30 : vector<256x16xf32>
    %c0_10 = arith.constant 0 : index
    %c0_11 = arith.constant 0 : index
    %c0_12 = arith.constant 0 : index
    %c0_13 = arith.constant 0 : index
    %32 = vector.load %arg1[%c0_10, %c0_11, %c0_12, %c0_13] : memref<1x16x16x16xf32, #tpu.memory_space<vmem>>, vector<1x16x16x16xf32>
    %33 = vector.shape_cast %32 : vector<1x16x16x16xf32> to vector<16x16x16xf32>
    %34 = vector.shape_cast %33 : vector<16x16x16xf32> to vector<256x16xf32>
    %35 = arith.truncf %34 : vector<256x16xf32> to vector<256x16xbf16>
    %c0_14 = arith.constant 0 : index
    %c0_15 = arith.constant 0 : index
    %36 = vector.load %arg6[%c0_14, %c0_15] : memref<16x32xbf16, #tpu.memory_space<vmem>>, vector<16x32xbf16>
    %cst_16 = arith.constant dense<0.000000e+00> : vector<256x32xf32>
    %37 = tpu.matmul %35, %36, %cst_16 {dimension_numbers = #tpu.dot_dimension_numbers<[1], [0], [0], [1], [0, 0, 1, 1], [], []>} : vector<256x16xbf16>, vector<16x32xbf16>, vector<256x32xf32> -> vector<256x32xf32>
    %38 = arith.truncf %31 : vector<256x16xf32> to vector<256x16xbf16>
    %c0_17 = arith.constant 0 : index
    %c0_18 = arith.constant 0 : index
    %39 = vector.load %arg7[%c0_17, %c0_18] : memref<16x32xbf16, #tpu.memory_space<vmem>>, vector<16x32xbf16>
    %cst_19 = arith.constant dense<0.000000e+00> : vector<256x32xf32>
    %40 = tpu.matmul %38, %39, %cst_19 {dimension_numbers = #tpu.dot_dimension_numbers<[1], [0], [0], [1], [0, 0, 1, 1], [], []>} : vector<256x16xbf16>, vector<16x32xbf16>, vector<256x32xf32> -> vector<256x32xf32>
    %41 = arith.addf %37, %40 : vector<256x32xf32>
    %c0_20 = arith.constant 0 : index
    %c0_21 = arith.constant 0 : index
    %42 = vector.load %arg8[%c0_20, %c0_21] : memref<1x32xf32, #tpu.memory_space<vmem>>, vector<1x32xf32>
    %43 = vector.broadcast %42 : vector<1x32xf32> to vector<256x32xf32>
    %44 = arith.mulf %41, %43 : vector<256x32xf32>
    %c0_22 = arith.constant 0 : index
    %c0_23 = arith.constant 0 : index
    %45 = vector.load %arg9[%c0_22, %c0_23] : memref<1x32xf32, #tpu.memory_space<vmem>>, vector<1x32xf32>
    %46 = vector.broadcast %45 : vector<1x32xf32> to vector<256x32xf32>
    %47 = arith.addf %44, %46 : vector<256x32xf32>
    %48 = arith.negf %47 : vector<256x32xf32>
    %49 = math.exp %48 : vector<256x32xf32>
    %cst_24 = arith.constant 1.000000e+00 : f32
    %50 = vector.broadcast %cst_24 : f32 to vector<256x32xf32>
    %51 = arith.addf %50, %49 : vector<256x32xf32>
    %52 = arith.divf %50, %51 : vector<256x32xf32>
    %53 = vector.extract_strided_slice %52 {offsets = [0, 0], sizes = [256, 16], strides = [1, 1]} : vector<256x32xf32> to vector<256x16xf32>
    %54 = arith.mulf %34, %53 : vector<256x16xf32>
    %55 = vector.extract_strided_slice %52 {offsets = [0, 16], sizes = [256, 16], strides = [1, 1]} : vector<256x32xf32> to vector<256x16xf32>
    %56 = arith.mulf %31, %55 : vector<256x16xf32>
    %cst_25 = arith.constant dense<0.000000e+00> : vector<16xf32>
    %57 = vector.multi_reduction <add>, %54, %cst_25 [0] : vector<256x16xf32> to vector<16xf32>
    %58 = vector.shape_cast %57 : vector<16xf32> to vector<1x16xf32>
    %cst_26 = arith.constant 2.560000e+02 : f32
    %59 = vector.broadcast %cst_26 : f32 to vector<1x16xf32>
    %60 = arith.divf %58, %59 : vector<1x16xf32>
    %cst_27 = arith.constant dense<0.000000e+00> : vector<16xf32>
    %61 = vector.multi_reduction <add>, %56, %cst_27 [0] : vector<256x16xf32> to vector<16xf32>
    %62 = vector.shape_cast %61 : vector<16xf32> to vector<1x16xf32>
    %cst_28 = arith.constant 2.560000e+02 : f32
    %63 = vector.broadcast %cst_28 : f32 to vector<1x16xf32>
    %64 = arith.divf %62, %63 : vector<1x16xf32>
    %65 = tpu.concatenate %60, %64 in 1 : vector<1x16xf32>, vector<1x16xf32> -> vector<1x32xf32>
    %c0_29 = arith.constant 0 : index
    %c0_30 = arith.constant 0 : index
    %66 = vector.load %arg10[%c0_29, %c0_30] : memref<32x2xf32, #tpu.memory_space<vmem>>, vector<32x2xf32>
    %cst_31 = arith.constant dense<0.000000e+00> : vector<1x2xf32>
    %67 = tpu.matmul %65, %66, %cst_31 {dimension_numbers = #tpu.dot_dimension_numbers<[1], [0], [0], [1], [0, 0, 1, 1], [], []>} : vector<1x32xf32>, vector<32x2xf32>, vector<1x2xf32> -> vector<1x2xf32>
    %cst_32 = arith.constant 0.000000e+00 : f32
    %68 = vector.broadcast %cst_32 : f32 to vector<1x2xf32>
    %69 = arith.maximumf %67, %68 : vector<1x2xf32>
    %c0_33 = arith.constant 0 : index
    %c0_34 = arith.constant 0 : index
    %70 = vector.load %arg11[%c0_33, %c0_34] : memref<2x32xf32, #tpu.memory_space<vmem>>, vector<2x32xf32>
    %cst_35 = arith.constant dense<0.000000e+00> : vector<1x32xf32>
    %71 = tpu.matmul %69, %70, %cst_35 {dimension_numbers = #tpu.dot_dimension_numbers<[1], [0], [0], [1], [0, 0, 1, 1], [], []>} : vector<1x2xf32>, vector<2x32xf32>, vector<1x32xf32> -> vector<1x32xf32>
    %72 = arith.negf %71 : vector<1x32xf32>
    %73 = math.exp %72 : vector<1x32xf32>
    %cst_36 = arith.constant 1.000000e+00 : f32
    %74 = vector.broadcast %cst_36 : f32 to vector<1x32xf32>
    %75 = arith.addf %74, %73 : vector<1x32xf32>
    %76 = arith.divf %74, %75 : vector<1x32xf32>
    %77 = vector.extract_strided_slice %76 {offsets = [0, 0], sizes = [1, 16], strides = [1, 1]} : vector<1x32xf32> to vector<1x16xf32>
    %78 = vector.broadcast %77 : vector<1x16xf32> to vector<256x16xf32>
    %79 = arith.mulf %54, %78 : vector<256x16xf32>
    %80 = vector.extract_strided_slice %76 {offsets = [0, 16], sizes = [1, 16], strides = [1, 1]} : vector<1x32xf32> to vector<1x16xf32>
    %81 = vector.broadcast %80 : vector<1x16xf32> to vector<256x16xf32>
    %82 = arith.mulf %56, %81 : vector<256x16xf32>
    %83 = tpu.concatenate %79, %82 in 1 : vector<256x16xf32>, vector<256x16xf32> -> vector<256x32xf32>
    %84 = vector.shape_cast %83 : vector<256x32xf32> to vector<64x4x32xf32>
    %85 = vector.extract_strided_slice %84 {offsets = [0, 0, 0], sizes = [64, 1, 32], strides = [1, 1, 1]} : vector<64x4x32xf32> to vector<64x1x32xf32>
    %86 = vector.shape_cast %85 : vector<64x1x32xf32> to vector<64x32xf32>
    %87 = vector.extract_strided_slice %84 {offsets = [0, 1, 0], sizes = [64, 1, 32], strides = [1, 1, 1]} : vector<64x4x32xf32> to vector<64x1x32xf32>
    %88 = vector.shape_cast %87 : vector<64x1x32xf32> to vector<64x32xf32>
    %89 = vector.extract_strided_slice %84 {offsets = [0, 2, 0], sizes = [64, 1, 32], strides = [1, 1, 1]} : vector<64x4x32xf32> to vector<64x1x32xf32>
    %90 = vector.shape_cast %89 : vector<64x1x32xf32> to vector<64x32xf32>
    %91 = vector.extract_strided_slice %84 {offsets = [0, 3, 0], sizes = [64, 1, 32], strides = [1, 1, 1]} : vector<64x4x32xf32> to vector<64x1x32xf32>
    %92 = vector.shape_cast %91 : vector<64x1x32xf32> to vector<64x32xf32>
    %93 = tpu.concatenate %86, %88, %90, %92 in 1 : vector<64x32xf32>, vector<64x32xf32>, vector<64x32xf32>, vector<64x32xf32> -> vector<64x128xf32>
    %c0_37 = arith.constant 0 : index
    %c0_38 = arith.constant 0 : index
    %c0_39 = arith.constant 0 : index
    %94 = vector.load %arg12[%c0_37, %c0_38, %c0_39] : memref<1x64x128xf32, #tpu.memory_space<vmem>>, vector<1x64x128xf32>
    %95 = vector.shape_cast %94 : vector<1x64x128xf32> to vector<64x128xf32>
    %96 = vector.shape_cast %93 : vector<64x128xf32> to vector<1x64x128xf32>
    tpu.vector_store %arg12[%c0_37, %c0_38, %c0_39], %96 {strides = array<i32>} : memref<1x64x128xf32, #tpu.memory_space<vmem>>, vector<1x64x128xf32>,
    return
  }
  func.func @transform_0(%arg0: i32) -> (i32, i32, i32, i32) {
    %c0_i32 = arith.constant 0 : i32
    %c0_i32_0 = arith.constant 0 : i32
    %c0_i32_1 = arith.constant 0 : i32
    %c0_i32_2 = arith.constant 0 : i32
    return %arg0, %c0_i32, %c0_i32_0, %c0_i32_1 : i32, i32, i32, i32
  }
  func.func @transform_1(%arg0: i32) -> (i32, i32, i32, i32) {
    %c0_i32 = arith.constant 0 : i32
    %c0_i32_0 = arith.constant 0 : i32
    %c0_i32_1 = arith.constant 0 : i32
    %c0_i32_2 = arith.constant 0 : i32
    return %arg0, %c0_i32, %c0_i32_0, %c0_i32_1 : i32, i32, i32, i32
  }
  func.func @transform_2(%arg0: i32) -> (i32, i32) {
    %c0_i32 = arith.constant 0 : i32
    %c0_i32_0 = arith.constant 0 : i32
    %c0_i32_1 = arith.constant 0 : i32
    return %c0_i32, %c0_i32_0 : i32, i32
  }
  func.func @transform_3(%arg0: i32) -> (i32, i32) {
    %c0_i32 = arith.constant 0 : i32
    %c0_i32_0 = arith.constant 0 : i32
    %c0_i32_1 = arith.constant 0 : i32
    return %c0_i32, %c0_i32_0 : i32, i32
  }
  func.func @transform_4(%arg0: i32) -> (i32, i32) {
    %c0_i32 = arith.constant 0 : i32
    %c0_i32_0 = arith.constant 0 : i32
    %c0_i32_1 = arith.constant 0 : i32
    return %c0_i32, %c0_i32_0 : i32, i32
  }
  func.func @transform_5(%arg0: i32) -> (i32, i32) {
    %c0_i32 = arith.constant 0 : i32
    %c0_i32_0 = arith.constant 0 : i32
    %c0_i32_1 = arith.constant 0 : i32
    return %c0_i32, %c0_i32_0 : i32, i32
  }
  func.func @transform_6(%arg0: i32) -> (i32, i32) {
    %c0_i32 = arith.constant 0 : i32
    %c0_i32_0 = arith.constant 0 : i32
    %c0_i32_1 = arith.constant 0 : i32
    return %c0_i32, %c0_i32_0 : i32, i32
  }
  func.func @transform_7(%arg0: i32) -> (i32, i32) {
    %c0_i32 = arith.constant 0 : i32
    %c0_i32_0 = arith.constant 0 : i32
    %c0_i32_1 = arith.constant 0 : i32
    return %c0_i32, %c0_i32_0 : i32, i32
  }
  func.func @transform_8(%arg0: i32) -> (i32, i32) {
    %c0_i32 = arith.constant 0 : i32
    %c0_i32_0 = arith.constant 0 : i32
    %c0_i32_1 = arith.constant 0 : i32
    return %c0_i32, %c0_i32_0 : i32, i32
  }
  func.func @transform_9(%arg0: i32) -> (i32, i32) {
    %c0_i32 = arith.constant 0 : i32
    %c0_i32_0 = arith.constant 0 : i32
    %c0_i32_1 = arith.constant 0 : i32
    return %c0_i32, %c0_i32_0 : i32, i32
  }
  func.func @transform_10(%arg0: i32) -> (i32, i32) {
    %c0_i32 = arith.constant 0 : i32
    %c0_i32_0 = arith.constant 0 : i32
    %c0_i32_1 = arith.constant 0 : i32
    return %c0_i32, %c0_i32_0 : i32, i32
  }
  func.func @transform_11(%arg0: i32) -> (i32, i32, i32) {
    %c0_i32 = arith.constant 0 : i32
    %c0_i32_0 = arith.constant 0 : i32
    %c0_i32_1 = arith.constant 0 : i32
    return %arg0, %c0_i32, %c0_i32_0 : i32, i32, i32
  }
}

</mosaic_0001>

<llo_original>
// kernel: tpu_custom_call.1
$region0: #{tpu_custom_call.1}
  #allocation0 [shape = 'u32[]', space=smem, size = 0x4, offset = 0x4, fixed_abs, tag = 'smem constant byte address 0x4 - core index']
  #allocation1 [shape = 'u32[144,128]{1,0:T(1,128)}', space=vmem, size = 0x12000, scoped, tag = 'internal scratch']
  %s0 = inlined_call_operand.vmem [shape: f32[2,16,16,16], index: 0, kind: input, shape index: {}]
  %s1 = inlined_call_operand.vmem [shape: f32[2,18,18,16], index: 1, kind: input, shape index: {}]
  %s2 = inlined_call_operand.vmem [shape: bf16[144,16], index: 2, kind: input, shape index: {}]
  %s3 = inlined_call_operand.vmem [shape: f32[1,16], index: 3, kind: input, shape index: {}]
  %s4 = inlined_call_operand.vmem [shape: f32[1,16], index: 4, kind: input, shape index: {}]
  %s5 = inlined_call_operand.vmem [shape: bf16[16,32], index: 5, kind: input, shape index: {}]
  %s6 = inlined_call_operand.vmem [shape: bf16[16,32], index: 6, kind: input, shape index: {}]
  %s7 = inlined_call_operand.vmem [shape: f32[1,32], index: 7, kind: input, shape index: {}]
  %s8 = inlined_call_operand.vmem [shape: f32[1,32], index: 8, kind: input, shape index: {}]
  %s9 = inlined_call_operand.vmem [shape: f32[32,2], index: 9, kind: input, shape index: {}]
  %s10 = inlined_call_operand.vmem [shape: f32[2,32], index: 10, kind: input, shape index: {}]
  %s11 = inlined_call_operand.hbm [shape: f32[2,64,128], index: 11, kind: output, shape index: {}]
  %s12 = sld [smem:[#allocation0]]
  $region77: #{tpu_custom_call.1} parent=0
    _
  %s14 = ssub.s32 1, %s12
  %s15 = scalar_select 0, %s14, %s12
  $region1: #{tpu_custom_call.1} parent=0
    #allocation2 [shape = 'u8[65536]{0}', space=vmem, size = 0x10000, scoped, tag = 'output window, operand 0']
    #allocation3 [shape = 's32[2]{0}', space=sflag, size = 0x8, scoped, tag = 'scoped memory for tpu_custom_call.1']
    %16 = vsyncpa [#allocation3], 0
    %s17 = scalar_lea.sflag [#allocation3], 1
    %18 = vsyncpa %s17, 0
    loop: start=0, step=1, limit=4
    $region2: #{tpu_custom_call.1} parent=1 // loop_pre_header
      _
    $region3: #{tpu_custom_call.1} parent=1 // loop_header
      %s20 = sphi 0, %s24
      %p21 = scmp.ge.s32.totalorder %s20, 4
      %s30 = sphi 0, %s32
      %s33 = sphi 0, %s30
      %s34 = sphi 0, %s33
      %s50 = sphi 0, %s34
      %s56 = sphi 0, %s58
      %s59 = sphi 0, %s56
      %s60 = sphi 0, %s59
      %s76 = sphi 0, %s60
      %s80 = sphi 0, %s80
      %s82 = sphi 0, %s80
      %s83 = sphi 0, %s82
      %s97 = sphi 0, %s83
      %s101 = sphi 0, %s101
      %s103 = sphi 0, %s101
      %s104 = sphi 0, %s103
      %s118 = sphi 0, %s104
      %s122 = sphi 0, %s122
      %s124 = sphi 0, %s122
      %s125 = sphi 0, %s124
      %s139 = sphi 0, %s125
      %s143 = sphi 0, %s143
      %s145 = sphi 0, %s143
      %s146 = sphi 0, %s145
      %s160 = sphi 0, %s146
      %s164 = sphi 0, %s164
      %s166 = sphi 0, %s164
      %s167 = sphi 0, %s166
      %s181 = sphi 0, %s167
      %s185 = sphi 0, %s185
      %s187 = sphi 0, %s185
      %s188 = sphi 0, %s187
      %s202 = sphi 0, %s188
      %s206 = sphi 0, %s206
      %s208 = sphi 0, %s206
      %s209 = sphi 0, %s208
      %s223 = sphi 0, %s209
      %s227 = sphi 0, %s227
      %s229 = sphi 0, %s227
      %s230 = sphi 0, %s229
      %s244 = sphi 0, %s230
      %s248 = sphi 0, %s248
      %s250 = sphi 0, %s248
      %s251 = sphi 0, %s250
      %s265 = sphi 0, %s251
      %s271 = sphi 0, %s273
      %s274 = sphi 0, %s271
      %s275 = sphi 0, %s274
      %s291 = sphi 0, %s275
    $region4: #{tpu_custom_call.1} parent=1 // loop_header_branch
      %23 = sbr.rel (%p21) target = $region8
    $region5: #{tpu_custom_call.1} parent=1 // loop_body
      %s25 = ssub.s32 %s20, 1
      %s26 = ssub.s32 %s20, 2
      %s27 = sadd.s32 %s20, 1
      %s28 = ssub.s32 %s20, %s27
      %p29 = scmp.eq.s32.totalorder %s28, 0
      %s31 = sadd.s32 %s30, 1
      %s32 = scalar_select %p29, %s30, %s31
      %p35 = pneg %p29
      %p36 = scmp.eq.s32.totalorder %s20, 1
      %p37 = por %p35, %p36
      %p38 = scmp.ne.s32.totalorder %s30, %s33
      %p39 = scmp.eq.s32.totalorder %s20, 0
      %p40 = por %p38, %p39
      %p41 = scmp.ne.s32.totalorder %s30, %s33
      %p42 = scmp.eq.s32.totalorder %s25, 1
      %p43 = por %p41, %p42
      %p44 = scmp.ne.s32.totalorder %s33, %s34
      %p45 = scmp.eq.s32.totalorder %s25, 0
      %p46 = por %p44, %p45
      %p47 = scmp.ne.s32.totalorder %s33, %s34
      %p48 = scmp.eq.s32.totalorder %s26, 1
      %p49 = por %p47, %p48
      %p51 = scmp.ne.s32.totalorder %s34, %s50
      %p52 = scmp.eq.s32.totalorder %s26, 0
      %p53 = por %p51, %p52
      %s54 = ssub.s32 %s20, %s27
      %p55 = scmp.eq.s32.totalorder %s54, 0
      %s57 = sadd.s32 %s56, 1
      %s58 = scalar_select %p55, %s56, %s57
      %p61 = pneg %p55
      %p62 = scmp.eq.s32.totalorder %s20, 1
      %p63 = por %p61, %p62
      %p64 = scmp.ne.s32.totalorder %s56, %s59
      %p65 = scmp.eq.s32.totalorder %s20, 0
      %p66 = por %p64, %p65
      %p67 = scmp.ne.s32.totalorder %s56, %s59
      %p68 = scmp.eq.s32.totalorder %s25, 1
      %p69 = por %p67, %p68
      %p70 = scmp.ne.s32.totalorder %s59, %s60
      %p71 = scmp.eq.s32.totalorder %s25, 0
      %p72 = por %p70, %p71
      %p73 = scmp.ne.s32.totalorder %s59, %s60
      %p74 = scmp.eq.s32.totalorder %s26, 1
      %p75 = por %p73, %p74
      %p77 = scmp.ne.s32.totalorder %s60, %s76
      %p78 = scmp.eq.s32.totalorder %s26, 0
      %p79 = por %p77, %p78
      %s81 = sadd.s32 %s80, 1
      %p84 = scmp.eq.s32.totalorder %s20, 1
      %p85 = scmp.ne.s32.totalorder %s80, %s82
      %p86 = scmp.eq.s32.totalorder %s20, 0
      %p87 = por %p85, %p86
      %p88 = scmp.ne.s32.totalorder %s80, %s82
      %p89 = scmp.eq.s32.totalorder %s25, 1
      %p90 = por %p88, %p89
      %p91 = scmp.ne.s32.totalorder %s82, %s83
      %p92 = scmp.eq.s32.totalorder %s25, 0
      %p93 = por %p91, %p92
      %p94 = scmp.ne.s32.totalorder %s82, %s83
      %p95 = scmp.eq.s32.totalorder %s26, 1
      %p96 = por %p94, %p95
      %p98 = scmp.ne.s32.totalorder %s83, %s97
      %p99 = scmp.eq.s32.totalorder %s26, 0
      %p100 = por %p98, %p99
      %s102 = sadd.s32 %s101, 1
      %p105 = scmp.eq.s32.totalorder %s20, 1
      %p106 = scmp.ne.s32.totalorder %s101, %s103
      %p107 = scmp.eq.s32.totalorder %s20, 0
      %p108 = por %p106, %p107
      %p109 = scmp.ne.s32.totalorder %s101, %s103
      %p110 = scmp.eq.s32.totalorder %s25, 1
      %p111 = por %p109, %p110
      %p112 = scmp.ne.s32.totalorder %s103, %s104
      %p113 = scmp.eq.s32.totalorder %s25, 0
      %p114 = por %p112, %p113
      %p115 = scmp.ne.s32.totalorder %s103, %s104
      %p116 = scmp.eq.s32.totalorder %s26, 1
      %p117 = por %p115, %p116
      %p119 = scmp.ne.s32.totalorder %s104, %s118
      %p120 = scmp.eq.s32.totalorder %s26, 0
      %p121 = por %p119, %p120
      %s123 = sadd.s32 %s122, 1
      %p126 = scmp.eq.s32.totalorder %s20, 1
      %p127 = scmp.ne.s32.totalorder %s122, %s124
      %p128 = scmp.eq.s32.totalorder %s20, 0
      %p129 = por %p127, %p128
      %p130 = scmp.ne.s32.totalorder %s122, %s124
      %p131 = scmp.eq.s32.totalorder %s25, 1
      %p132 = por %p130, %p131
      %p133 = scmp.ne.s32.totalorder %s124, %s125
      %p134 = scmp.eq.s32.totalorder %s25, 0
      %p135 = por %p133, %p134
      %p136 = scmp.ne.s32.totalorder %s124, %s125
      %p137 = scmp.eq.s32.totalorder %s26, 1
      %p138 = por %p136, %p137
      %p140 = scmp.ne.s32.totalorder %s125, %s139
      %p141 = scmp.eq.s32.totalorder %s26, 0
      %p142 = por %p140, %p141
      %s144 = sadd.s32 %s143, 1
      %p147 = scmp.eq.s32.totalorder %s20, 1
      %p148 = scmp.ne.s32.totalorder %s143, %s145
      %p149 = scmp.eq.s32.totalorder %s20, 0
      %p150 = por %p148, %p149
      %p151 = scmp.ne.s32.totalorder %s143, %s145
      %p152 = scmp.eq.s32.totalorder %s25, 1
      %p153 = por %p151, %p152
      %p154 = scmp.ne.s32.totalorder %s145, %s146
      %p155 = scmp.eq.s32.totalorder %s25, 0
      %p156 = por %p154, %p155
      %p157 = scmp.ne.s32.totalorder %s145, %s146
      %p158 = scmp.eq.s32.totalorder %s26, 1
      %p159 = por %p157, %p158
      %p161 = scmp.ne.s32.totalorder %s146, %s160
      %p162 = scmp.eq.s32.totalorder %s26, 0
      %p163 = por %p161, %p162
      %s165 = sadd.s32 %s164, 1
      %p168 = scmp.eq.s32.totalorder %s20, 1
      %p169 = scmp.ne.s32.totalorder %s164, %s166
      %p170 = scmp.eq.s32.totalorder %s20, 0
      %p171 = por %p169, %p170
      %p172 = scmp.ne.s32.totalorder %s164, %s166
      %p173 = scmp.eq.s32.totalorder %s25, 1
      %p174 = por %p172, %p173
      %p175 = scmp.ne.s32.totalorder %s166, %s167
      %p176 = scmp.eq.s32.totalorder %s25, 0
      %p177 = por %p175, %p176
      %p178 = scmp.ne.s32.totalorder %s166, %s167
      %p179 = scmp.eq.s32.totalorder %s26, 1
      %p180 = por %p178, %p179
      %p182 = scmp.ne.s32.totalorder %s167, %s181
      %p183 = scmp.eq.s32.totalorder %s26, 0
      %p184 = por %p182, %p183
      %s186 = sadd.s32 %s185, 1
      %p189 = scmp.eq.s32.totalorder %s20, 1
      %p190 = scmp.ne.s32.totalorder %s185, %s187
      %p191 = scmp.eq.s32.totalorder %s20, 0
      %p192 = por %p190, %p191
      %p193 = scmp.ne.s32.totalorder %s185, %s187
      %p194 = scmp.eq.s32.totalorder %s25, 1
      %p195 = por %p193, %p194
      %p196 = scmp.ne.s32.totalorder %s187, %s188
      %p197 = scmp.eq.s32.totalorder %s25, 0
      %p198 = por %p196, %p197
      %p199 = scmp.ne.s32.totalorder %s187, %s188
      %p200 = scmp.eq.s32.totalorder %s26, 1
      %p201 = por %p199, %p200
      %p203 = scmp.ne.s32.totalorder %s188, %s202
      %p204 = scmp.eq.s32.totalorder %s26, 0
      %p205 = por %p203, %p204
      %s207 = sadd.s32 %s206, 1
      %p210 = scmp.eq.s32.totalorder %s20, 1
      %p211 = scmp.ne.s32.totalorder %s206, %s208
      %p212 = scmp.eq.s32.totalorder %s20, 0
      %p213 = por %p211, %p212
      %p214 = scmp.ne.s32.totalorder %s206, %s208
      %p215 = scmp.eq.s32.totalorder %s25, 1
      %p216 = por %p214, %p215
      %p217 = scmp.ne.s32.totalorder %s208, %s209
      %p218 = scmp.eq.s32.totalorder %s25, 0
      %p219 = por %p217, %p218
      %p220 = scmp.ne.s32.totalorder %s208, %s209
      %p221 = scmp.eq.s32.totalorder %s26, 1
      %p222 = por %p220, %p221
      %p224 = scmp.ne.s32.totalorder %s209, %s223
      %p225 = scmp.eq.s32.totalorder %s26, 0
      %p226 = por %p224, %p225
      %s228 = sadd.s32 %s227, 1
      %p231 = scmp.eq.s32.totalorder %s20, 1
      %p232 = scmp.ne.s32.totalorder %s227, %s229
      %p233 = scmp.eq.s32.totalorder %s20, 0
      %p234 = por %p232, %p233
      %p235 = scmp.ne.s32.totalorder %s227, %s229
      %p236 = scmp.eq.s32.totalorder %s25, 1
      %p237 = por %p235, %p236
      %p238 = scmp.ne.s32.totalorder %s229, %s230
      %p239 = scmp.eq.s32.totalorder %s25, 0
      %p240 = por %p238, %p239
      %p241 = scmp.ne.s32.totalorder %s229, %s230
      %p242 = scmp.eq.s32.totalorder %s26, 1
      %p243 = por %p241, %p242
      %p245 = scmp.ne.s32.totalorder %s230, %s244
      %p246 = scmp.eq.s32.totalorder %s26, 0
      %p247 = por %p245, %p246
      %s249 = sadd.s32 %s248, 1
      %p252 = scmp.eq.s32.totalorder %s20, 1
      %p253 = scmp.ne.s32.totalorder %s248, %s250
      %p254 = scmp.eq.s32.totalorder %s20, 0
      %p255 = por %p253, %p254
      %p256 = scmp.ne.s32.totalorder %s248, %s250
      %p257 = scmp.eq.s32.totalorder %s25, 1
      %p258 = por %p256, %p257
      %p259 = scmp.ne.s32.totalorder %s250, %s251
      %p260 = scmp.eq.s32.totalorder %s25, 0
      %p261 = por %p259, %p260
      %p262 = scmp.ne.s32.totalorder %s250, %s251
      %p263 = scmp.eq.s32.totalorder %s26, 1
      %p264 = por %p262, %p263
      %p266 = scmp.ne.s32.totalorder %s251, %s265
      %p267 = scmp.eq.s32.totalorder %s26, 0
      %p268 = por %p266, %p267
      %s269 = ssub.s32 %s20, %s27
      %p270 = scmp.eq.s32.totalorder %s269, 0
      %s272 = sadd.s32 %s271, 1
      %s273 = scalar_select %p270, %s271, %s272
      %p276 = pneg %p270
      %p277 = scmp.eq.s32.totalorder %s20, 1
      %p278 = por %p276, %p277
      %p279 = scmp.ne.s32.totalorder %s271, %s274
      %p280 = scmp.eq.s32.totalorder %s20, 0
      %p281 = por %p279, %p280
      %p282 = scmp.ne.s32.totalorder %s271, %s274
      %p283 = scmp.eq.s32.totalorder %s25, 1
      %p284 = por %p282, %p283
      %p285 = scmp.ne.s32.totalorder %s274, %s275
      %p286 = scmp.eq.s32.totalorder %s25, 0
      %p287 = por %p285, %p286
      %p288 = scmp.ne.s32.totalorder %s274, %s275
      %p289 = scmp.eq.s32.totalorder %s26, 1
      %p290 = por %p288, %p289
      %p292 = scmp.ne.s32.totalorder %s275, %s291
      %p293 = scmp.eq.s32.totalorder %s26, 0
      %p294 = por %p292, %p293
      %p295 = scmp.le.s32.totalorder 1, %s20
      %p296 = scmp.lt.s32.totalorder %s20, 3
      %p297 = pnand %p295, %p296
      %p298 = pneg %p297
      // Predicated region
      $region9: #{tpu_custom_call.1} parent=5 // pred_check
        _
      $region10: #{tpu_custom_call.1} parent=5 // pred_check_branch
        %300 = sbr.rel (%p297) target = $region12
      $region11: #{tpu_custom_call.1} parent=5 // pred_region
        %s301 = ssub.s32 %s20, 1
        // Predicated region
        $region13: #{tpu_custom_call.1} parent=11 // pred_check
          %p302 = pneg %p93
        $region14: #{tpu_custom_call.1} parent=11 // pred_check_branch
          %304 = sbr.rel (%p302) target = $region16
        $region15: #{tpu_custom_call.1} parent=11 // pred_region
          _
        $region16: #{tpu_custom_call.1} parent=11 // pred_fallthru
          _
        // Predicated region
        $region17: #{tpu_custom_call.1} parent=11 // pred_check
          %p305 = pneg %p114
        $region18: #{tpu_custom_call.1} parent=11 // pred_check_branch
          %307 = sbr.rel (%p305) target = $region20
        $region19: #{tpu_custom_call.1} parent=11 // pred_region
          _
        $region20: #{tpu_custom_call.1} parent=11 // pred_fallthru
          _
        // Predicated region
        $region21: #{tpu_custom_call.1} parent=11 // pred_check
          %p308 = pneg %p135
        $region22: #{tpu_custom_call.1} parent=11 // pred_check_branch
          %310 = sbr.rel (%p308) target = $region24
        $region23: #{tpu_custom_call.1} parent=11 // pred_region
          _
        $region24: #{tpu_custom_call.1} parent=11 // pred_fallthru
          _
        // Predicated region
        $region25: #{tpu_custom_call.1} parent=11 // pred_check
          %p311 = pneg %p156
        $region26: #{tpu_custom_call.1} parent=11 // pred_check_branch
          %313 = sbr.rel (%p311) target = $region28
        $region27: #{tpu_custom_call.1} parent=11 // pred_region
          _
        $region28: #{tpu_custom_call.1} parent=11 // pred_fallthru
          _
        // Predicated region
        $region29: #{tpu_custom_call.1} parent=11 // pred_check
          %p314 = pneg %p177
        $region30: #{tpu_custom_call.1} parent=11 // pred_check_branch
          %316 = sbr.rel (%p314) target = $region32
        $region31: #{tpu_custom_call.1} parent=11 // pred_region
          _
        $region32: #{tpu_custom_call.1} parent=11 // pred_fallthru
          _
        // Predicated region
        $region33: #{tpu_custom_call.1} parent=11 // pred_check
          %p317 = pneg %p198
        $region34: #{tpu_custom_call.1} parent=11 // pred_check_branch
          %319 = sbr.rel (%p317) target = $region36
        $region35: #{tpu_custom_call.1} parent=11 // pred_region
          _
        $region36: #{tpu_custom_call.1} parent=11 // pred_fallthru
          _
        // Predicated region
        $region37: #{tpu_custom_call.1} parent=11 // pred_check
          %p320 = pneg %p219
        $region38: #{tpu_custom_call.1} parent=11 // pred_check_branch
          %322 = sbr.rel (%p320) target = $region40
        $region39: #{tpu_custom_call.1} parent=11 // pred_region
          _
        $region40: #{tpu_custom_call.1} parent=11 // pred_fallthru
          _
        // Predicated region
        $region41: #{tpu_custom_call.1} parent=11 // pred_check
          %p323 = pneg %p240
        $region42: #{tpu_custom_call.1} parent=11 // pred_check_branch
          %325 = sbr.rel (%p323) target = $region44
        $region43: #{tpu_custom_call.1} parent=11 // pred_region
          _
        $region44: #{tpu_custom_call.1} parent=11 // pred_fallthru
          _
        // Predicated region
        $region45: #{tpu_custom_call.1} parent=11 // pred_check
          %p326 = pneg %p261
        $region46: #{tpu_custom_call.1} parent=11 // pred_check_branch
          %328 = sbr.rel (%p326) target = $region48
        $region47: #{tpu_custom_call.1} parent=11 // pred_region
          _
        $region48: #{tpu_custom_call.1} parent=11 // pred_fallthru
          _
      $region12: #{tpu_custom_call.1} parent=5 // pred_fallthru
        _
      %p329 = scmp.lt.s32.totalorder %s20, 2
      // Predicated region
      $region49: #{tpu_custom_call.1} parent=5 // pred_check
        %p330 = pneg %p329
      $region50: #{tpu_custom_call.1} parent=5 // pred_check_branch
        %332 = sbr.rel (%p330) target = $region52
      $region51: #{tpu_custom_call.1} parent=5 // pred_region
        // Predicated region
        $region53: #{tpu_custom_call.1} parent=51 // pred_check
          %p333 = pneg %p40
        $region54: #{tpu_custom_call.1} parent=51 // pred_check_branch
          %335 = sbr.rel (%p333) target = $region56
        $region55: #{tpu_custom_call.1} parent=51 // pred_region
          %p336 = scmp.lt.s32.totalorder %s20, 1
          %s337 = scalar_select %p336, %s20, 1
          %s338 = smul.addr %s337, 32
          %s339 = smul.addr %s338, 8
          %s340 = scalar_lea.vmem %s0, %s339
        $region56: #{tpu_custom_call.1} parent=51 // pred_fallthru
          _
        // Predicated region
        $region57: #{tpu_custom_call.1} parent=51 // pred_check
          %p341 = pneg %p66
        $region58: #{tpu_custom_call.1} parent=51 // pred_check_branch
          %343 = sbr.rel (%p341) target = $region60
        $region59: #{tpu_custom_call.1} parent=51 // pred_region
          %p344 = scmp.lt.s32.totalorder %s20, 1
          %s345 = scalar_select %p344, %s20, 1
          %s346 = smul.addr %s345, 54
          %s347 = smul.addr %s346, 8
          %s348 = scalar_lea.vmem %s1, %s347
        $region60: #{tpu_custom_call.1} parent=51 // pred_fallthru
          _
      $region52: #{tpu_custom_call.1} parent=5 // pred_fallthru
        _
      %p349 = scmp.le.s32.totalorder 1, %s20
      %p350 = scmp.lt.s32.totalorder %s20, 3
      %p351 = pnand %p349, %p350
      %p352 = pneg %p351
      // Predicated region
      $region61: #{tpu_custom_call.1} parent=5 // pred_check
        _
      $region62: #{tpu_custom_call.1} parent=5 // pred_check_branch
        %354 = sbr.rel (%p351) target = $region64
      $region63: #{tpu_custom_call.1} parent=5 // pred_region
        %s355 = ssub.s32 %s20, 1
        %p356 = scmp.lt.s32.totalorder %s25, 1
        %s357 = scalar_select %p356, %s25, 1
        %s358 = smul.addr %s357, 32
        %s359 = smul.addr %s358, 8
        %s360 = scalar_lea.vmem %s0, %s359
        %p361 = pneg %p46
        %p362 = pneg %p43
        %p363 = scmp.lt.s32.totalorder %s25, 1
        %s364 = scalar_select %p363, %s25, 1
        %s365 = smul.addr %s364, 54
        %s366 = smul.addr %s365, 8
        %s367 = scalar_lea.vmem %s1, %s366
        %p368 = pneg %p72
        %p369 = pneg %p69
        %p370 = pneg %p93
        %p371 = pneg %p90
        %p372 = pneg %p114
        %p373 = pneg %p111
        %p374 = pneg %p135
        %p375 = pneg %p132
        %p376 = pneg %p156
        %p377 = pneg %p153
        %p378 = pneg %p177
        %p379 = pneg %p174
        %p380 = pneg %p198
        %p381 = pneg %p195
        %p382 = pneg %p219
        %p383 = pneg %p216
        %p384 = pneg %p240
        %p385 = pneg %p237
        %p386 = pneg %p261
        %p387 = pneg %p258
        %p388 = pneg %p287
        %p389 = pneg %p284
        %s390 = sand.u32 %s274, 1
        %s391 = scalar_lea.sflag [#allocation3], %s390
        %s392 = sand.u32 %s274, 1
        %s393 = smul.addr %s392, 64
        %s394 = scalar_lea.vmem [#allocation2], %s393
        %p395 = scmp.lt.s32.totalorder %s25, 1
        %s396 = scalar_select %p395, %s25, 1
        %s397 = smul.addr %s396, 32
        %s398 = smul.addr %s397, 8
        %s399 = scalar_lea.vmem %s0, %s398
        %p400 = scmp.lt.s32.totalorder %s25, 1
        %s401 = scalar_select %p400, %s25, 1
        %s402 = smul.addr %s401, 54
        %s403 = smul.addr %s402, 8
        %s404 = scalar_lea.vmem %s1, %s403
        %v406 = vld [vmem:[%s404] sm:$0xff]
        %v407 = vld [vmem:[%s404 + $0x8] sm:$0xff]
        %v408 = vld [vmem:[%s404 + $0x10] sm:$0x3]
        %v409 = vld [vmem:[%s404 + $0x18] sm:$0xff]
        %v410 = vld [vmem:[%s404 + $0x20] sm:$0xff]
        %v411 = vld [vmem:[%s404 + $0x28] sm:$0x3]
        %v412 = vld [vmem:[%s404 + $0x30] sm:$0xff]
        %v413 = vld [vmem:[%s404 + $0x38] sm:$0xff]
        %v414 = vld [vmem:[%s404 + $0x40] sm:$0x3]
        %v415 = vld [vmem:[%s404 + $0x48] sm:$0xff]
        %v416 = vld [vmem:[%s404 + $0x50] sm:$0xff]
        %v417 = vld [vmem:[%s404 + $0x58] sm:$0x3]
        %v418 = vld [vmem:[%s404 + $0x60] sm:$0xff]
        %v419 = vld [vmem:[%s404 + $0x68] sm:$0xff]
        %v420 = vld [vmem:[%s404 + $0x70] sm:$0x3]
        %v421 = vld [vmem:[%s404 + $0x78] sm:$0xff]
        %v422 = vld [vmem:[%s404 + $0x80] sm:$0xff]
        %v423 = vld [vmem:[%s404 + $0x88] sm:$0x3]
        %v424 = vld [vmem:[%s404 + $0x90] sm:$0xff]
        %v425 = vld [vmem:[%s404 + $0x98] sm:$0xff]
        %v426 = vld [vmem:[%s404 + $0xa0] sm:$0x3]
        %v427 = vld [vmem:[%s404 + $0xa8] sm:$0xff]
        %v428 = vld [vmem:[%s404 + $0xb0] sm:$0xff]
        %v429 = vld [vmem:[%s404 + $0xb8] sm:$0x3]
        %v430 = vld [vmem:[%s404 + $0xc0] sm:$0xff]
        %v431 = vld [vmem:[%s404 + $0xc8] sm:$0xff]
        %v432 = vld [vmem:[%s404 + $0xd0] sm:$0x3]
        %v433 = vld [vmem:[%s404 + $0xd8] sm:$0xff]
        %v434 = vld [vmem:[%s404 + $0xe0] sm:$0xff]
        %v435 = vld [vmem:[%s404 + $0xe8] sm:$0x3]
        %v436 = vld [vmem:[%s404 + $0xf0] sm:$0xff]
        %v437 = vld [vmem:[%s404 + $0xf8] sm:$0xff]
        %v438 = vld [vmem:[%s404 + $0x100] sm:$0x3]
        %v439 = vld [vmem:[%s404 + $0x108] sm:$0xff]
        %v440 = vld [vmem:[%s404 + $0x110] sm:$0xff]
        %v441 = vld [vmem:[%s404 + $0x118] sm:$0x3]
        %v442 = vld [vmem:[%s404 + $0x120] sm:$0xff]
        %v443 = vld [vmem:[%s404 + $0x128] sm:$0xff]
        %v444 = vld [vmem:[%s404 + $0x130] sm:$0x3]
        %v445 = vld [vmem:[%s404 + $0x138] sm:$0xff]
        %v446 = vld [vmem:[%s404 + $0x140] sm:$0xff]
        %v447 = vld [vmem:[%s404 + $0x148] sm:$0x3]
        %v448 = vld [vmem:[%s404 + $0x150] sm:$0xff]
        %v449 = vld [vmem:[%s404 + $0x158] sm:$0xff]
        %v450 = vld [vmem:[%s404 + $0x160] sm:$0x3]
        %v451 = vld [vmem:[%s404 + $0x168] sm:$0xff]
        %v452 = vld [vmem:[%s404 + $0x170] sm:$0xff]
        %v453 = vld [vmem:[%s404 + $0x178] sm:$0x3]
        %v454 = vld [vmem:[%s404 + $0x180] sm:$0xff]
        %v455 = vld [vmem:[%s404 + $0x188] sm:$0xff]
        %v456 = vld [vmem:[%s404 + $0x190] sm:$0x3]
        %v457 = vld [vmem:[%s404 + $0x198] sm:$0xff]
        %v458 = vld [vmem:[%s404 + $0x1a0] sm:$0xff]
        %v459 = vld [vmem:[%s404 + $0x1a8] sm:$0x3]
        %vm508 = vcmask 1046528
        %v509 = vrot.slane %v406, 1
        %v510 = vrot.slane %v407, 1
        %v511 = vsel %vm508, %v509, %v510
        %v512 = vrot.slane %v408, 1
        %v513 = vsel %vm508, %v510, %v512
        %v514 = vrot.slane %v409, 1
        %v515 = vrot.slane %v410, 1
        %v516 = vsel %vm508, %v514, %v515
        %v517 = vrot.slane %v411, 1
        %v518 = vsel %vm508, %v515, %v517
        %v519 = vrot.slane %v412, 1
        %v520 = vrot.slane %v413, 1
        %v521 = vsel %vm508, %v519, %v520
        %v522 = vrot.slane %v414, 1
        %v523 = vsel %vm508, %v520, %v522
        %v524 = vrot.slane %v415, 1
        %v525 = vrot.slane %v416, 1
        %v526 = vsel %vm508, %v524, %v525
        %v527 = vrot.slane %v417, 1
        %v528 = vsel %vm508, %v525, %v527
        %v529 = vrot.slane %v418, 1
        %v530 = vrot.slane %v419, 1
        %v531 = vsel %vm508, %v529, %v530
        %v532 = vrot.slane %v420, 1
        %v533 = vsel %vm508, %v530, %v532
        %v534 = vrot.slane %v421, 1
        %v535 = vrot.slane %v422, 1
        %v536 = vsel %vm508, %v534, %v535
        %v537 = vrot.slane %v423, 1
        %v538 = vsel %vm508, %v535, %v537
        %v539 = vrot.slane %v424, 1
        %v540 = vrot.slane %v425, 1
        %v541 = vsel %vm508, %v539, %v540
        %v542 = vrot.slane %v426, 1
        %v543 = vsel %vm508, %v540, %v542
        %v544 = vrot.slane %v427, 1
        %v545 = vrot.slane %v428, 1
        %v546 = vsel %vm508, %v544, %v545
        %v547 = vrot.slane %v429, 1
        %v548 = vsel %vm508, %v545, %v547
        %v549 = vrot.slane %v430, 1
        %v550 = vrot.slane %v431, 1
        %v551 = vsel %vm508, %v549, %v550
        %v552 = vrot.slane %v432, 1
        %v553 = vsel %vm508, %v550, %v552
        %v554 = vrot.slane %v433, 1
        %v555 = vrot.slane %v434, 1
        %v556 = vsel %vm508, %v554, %v555
        %v557 = vrot.slane %v435, 1
        %v558 = vsel %vm508, %v555, %v557
        %v559 = vrot.slane %v436, 1
        %v560 = vrot.slane %v437, 1
        %v561 = vsel %vm508, %v559, %v560
        %v562 = vrot.slane %v438, 1
        %v563 = vsel %vm508, %v560, %v562
        %v564 = vrot.slane %v439, 1
        %v565 = vrot.slane %v440, 1
        %v566 = vsel %vm508, %v564, %v565
        %v567 = vrot.slane %v441, 1
        %v568 = vsel %vm508, %v565, %v567
        %v569 = vrot.slane %v442, 1
        %v570 = vrot.slane %v443, 1
        %v571 = vsel %vm508, %v569, %v570
        %v572 = vrot.slane %v444, 1
        %v573 = vsel %vm508, %v570, %v572
        %v574 = vrot.slane %v445, 1
        %v575 = vrot.slane %v446, 1
        %v576 = vsel %vm508, %v574, %v575
        %v577 = vrot.slane %v447, 1
        %v578 = vsel %vm508, %v575, %v577
        %v579 = vrot.slane %v448, 1
        %v580 = vrot.slane %v449, 1
        %v581 = vsel %vm508, %v579, %v580
        %v582 = vrot.slane %v450, 1
        %v583 = vsel %vm508, %v580, %v582
        %v584 = vrot.slane %v451, 1
        %v585 = vrot.slane %v452, 1
        %v586 = vsel %vm508, %v584, %v585
        %v587 = vrot.slane %v453, 1
        %v588 = vsel %vm508, %v585, %v587
        %vm589 = vcmask 1045504
        %v590 = vrot.slane %v406, 2
        %v591 = vrot.slane %v407, 2
        %v592 = vsel %vm589, %v590, %v591
        %v593 = vrot.slane %v408, 2
        %v594 = vsel %vm589, %v591, %v593
        %v595 = vrot.slane %v409, 2
        %v596 = vrot.slane %v410, 2
        %v597 = vsel %vm589, %v595, %v596
        %v598 = vrot.slane %v411, 2
        %v599 = vsel %vm589, %v596, %v598
        %v600 = vrot.slane %v412, 2
        %v601 = vrot.slane %v413, 2
        %v602 = vsel %vm589, %v600, %v601
        %v603 = vrot.slane %v414, 2
        %v604 = vsel %vm589, %v601, %v603
        %v605 = vrot.slane %v415, 2
        %v606 = vrot.slane %v416, 2
        %v607 = vsel %vm589, %v605, %v606
        %v608 = vrot.slane %v417, 2
        %v609 = vsel %vm589, %v606, %v608
        %v610 = vrot.slane %v418, 2
        %v611 = vrot.slane %v419, 2
        %v612 = vsel %vm589, %v610, %v611
        %v613 = vrot.slane %v420, 2
        %v614 = vsel %vm589, %v611, %v613
        %v615 = vrot.slane %v421, 2
        %v616 = vrot.slane %v422, 2
        %v617 = vsel %vm589, %v615, %v616
        %v618 = vrot.slane %v423, 2
        %v619 = vsel %vm589, %v616, %v618
        %v620 = vrot.slane %v424, 2
        %v621 = vrot.slane %v425, 2
        %v622 = vsel %vm589, %v620, %v621
        %v623 = vrot.slane %v426, 2
        %v624 = vsel %vm589, %v621, %v623
        %v625 = vrot.slane %v427, 2
        %v626 = vrot.slane %v428, 2
        %v627 = vsel %vm589, %v625, %v626
        %v628 = vrot.slane %v429, 2
        %v629 = vsel %vm589, %v626, %v628
        %v630 = vrot.slane %v430, 2
        %v631 = vrot.slane %v431, 2
        %v632 = vsel %vm589, %v630, %v631
        %v633 = vrot.slane %v432, 2
        %v634 = vsel %vm589, %v631, %v633
        %v635 = vrot.slane %v433, 2
        %v636 = vrot.slane %v434, 2
        %v637 = vsel %vm589, %v635, %v636
        %v638 = vrot.slane %v435, 2
        %v639 = vsel %vm589, %v636, %v638
        %v640 = vrot.slane %v436, 2
        %v641 = vrot.slane %v437, 2
        %v642 = vsel %vm589, %v640, %v641
        %v643 = vrot.slane %v438, 2
        %v644 = vsel %vm589, %v641, %v643
        %v645 = vrot.slane %v439, 2
        %v646 = vrot.slane %v440, 2
        %v647 = vsel %vm589, %v645, %v646
        %v648 = vrot.slane %v441, 2
        %v649 = vsel %vm589, %v646, %v648
        %v650 = vrot.slane %v442, 2
        %v651 = vrot.slane %v443, 2
        %v652 = vsel %vm589, %v650, %v651
        %v653 = vrot.slane %v444, 2
        %v654 = vsel %vm589, %v651, %v653
        %v655 = vrot.slane %v445, 2
        %v656 = vrot.slane %v446, 2
        %v657 = vsel %vm589, %v655, %v656
        %v658 = vrot.slane %v447, 2
        %v659 = vsel %vm589, %v656, %v658
        %v660 = vrot.slane %v448, 2
        %v661 = vrot.slane %v449, 2
        %v662 = vsel %vm589, %v660, %v661
        %v663 = vrot.slane %v450, 2
        %v664 = vsel %vm589, %v661, %v663
        %v665 = vrot.slane %v451, 2
        %v666 = vrot.slane %v452, 2
        %v667 = vsel %vm589, %v665, %v666
        %v668 = vrot.slane %v453, 2
        %v669 = vsel %vm589, %v666, %v668
        %v673 = vrot.slane %v454, 1
        %v674 = vrot.slane %v455, 1
        %v675 = vsel %vm508, %v673, %v674
        %v676 = vrot.slane %v456, 1
        %v677 = vsel %vm508, %v674, %v676
        %v678 = vrot.slane %v454, 2
        %v679 = vrot.slane %v455, 2
        %v680 = vsel %vm589, %v678, %v679
        %v681 = vrot.slane %v456, 2
        %v682 = vsel %vm589, %v679, %v681
        %v686 = vrot.slane %v457, 1
        %v687 = vrot.slane %v458, 1
        %v688 = vsel %vm508, %v686, %v687
        %v689 = vrot.slane %v459, 1
        %v690 = vsel %vm508, %v687, %v689
        %v691 = vrot.slane %v457, 2
        %v692 = vrot.slane %v458, 2
        %v693 = vsel %vm589, %v691, %v692
        %v694 = vrot.slane %v459, 2
        %v695 = vsel %vm589, %v692, %v694
        %728 = vrot.lane.b32.xlu0 %v511, 16
        %v729 = vpop.permute.xlu0 %728
        %730 = vrot.lane.b32.xlu0 %v513, 16
        %v731 = vpop.permute.xlu0 %730
        %732 = vrot.lane.b32.xlu0 %v516, 16
        %v733 = vpop.permute.xlu0 %732
        %734 = vrot.lane.b32.xlu0 %v518, 16
        %v735 = vpop.permute.xlu0 %734
        %736 = vrot.lane.b32.xlu0 %v521, 16
        %v737 = vpop.permute.xlu0 %736
        %738 = vrot.lane.b32.xlu0 %v523, 16
        %v739 = vpop.permute.xlu0 %738
        %740 = vrot.lane.b32.xlu0 %v526, 16
        %v741 = vpop.permute.xlu0 %740
        %742 = vrot.lane.b32.xlu0 %v528, 16
        %v743 = vpop.permute.xlu0 %742
        %744 = vrot.lane.b32.xlu0 %v531, 16
        %v745 = vpop.permute.xlu0 %744
        %746 = vrot.lane.b32.xlu0 %v533, 16
        %v747 = vpop.permute.xlu0 %746
        %748 = vrot.lane.b32.xlu0 %v536, 16
        %v749 = vpop.permute.xlu0 %748
        %750 = vrot.lane.b32.xlu0 %v538, 16
        %v751 = vpop.permute.xlu0 %750
        %752 = vrot.lane.b32.xlu0 %v541, 16
        %v753 = vpop.permute.xlu0 %752
        %754 = vrot.lane.b32.xlu0 %v543, 16
        %v755 = vpop.permute.xlu0 %754
        %756 = vrot.lane.b32.xlu0 %v546, 16
        %v757 = vpop.permute.xlu0 %756
        %758 = vrot.lane.b32.xlu0 %v548, 16
        %v759 = vpop.permute.xlu0 %758
        %760 = vrot.lane.b32.xlu0 %v551, 16
        %v761 = vpop.permute.xlu0 %760
        %762 = vrot.lane.b32.xlu0 %v553, 16
        %v763 = vpop.permute.xlu0 %762
        %764 = vrot.lane.b32.xlu0 %v556, 16
        %v765 = vpop.permute.xlu0 %764
        %766 = vrot.lane.b32.xlu0 %v558, 16
        %v767 = vpop.permute.xlu0 %766
        %768 = vrot.lane.b32.xlu0 %v561, 16
        %v769 = vpop.permute.xlu0 %768
        %770 = vrot.lane.b32.xlu0 %v563, 16
        %v771 = vpop.permute.xlu0 %770
        %772 = vrot.lane.b32.xlu0 %v566, 16
        %v773 = vpop.permute.xlu0 %772
        %774 = vrot.lane.b32.xlu0 %v568, 16
        %v775 = vpop.permute.xlu0 %774
        %776 = vrot.lane.b32.xlu0 %v571, 16
        %v777 = vpop.permute.xlu0 %776
        %778 = vrot.lane.b32.xlu0 %v573, 16
        %v779 = vpop.permute.xlu0 %778
        %780 = vrot.lane.b32.xlu0 %v576, 16
        %v781 = vpop.permute.xlu0 %780
        %782 = vrot.lane.b32.xlu0 %v578, 16
        %v783 = vpop.permute.xlu0 %782
        %784 = vrot.lane.b32.xlu0 %v581, 16
        %v785 = vpop.permute.xlu0 %784
        %786 = vrot.lane.b32.xlu0 %v583, 16
        %v787 = vpop.permute.xlu0 %786
        %788 = vrot.lane.b32.xlu0 %v586, 16
        %v789 = vpop.permute.xlu0 %788
        %790 = vrot.lane.b32.xlu0 %v588, 16
        %v791 = vpop.permute.xlu0 %790
        %824 = vrot.lane.b32.xlu0 %v592, 32
        %v825 = vpop.permute.xlu0 %824
        %826 = vrot.lane.b32.xlu0 %v594, 32
        %v827 = vpop.permute.xlu0 %826
        %828 = vrot.lane.b32.xlu0 %v597, 32
        %v829 = vpop.permute.xlu0 %828
        %830 = vrot.lane.b32.xlu0 %v599, 32
        %v831 = vpop.permute.xlu0 %830
        %832 = vrot.lane.b32.xlu0 %v602, 32
        %v833 = vpop.permute.xlu0 %832
        %834 = vrot.lane.b32.xlu0 %v604, 32
        %v835 = vpop.permute.xlu0 %834
        %836 = vrot.lane.b32.xlu0 %v607, 32
        %v837 = vpop.permute.xlu0 %836
        %838 = vrot.lane.b32.xlu0 %v609, 32
        %v839 = vpop.permute.xlu0 %838
        %840 = vrot.lane.b32.xlu0 %v612, 32
        %v841 = vpop.permute.xlu0 %840
        %842 = vrot.lane.b32.xlu0 %v614, 32
        %v843 = vpop.permute.xlu0 %842
        %844 = vrot.lane.b32.xlu0 %v617, 32
        %v845 = vpop.permute.xlu0 %844
        %846 = vrot.lane.b32.xlu0 %v619, 32
        %v847 = vpop.permute.xlu0 %846
        %848 = vrot.lane.b32.xlu0 %v622, 32
        %v849 = vpop.permute.xlu0 %848
        %850 = vrot.lane.b32.xlu0 %v624, 32
        %v851 = vpop.permute.xlu0 %850
        %852 = vrot.lane.b32.xlu0 %v627, 32
        %v853 = vpop.permute.xlu0 %852
        %854 = vrot.lane.b32.xlu0 %v629, 32
        %v855 = vpop.permute.xlu0 %854
        %856 = vrot.lane.b32.xlu0 %v632, 32
        %v857 = vpop.permute.xlu0 %856
        %858 = vrot.lane.b32.xlu0 %v634, 32
        %v859 = vpop.permute.xlu0 %858
        %860 = vrot.lane.b32.xlu0 %v637, 32
        %v861 = vpop.permute.xlu0 %860
        %862 = vrot.lane.b32.xlu0 %v639, 32
        %v863 = vpop.permute.xlu0 %862
        %864 = vrot.lane.b32.xlu0 %v642, 32
        %v865 = vpop.permute.xlu0 %864
        %866 = vrot.lane.b32.xlu0 %v644, 32
        %v867 = vpop.permute.xlu0 %866
        %868 = vrot.lane.b32.xlu0 %v647, 32
        %v869 = vpop.permute.xlu0 %868
        %870 = vrot.lane.b32.xlu0 %v649, 32
        %v871 = vpop.permute.xlu0 %870
        %872 = vrot.lane.b32.xlu0 %v652, 32
        %v873 = vpop.permute.xlu0 %872
        %874 = vrot.lane.b32.xlu0 %v654, 32
        %v875 = vpop.permute.xlu0 %874
        %876 = vrot.lane.b32.xlu0 %v657, 32
        %v877 = vpop.permute.xlu0 %876
        %878 = vrot.lane.b32.xlu0 %v659, 32
        %v879 = vpop.permute.xlu0 %878
        %880 = vrot.lane.b32.xlu0 %v662, 32
        %v881 = vpop.permute.xlu0 %880
        %882 = vrot.lane.b32.xlu0 %v664, 32
        %v883 = vpop.permute.xlu0 %882
        %884 = vrot.lane.b32.xlu0 %v667, 32
        %v885 = vpop.permute.xlu0 %884
        %886 = vrot.lane.b32.xlu0 %v669, 32
        %v887 = vpop.permute.xlu0 %886
        %920 = vrot.lane.b32.xlu0 %v409, 48
        %v921 = vpop.permute.xlu0 %920
        %922 = vrot.lane.b32.xlu0 %v410, 48
        %v923 = vpop.permute.xlu0 %922
        %924 = vrot.lane.b32.xlu0 %v412, 48
        %v925 = vpop.permute.xlu0 %924
        %926 = vrot.lane.b32.xlu0 %v413, 48
        %v927 = vpop.permute.xlu0 %926
        %928 = vrot.lane.b32.xlu0 %v415, 48
        %v929 = vpop.permute.xlu0 %928
        %930 = vrot.lane.b32.xlu0 %v416, 48
        %v931 = vpop.permute.xlu0 %930
        %932 = vrot.lane.b32.xlu0 %v418, 48
        %v933 = vpop.permute.xlu0 %932
        %934 = vrot.lane.b32.xlu0 %v419, 48
        %v935 = vpop.permute.xlu0 %934
        %936 = vrot.lane.b32.xlu0 %v421, 48
        %v937 = vpop.permute.xlu0 %936
        %938 = vrot.lane.b32.xlu0 %v422, 48
        %v939 = vpop.permute.xlu0 %938
        %940 = vrot.lane.b32.xlu0 %v424, 48
        %v941 = vpop.permute.xlu0 %940
        %942 = vrot.lane.b32.xlu0 %v425, 48
        %v943 = vpop.permute.xlu0 %942
        %944 = vrot.lane.b32.xlu0 %v427, 48
        %v945 = vpop.permute.xlu0 %944
        %946 = vrot.lane.b32.xlu0 %v428, 48
        %v947 = vpop.permute.xlu0 %946
        %948 = vrot.lane.b32.xlu0 %v430, 48
        %v949 = vpop.permute.xlu0 %948
        %950 = vrot.lane.b32.xlu0 %v431, 48
        %v951 = vpop.permute.xlu0 %950
        %952 = vrot.lane.b32.xlu0 %v433, 48
        %v953 = vpop.permute.xlu0 %952
        %954 = vrot.lane.b32.xlu0 %v434, 48
        %v955 = vpop.permute.xlu0 %954
        %956 = vrot.lane.b32.xlu0 %v436, 48
        %v957 = vpop.permute.xlu0 %956
        %958 = vrot.lane.b32.xlu0 %v437, 48
        %v959 = vpop.permute.xlu0 %958
        %960 = vrot.lane.b32.xlu0 %v439, 48
        %v961 = vpop.permute.xlu0 %960
        %962 = vrot.lane.b32.xlu0 %v440, 48
        %v963 = vpop.permute.xlu0 %962
        %964 = vrot.lane.b32.xlu0 %v442, 48
        %v965 = vpop.permute.xlu0 %964
        %966 = vrot.lane.b32.xlu0 %v443, 48
        %v967 = vpop.permute.xlu0 %966
        %968 = vrot.lane.b32.xlu0 %v445, 48
        %v969 = vpop.permute.xlu0 %968
        %970 = vrot.lane.b32.xlu0 %v446, 48
        %v971 = vpop.permute.xlu0 %970
        %972 = vrot.lane.b32.xlu0 %v448, 48
        %v973 = vpop.permute.xlu0 %972
        %974 = vrot.lane.b32.xlu0 %v449, 48
        %v975 = vpop.permute.xlu0 %974
        %976 = vrot.lane.b32.xlu0 %v451, 48
        %v977 = vpop.permute.xlu0 %976
        %978 = vrot.lane.b32.xlu0 %v452, 48
        %v979 = vpop.permute.xlu0 %978
        %980 = vrot.lane.b32.xlu0 %v454, 48
        %v981 = vpop.permute.xlu0 %980
        %982 = vrot.lane.b32.xlu0 %v455, 48
        %v983 = vpop.permute.xlu0 %982
        %1016 = vrot.lane.b32.xlu0 %v516, 64
        %v1017 = vpop.permute.xlu0 %1016
        %1018 = vrot.lane.b32.xlu0 %v518, 64
        %v1019 = vpop.permute.xlu0 %1018
        %1020 = vrot.lane.b32.xlu0 %v521, 64
        %v1021 = vpop.permute.xlu0 %1020
        %1022 = vrot.lane.b32.xlu0 %v523, 64
        %v1023 = vpop.permute.xlu0 %1022
        %1024 = vrot.lane.b32.xlu0 %v526, 64
        %v1025 = vpop.permute.xlu0 %1024
        %1026 = vrot.lane.b32.xlu0 %v528, 64
        %v1027 = vpop.permute.xlu0 %1026
        %1028 = vrot.lane.b32.xlu0 %v531, 64
        %v1029 = vpop.permute.xlu0 %1028
        %1030 = vrot.lane.b32.xlu0 %v533, 64
        %v1031 = vpop.permute.xlu0 %1030
        %1032 = vrot.lane.b32.xlu0 %v536, 64
        %v1033 = vpop.permute.xlu0 %1032
        %1034 = vrot.lane.b32.xlu0 %v538, 64
        %v1035 = vpop.permute.xlu0 %1034
        %1036 = vrot.lane.b32.xlu0 %v541, 64
        %v1037 = vpop.permute.xlu0 %1036
        %1038 = vrot.lane.b32.xlu0 %v543, 64
        %v1039 = vpop.permute.xlu0 %1038
        %1040 = vrot.lane.b32.xlu0 %v546, 64
        %v1041 = vpop.permute.xlu0 %1040
        %1042 = vrot.lane.b32.xlu0 %v548, 64
        %v1043 = vpop.permute.xlu0 %1042
        %1044 = vrot.lane.b32.xlu0 %v551, 64
        %v1045 = vpop.permute.xlu0 %1044
        %1046 = vrot.lane.b32.xlu0 %v553, 64
        %v1047 = vpop.permute.xlu0 %1046
        %1048 = vrot.lane.b32.xlu0 %v556, 64
        %v1049 = vpop.permute.xlu0 %1048
        %1050 = vrot.lane.b32.xlu0 %v558, 64
        %v1051 = vpop.permute.xlu0 %1050
        %1052 = vrot.lane.b32.xlu0 %v561, 64
        %v1053 = vpop.permute.xlu0 %1052
        %1054 = vrot.lane.b32.xlu0 %v563, 64
        %v1055 = vpop.permute.xlu0 %1054
        %1056 = vrot.lane.b32.xlu0 %v566, 64
        %v1057 = vpop.permute.xlu0 %1056
        %1058 = vrot.lane.b32.xlu0 %v568, 64
        %v1059 = vpop.permute.xlu0 %1058
        %1060 = vrot.lane.b32.xlu0 %v571, 64
        %v1061 = vpop.permute.xlu0 %1060
        %1062 = vrot.lane.b32.xlu0 %v573, 64
        %v1063 = vpop.permute.xlu0 %1062
        %1064 = vrot.lane.b32.xlu0 %v576, 64
        %v1065 = vpop.permute.xlu0 %1064
        %1066 = vrot.lane.b32.xlu0 %v578, 64
        %v1067 = vpop.permute.xlu0 %1066
        %1068 = vrot.lane.b32.xlu0 %v581, 64
        %v1069 = vpop.permute.xlu0 %1068
        %1070 = vrot.lane.b32.xlu0 %v583, 64
        %v1071 = vpop.permute.xlu0 %1070
        %1072 = vrot.lane.b32.xlu0 %v586, 64
        %v1073 = vpop.permute.xlu0 %1072
        %1074 = vrot.lane.b32.xlu0 %v588, 64
        %v1075 = vpop.permute.xlu0 %1074
        %1076 = vrot.lane.b32.xlu0 %v675, 64
        %v1077 = vpop.permute.xlu0 %1076
        %1078 = vrot.lane.b32.xlu0 %v677, 64
        %v1079 = vpop.permute.xlu0 %1078
        %1112 = vrot.lane.b32.xlu0 %v597, 80
        %v1113 = vpop.permute.xlu0 %1112
        %1114 = vrot.lane.b32.xlu0 %v599, 80
        %v1115 = vpop.permute.xlu0 %1114
        %1116 = vrot.lane.b32.xlu0 %v602, 80
        %v1117 = vpop.permute.xlu0 %1116
        %1118 = vrot.lane.b32.xlu0 %v604, 80
        %v1119 = vpop.permute.xlu0 %1118
        %1120 = vrot.lane.b32.xlu0 %v607, 80
        %v1121 = vpop.permute.xlu0 %1120
        %1122 = vrot.lane.b32.xlu0 %v609, 80
        %v1123 = vpop.permute.xlu0 %1122
        %1124 = vrot.lane.b32.xlu0 %v612, 80
        %v1125 = vpop.permute.xlu0 %1124
        %1126 = vrot.lane.b32.xlu0 %v614, 80
        %v1127 = vpop.permute.xlu0 %1126
        %1128 = vrot.lane.b32.xlu0 %v617, 80
        %v1129 = vpop.permute.xlu0 %1128
        %1130 = vrot.lane.b32.xlu0 %v619, 80
        %v1131 = vpop.permute.xlu0 %1130
        %1132 = vrot.lane.b32.xlu0 %v622, 80
        %v1133 = vpop.permute.xlu0 %1132
        %1134 = vrot.lane.b32.xlu0 %v624, 80
        %v1135 = vpop.permute.xlu0 %1134
        %1136 = vrot.lane.b32.xlu0 %v627, 80
        %v1137 = vpop.permute.xlu0 %1136
        %1138 = vrot.lane.b32.xlu0 %v629, 80
        %v1139 = vpop.permute.xlu0 %1138
        %1140 = vrot.lane.b32.xlu0 %v632, 80
        %v1141 = vpop.permute.xlu0 %1140
        %1142 = vrot.lane.b32.xlu0 %v634, 80
        %v1143 = vpop.permute.xlu0 %1142
        %1144 = vrot.lane.b32.xlu0 %v637, 80
        %v1145 = vpop.permute.xlu0 %1144
        %1146 = vrot.lane.b32.xlu0 %v639, 80
        %v1147 = vpop.permute.xlu0 %1146
        %1148 = vrot.lane.b32.xlu0 %v642, 80
        %v1149 = vpop.permute.xlu0 %1148
        %1150 = vrot.lane.b32.xlu0 %v644, 80
        %v1151 = vpop.permute.xlu0 %1150
        %1152 = vrot.lane.b32.xlu0 %v647, 80
        %v1153 = vpop.permute.xlu0 %1152
        %1154 = vrot.lane.b32.xlu0 %v649, 80
        %v1155 = vpop.permute.xlu0 %1154
        %1156 = vrot.lane.b32.xlu0 %v652, 80
        %v1157 = vpop.permute.xlu0 %1156
        %1158 = vrot.lane.b32.xlu0 %v654, 80
        %v1159 = vpop.permute.xlu0 %1158
        %1160 = vrot.lane.b32.xlu0 %v657, 80
        %v1161 = vpop.permute.xlu0 %1160
        %1162 = vrot.lane.b32.xlu0 %v659, 80
        %v1163 = vpop.permute.xlu0 %1162
        %1164 = vrot.lane.b32.xlu0 %v662, 80
        %v1165 = vpop.permute.xlu0 %1164
        %1166 = vrot.lane.b32.xlu0 %v664, 80
        %v1167 = vpop.permute.xlu0 %1166
        %1168 = vrot.lane.b32.xlu0 %v667, 80
        %v1169 = vpop.permute.xlu0 %1168
        %1170 = vrot.lane.b32.xlu0 %v669, 80
        %v1171 = vpop.permute.xlu0 %1170
        %1172 = vrot.lane.b32.xlu0 %v680, 80
        %v1173 = vpop.permute.xlu0 %1172
        %1174 = vrot.lane.b32.xlu0 %v682, 80
        %v1175 = vpop.permute.xlu0 %1174
        %1208 = vrot.lane.b32.xlu0 %v412, 96
        %v1209 = vpop.permute.xlu0 %1208
        %1210 = vrot.lane.b32.xlu0 %v413, 96
        %v1211 = vpop.permute.xlu0 %1210
        %1212 = vrot.lane.b32.xlu0 %v415, 96
        %v1213 = vpop.permute.xlu0 %1212
        %1214 = vrot.lane.b32.xlu0 %v416, 96
        %v1215 = vpop.permute.xlu0 %1214
        %1216 = vrot.lane.b32.xlu0 %v418, 96
        %v1217 = vpop.permute.xlu0 %1216
        %1218 = vrot.lane.b32.xlu0 %v419, 96
        %v1219 = vpop.permute.xlu0 %1218
        %1220 = vrot.lane.b32.xlu0 %v421, 96
        %v1221 = vpop.permute.xlu0 %1220
        %1222 = vrot.lane.b32.xlu0 %v422, 96
        %v1223 = vpop.permute.xlu0 %1222
        %1224 = vrot.lane.b32.xlu0 %v424, 96
        %v1225 = vpop.permute.xlu0 %1224
        %1226 = vrot.lane.b32.xlu0 %v425, 96
        %v1227 = vpop.permute.xlu0 %1226
        %1228 = vrot.lane.b32.xlu0 %v427, 96
        %v1229 = vpop.permute.xlu0 %1228
        %1230 = vrot.lane.b32.xlu0 %v428, 96
        %v1231 = vpop.permute.xlu0 %1230
        %1232 = vrot.lane.b32.xlu0 %v430, 96
        %v1233 = vpop.permute.xlu0 %1232
        %1234 = vrot.lane.b32.xlu0 %v431, 96
        %v1235 = vpop.permute.xlu0 %1234
        %1236 = vrot.lane.b32.xlu0 %v433, 96
        %v1237 = vpop.permute.xlu0 %1236
        %1238 = vrot.lane.b32.xlu0 %v434, 96
        %v1239 = vpop.permute.xlu0 %1238
        %1240 = vrot.lane.b32.xlu0 %v436, 96
        %v1241 = vpop.permute.xlu0 %1240
        %1242 = vrot.lane.b32.xlu0 %v437, 96
        %v1243 = vpop.permute.xlu0 %1242
        %1244 = vrot.lane.b32.xlu0 %v439, 96
        %v1245 = vpop.permute.xlu0 %1244
        %1246 = vrot.lane.b32.xlu0 %v440, 96
        %v1247 = vpop.permute.xlu0 %1246
        %1248 = vrot.lane.b32.xlu0 %v442, 96
        %v1249 = vpop.permute.xlu0 %1248
        %1250 = vrot.lane.b32.xlu0 %v443, 96
        %v1251 = vpop.permute.xlu0 %1250
        %1252 = vrot.lane.b32.xlu0 %v445, 96
        %v1253 = vpop.permute.xlu0 %1252
        %1254 = vrot.lane.b32.xlu0 %v446, 96
        %v1255 = vpop.permute.xlu0 %1254
        %1256 = vrot.lane.b32.xlu0 %v448, 96
        %v1257 = vpop.permute.xlu0 %1256
        %1258 = vrot.lane.b32.xlu0 %v449, 96
        %v1259 = vpop.permute.xlu0 %1258
        %1260 = vrot.lane.b32.xlu0 %v451, 96
        %v1261 = vpop.permute.xlu0 %1260
        %1262 = vrot.lane.b32.xlu0 %v452, 96
        %v1263 = vpop.permute.xlu0 %1262
        %1264 = vrot.lane.b32.xlu0 %v454, 96
        %v1265 = vpop.permute.xlu0 %1264
        %1266 = vrot.lane.b32.xlu0 %v455, 96
        %v1267 = vpop.permute.xlu0 %1266
        %1268 = vrot.lane.b32.xlu0 %v457, 96
        %v1269 = vpop.permute.xlu0 %1268
        %1270 = vrot.lane.b32.xlu0 %v458, 96
        %v1271 = vpop.permute.xlu0 %1270
        %1304 = vrot.lane.b32.xlu0 %v521, 112
        %v1305 = vpop.permute.xlu0 %1304
        %1306 = vrot.lane.b32.xlu0 %v523, 112
        %v1307 = vpop.permute.xlu0 %1306
        %1308 = vrot.lane.b32.xlu0 %v526, 112
        %v1309 = vpop.permute.xlu0 %1308
        %1310 = vrot.lane.b32.xlu0 %v528, 112
        %v1311 = vpop.permute.xlu0 %1310
        %1312 = vrot.lane.b32.xlu0 %v531, 112
        %v1313 = vpop.permute.xlu0 %1312
        %1314 = vrot.lane.b32.xlu0 %v533, 112
        %v1315 = vpop.permute.xlu0 %1314
        %1316 = vrot.lane.b32.xlu0 %v536, 112
        %v1317 = vpop.permute.xlu0 %1316
        %1318 = vrot.lane.b32.xlu0 %v538, 112
        %v1319 = vpop.permute.xlu0 %1318
        %1320 = vrot.lane.b32.xlu0 %v541, 112
        %v1321 = vpop.permute.xlu0 %1320
        %1322 = vrot.lane.b32.xlu0 %v543, 112
        %v1323 = vpop.permute.xlu0 %1322
        %1324 = vrot.lane.b32.xlu0 %v546, 112
        %v1325 = vpop.permute.xlu0 %1324
        %1326 = vrot.lane.b32.xlu0 %v548, 112
        %v1327 = vpop.permute.xlu0 %1326
        %1328 = vrot.lane.b32.xlu0 %v551, 112
        %v1329 = vpop.permute.xlu0 %1328
        %1330 = vrot.lane.b32.xlu0 %v553, 112
        %v1331 = vpop.permute.xlu0 %1330
        %1332 = vrot.lane.b32.xlu0 %v556, 112
        %v1333 = vpop.permute.xlu0 %1332
        %1334 = vrot.lane.b32.xlu0 %v558, 112
        %v1335 = vpop.permute.xlu0 %1334
        %1336 = vrot.lane.b32.xlu0 %v561, 112
        %v1337 = vpop.permute.xlu0 %1336
        %1338 = vrot.lane.b32.xlu0 %v563, 112
        %v1339 = vpop.permute.xlu0 %1338
        %1340 = vrot.lane.b32.xlu0 %v566, 112
        %v1341 = vpop.permute.xlu0 %1340
        %1342 = vrot.lane.b32.xlu0 %v568, 112
        %v1343 = vpop.permute.xlu0 %1342
        %1344 = vrot.lane.b32.xlu0 %v571, 112
        %v1345 = vpop.permute.xlu0 %1344
        %1346 = vrot.lane.b32.xlu0 %v573, 112
        %v1347 = vpop.permute.xlu0 %1346
        %1348 = vrot.lane.b32.xlu0 %v576, 112
        %v1349 = vpop.permute.xlu0 %1348
        %1350 = vrot.lane.b32.xlu0 %v578, 112
        %v1351 = vpop.permute.xlu0 %1350
        %1352 = vrot.lane.b32.xlu0 %v581, 112
        %v1353 = vpop.permute.xlu0 %1352
        %1354 = vrot.lane.b32.xlu0 %v583, 112
        %v1355 = vpop.permute.xlu0 %1354
        %1356 = vrot.lane.b32.xlu0 %v586, 112
        %v1357 = vpop.permute.xlu0 %1356
        %1358 = vrot.lane.b32.xlu0 %v588, 112
        %v1359 = vpop.permute.xlu0 %1358
        %1360 = vrot.lane.b32.xlu0 %v675, 112
        %v1361 = vpop.permute.xlu0 %1360
        %1362 = vrot.lane.b32.xlu0 %v677, 112
        %v1363 = vpop.permute.xlu0 %1362
        %1364 = vrot.lane.b32.xlu0 %v688, 112
        %v1365 = vpop.permute.xlu0 %1364
        %1366 = vrot.lane.b32.xlu0 %v690, 112
        %v1367 = vpop.permute.xlu0 %1366
        %vm1400 = vcmask 130048
        %v1401 = vsel %vm1400, %v406, %v729
        %v1402 = vsel %vm1400, %v407, %v731
        %v1403 = vsel %vm1400, %v409, %v733
        %v1404 = vsel %vm1400, %v410, %v735
        %v1405 = vsel %vm1400, %v412, %v737
        %v1406 = vsel %vm1400, %v413, %v739
        %v1407 = vsel %vm1400, %v415, %v741
        %v1408 = vsel %vm1400, %v416, %v743
        %v1409 = vsel %vm1400, %v418, %v745
        %v1410 = vsel %vm1400, %v419, %v747
        %v1411 = vsel %vm1400, %v421, %v749
        %v1412 = vsel %vm1400, %v422, %v751
        %v1413 = vsel %vm1400, %v424, %v753
        %v1414 = vsel %vm1400, %v425, %v755
        %v1415 = vsel %vm1400, %v427, %v757
        %v1416 = vsel %vm1400, %v428, %v759
        %v1417 = vsel %vm1400, %v430, %v761
        %v1418 = vsel %vm1400, %v431, %v763
        %v1419 = vsel %vm1400, %v433, %v765
        %v1420 = vsel %vm1400, %v434, %v767
        %v1421 = vsel %vm1400, %v436, %v769
        %v1422 = vsel %vm1400, %v437, %v771
        %v1423 = vsel %vm1400, %v439, %v773
        %v1424 = vsel %vm1400, %v440, %v775
        %v1425 = vsel %vm1400, %v442, %v777
        %v1426 = vsel %vm1400, %v443, %v779
        %v1427 = vsel %vm1400, %v445, %v781
        %v1428 = vsel %vm1400, %v446, %v783
        %v1429 = vsel %vm1400, %v448, %v785
        %v1430 = vsel %vm1400, %v449, %v787
        %v1431 = vsel %vm1400, %v451, %v789
        %v1432 = vsel %vm1400, %v452, %v791
        %vm1433 = vcmask 261120
        %v1434 = vsel %vm1433, %v1401, %v825
        %v1435 = vsel %vm1433, %v1402, %v827
        %v1436 = vsel %vm1433, %v1403, %v829
        %v1437 = vsel %vm1433, %v1404, %v831
        %v1438 = vsel %vm1433, %v1405, %v833
        %v1439 = vsel %vm1433, %v1406, %v835
        %v1440 = vsel %vm1433, %v1407, %v837
        %v1441 = vsel %vm1433, %v1408, %v839
        %v1442 = vsel %vm1433, %v1409, %v841
        %v1443 = vsel %vm1433, %v1410, %v843
        %v1444 = vsel %vm1433, %v1411, %v845
        %v1445 = vsel %vm1433, %v1412, %v847
        %v1446 = vsel %vm1433, %v1413, %v849
        %v1447 = vsel %vm1433, %v1414, %v851
        %v1448 = vsel %vm1433, %v1415, %v853
        %v1449 = vsel %vm1433, %v1416, %v855
        %v1450 = vsel %vm1433, %v1417, %v857
        %v1451 = vsel %vm1433, %v1418, %v859
        %v1452 = vsel %vm1433, %v1419, %v861
        %v1453 = vsel %vm1433, %v1420, %v863
        %v1454 = vsel %vm1433, %v1421, %v865
        %v1455 = vsel %vm1433, %v1422, %v867
        %v1456 = vsel %vm1433, %v1423, %v869
        %v1457 = vsel %vm1433, %v1424, %v871
        %v1458 = vsel %vm1433, %v1425, %v873
        %v1459 = vsel %vm1433, %v1426, %v875
        %v1460 = vsel %vm1433, %v1427, %v877
        %v1461 = vsel %vm1433, %v1428, %v879
        %v1462 = vsel %vm1433, %v1429, %v881
        %v1463 = vsel %vm1433, %v1430, %v883
        %v1464 = vsel %vm1433, %v1431, %v885
        %v1465 = vsel %vm1433, %v1432, %v887
        %vm1466 = vcmask 392192
        %v1467 = vsel %vm1466, %v1434, %v921
        %v1468 = vsel %vm1466, %v1435, %v923
        %v1469 = vsel %vm1466, %v1436, %v925
        %v1470 = vsel %vm1466, %v1437, %v927
        %v1471 = vsel %vm1466, %v1438, %v929
        %v1472 = vsel %vm1466, %v1439, %v931
        %v1473 = vsel %vm1466, %v1440, %v933
        %v1474 = vsel %vm1466, %v1441, %v935
        %v1475 = vsel %vm1466, %v1442, %v937
        %v1476 = vsel %vm1466, %v1443, %v939
        %v1477 = vsel %vm1466, %v1444, %v941
        %v1478 = vsel %vm1466, %v1445, %v943
        %v1479 = vsel %vm1466, %v1446, %v945
        %v1480 = vsel %vm1466, %v1447, %v947
        %v1481 = vsel %vm1466, %v1448, %v949
        %v1482 = vsel %vm1466, %v1449, %v951
        %v1483 = vsel %vm1466, %v1450, %v953
        %v1484 = vsel %vm1466, %v1451, %v955
        %v1485 = vsel %vm1466, %v1452, %v957
        %v1486 = vsel %vm1466, %v1453, %v959
        %v1487 = vsel %vm1466, %v1454, %v961
        %v1488 = vsel %vm1466, %v1455, %v963
        %v1489 = vsel %vm1466, %v1456, %v965
        %v1490 = vsel %vm1466, %v1457, %v967
        %v1491 = vsel %vm1466, %v1458, %v969
        %v1492 = vsel %vm1466, %v1459, %v971
        %v1493 = vsel %vm1466, %v1460, %v973
        %v1494 = vsel %vm1466, %v1461, %v975
        %v1495 = vsel %vm1466, %v1462, %v977
        %v1496 = vsel %vm1466, %v1463, %v979
        %v1497 = vsel %vm1466, %v1464, %v981
        %v1498 = vsel %vm1466, %v1465, %v983
        %vm1499 = vcmask 523264
        %v1500 = vsel %vm1499, %v1467, %v1017
        %v1501 = vsel %vm1499, %v1468, %v1019
        %v1502 = vsel %vm1499, %v1469, %v1021
        %v1503 = vsel %vm1499, %v1470, %v1023
        %v1504 = vsel %vm1499, %v1471, %v1025
        %v1505 = vsel %vm1499, %v1472, %v1027
        %v1506 = vsel %vm1499, %v1473, %v1029
        %v1507 = vsel %vm1499, %v1474, %v1031
        %v1508 = vsel %vm1499, %v1475, %v1033
        %v1509 = vsel %vm1499, %v1476, %v1035
        %v1510 = vsel %vm1499, %v1477, %v1037
        %v1511 = vsel %vm1499, %v1478, %v1039
        %v1512 = vsel %vm1499, %v1479, %v1041
        %v1513 = vsel %vm1499, %v1480, %v1043
        %v1514 = vsel %vm1499, %v1481, %v1045
        %v1515 = vsel %vm1499, %v1482, %v1047
        %v1516 = vsel %vm1499, %v1483, %v1049
        %v1517 = vsel %vm1499, %v1484, %v1051
        %v1518 = vsel %vm1499, %v1485, %v1053
        %v1519 = vsel %vm1499, %v1486, %v1055
        %v1520 = vsel %vm1499, %v1487, %v1057
        %v1521 = vsel %vm1499, %v1488, %v1059
        %v1522 = vsel %vm1499, %v1489, %v1061
        %v1523 = vsel %vm1499, %v1490, %v1063
        %v1524 = vsel %vm1499, %v1491, %v1065
        %v1525 = vsel %vm1499, %v1492, %v1067
        %v1526 = vsel %vm1499, %v1493, %v1069
        %v1527 = vsel %vm1499, %v1494, %v1071
        %v1528 = vsel %vm1499, %v1495, %v1073
        %v1529 = vsel %vm1499, %v1496, %v1075
        %v1530 = vsel %vm1499, %v1497, %v1077
        %v1531 = vsel %vm1499, %v1498, %v1079
        %vm1532 = vcmask 654336
        %v1533 = vsel %vm1532, %v1500, %v1113
        %v1534 = vsel %vm1532, %v1501, %v1115
        %v1535 = vsel %vm1532, %v1502, %v1117
        %v1536 = vsel %vm1532, %v1503, %v1119
        %v1537 = vsel %vm1532, %v1504, %v1121
        %v1538 = vsel %vm1532, %v1505, %v1123
        %v1539 = vsel %vm1532, %v1506, %v1125
        %v1540 = vsel %vm1532, %v1507, %v1127
        %v1541 = vsel %vm1532, %v1508, %v1129
        %v1542 = vsel %vm1532, %v1509, %v1131
        %v1543 = vsel %vm1532, %v1510, %v1133
        %v1544 = vsel %vm1532, %v1511, %v1135
        %v1545 = vsel %vm1532, %v1512, %v1137
        %v1546 = vsel %vm1532, %v1513, %v1139
        %v1547 = vsel %vm1532, %v1514, %v1141
        %v1548 = vsel %vm1532, %v1515, %v1143
        %v1549 = vsel %vm1532, %v1516, %v1145
        %v1550 = vsel %vm1532, %v1517, %v1147
        %v1551 = vsel %vm1532, %v1518, %v1149
        %v1552 = vsel %vm1532, %v1519, %v1151
        %v1553 = vsel %vm1532, %v1520, %v1153
        %v1554 = vsel %vm1532, %v1521, %v1155
        %v1555 = vsel %vm1532, %v1522, %v1157
        %v1556 = vsel %vm1532, %v1523, %v1159
        %v1557 = vsel %vm1532, %v1524, %v1161
        %v1558 = vsel %vm1532, %v1525, %v1163
        %v1559 = vsel %vm1532, %v1526, %v1165
        %v1560 = vsel %vm1532, %v1527, %v1167
        %v1561 = vsel %vm1532, %v1528, %v1169
        %v1562 = vsel %vm1532, %v1529, %v1171
        %v1563 = vsel %vm1532, %v1530, %v1173
        %v1564 = vsel %vm1532, %v1531, %v1175
        %vm1565 = vcmask 785408
        %v1566 = vsel %vm1565, %v1533, %v1209
        %v1567 = vsel %vm1565, %v1534, %v1211
        %v1568 = vsel %vm1565, %v1535, %v1213
        %v1569 = vsel %vm1565, %v1536, %v1215
        %v1570 = vsel %vm1565, %v1537, %v1217
        %v1571 = vsel %vm1565, %v1538, %v1219
        %v1572 = vsel %vm1565, %v1539, %v1221
        %v1573 = vsel %vm1565, %v1540, %v1223
        %v1574 = vsel %vm1565, %v1541, %v1225
        %v1575 = vsel %vm1565, %v1542, %v1227
        %v1576 = vsel %vm1565, %v1543, %v1229
        %v1577 = vsel %vm1565, %v1544, %v1231
        %v1578 = vsel %vm1565, %v1545, %v1233
        %v1579 = vsel %vm1565, %v1546, %v1235
        %v1580 = vsel %vm1565, %v1547, %v1237
        %v1581 = vsel %vm1565, %v1548, %v1239
        %v1582 = vsel %vm1565, %v1549, %v1241
        %v1583 = vsel %vm1565, %v1550, %v1243
        %v1584 = vsel %vm1565, %v1551, %v1245
        %v1585 = vsel %vm1565, %v1552, %v1247
        %v1586 = vsel %vm1565, %v1553, %v1249
        %v1587 = vsel %vm1565, %v1554, %v1251
        %v1588 = vsel %vm1565, %v1555, %v1253
        %v1589 = vsel %vm1565, %v1556, %v1255
        %v1590 = vsel %vm1565, %v1557, %v1257
        %v1591 = vsel %vm1565, %v1558, %v1259
        %v1592 = vsel %vm1565, %v1559, %v1261
        %v1593 = vsel %vm1565, %v1560, %v1263
        %v1594 = vsel %vm1565, %v1561, %v1265
        %v1595 = vsel %vm1565, %v1562, %v1267
        %v1596 = vsel %vm1565, %v1563, %v1269
        %v1597 = vsel %vm1565, %v1564, %v1271
        %vm1598 = vcmask 916480
        %v1599 = vsel %vm1598, %v1566, %v1305
        %v1600 = vsel %vm1598, %v1567, %v1307
        %v1601 = vsel %vm1598, %v1568, %v1309
        %v1602 = vsel %vm1598, %v1569, %v1311
        %v1603 = vsel %vm1598, %v1570, %v1313
        %v1604 = vsel %vm1598, %v1571, %v1315
        %v1605 = vsel %vm1598, %v1572, %v1317
        %v1606 = vsel %vm1598, %v1573, %v1319
        %v1607 = vsel %vm1598, %v1574, %v1321
        %v1608 = vsel %vm1598, %v1575, %v1323
        %v1609 = vsel %vm1598, %v1576, %v1325
        %v1610 = vsel %vm1598, %v1577, %v1327
        %v1611 = vsel %vm1598, %v1578, %v1329
        %v1612 = vsel %vm1598, %v1579, %v1331
        %v1613 = vsel %vm1598, %v1580, %v1333
        %v1614 = vsel %vm1598, %v1581, %v1335
        %v1615 = vsel %vm1598, %v1582, %v1337
        %v1616 = vsel %vm1598, %v1583, %v1339
        %v1617 = vsel %vm1598, %v1584, %v1341
        %v1618 = vsel %vm1598, %v1585, %v1343
        %v1619 = vsel %vm1598, %v1586, %v1345
        %v1620 = vsel %vm1598, %v1587, %v1347
        %v1621 = vsel %vm1598, %v1588, %v1349
        %v1622 = vsel %vm1598, %v1589, %v1351
        %v1623 = vsel %vm1598, %v1590, %v1353
        %v1624 = vsel %vm1598, %v1591, %v1355
        %v1625 = vsel %vm1598, %v1592, %v1357
        %v1626 = vsel %vm1598, %v1593, %v1359
        %v1627 = vsel %vm1598, %v1594, %v1361
        %v1628 = vsel %vm1598, %v1595, %v1363
        %v1629 = vsel %vm1598, %v1596, %v1365
        %v1630 = vsel %vm1598, %v1597, %v1367
        %v1631 = vpack.c.bf16 %v1600, %v1599
        %v1632 = vpack.c.bf16 %v604, %v602
        %v1633 = vpack.c.bf16 %v1602, %v1601
        %v1634 = vpack.c.bf16 %v609, %v607
        %v1635 = vpack.c.bf16 %v1604, %v1603
        %v1636 = vpack.c.bf16 %v614, %v612
        %v1637 = vpack.c.bf16 %v1606, %v1605
        %v1638 = vpack.c.bf16 %v619, %v617
        %v1639 = vpack.c.bf16 %v1608, %v1607
        %v1640 = vpack.c.bf16 %v624, %v622
        %v1641 = vpack.c.bf16 %v1610, %v1609
        %v1642 = vpack.c.bf16 %v629, %v627
        %v1643 = vpack.c.bf16 %v1612, %v1611
        %v1644 = vpack.c.bf16 %v634, %v632
        %v1645 = vpack.c.bf16 %v1614, %v1613
        %v1646 = vpack.c.bf16 %v639, %v637
        %v1647 = vpack.c.bf16 %v1616, %v1615
        %v1648 = vpack.c.bf16 %v644, %v642
        %v1649 = vpack.c.bf16 %v1618, %v1617
        %v1650 = vpack.c.bf16 %v649, %v647
        %v1651 = vpack.c.bf16 %v1620, %v1619
        %v1652 = vpack.c.bf16 %v654, %v652
        %v1653 = vpack.c.bf16 %v1622, %v1621
        %v1654 = vpack.c.bf16 %v659, %v657
        %v1655 = vpack.c.bf16 %v1624, %v1623
        %v1656 = vpack.c.bf16 %v664, %v662
        %v1657 = vpack.c.bf16 %v1626, %v1625
        %v1658 = vpack.c.bf16 %v669, %v667
        %v1659 = vpack.c.bf16 %v1628, %v1627
        %v1660 = vpack.c.bf16 %v682, %v680
        %v1661 = vpack.c.bf16 %v1630, %v1629
        %v1662 = vpack.c.bf16 %v695, %v693
        %v1663 = vld [vmem:[%s2] sm:$0xf]
        %v1664 = vld [vmem:[%s2 + $0x4] sm:$0xf]
        %v1665 = vld [vmem:[%s2 + $0x8] sm:$0xf]
        %v1666 = vld [vmem:[%s2 + $0xc] sm:$0xf]
        %v1667 = vld [vmem:[%s2 + $0x10] sm:$0xf]
        %v1668 = vld [vmem:[%s2 + $0x14] sm:$0xf]
        %v1669 = vld [vmem:[%s2 + $0x18] sm:$0xf]
        %v1670 = vld [vmem:[%s2 + $0x1c] sm:$0xf]
        %v1671 = vld [vmem:[%s2 + $0x20] sm:$0xf]
        %v1672 = vld [vmem:[%s2 + $0x24] sm:$0xf]
        %v1673 = vld [vmem:[%s2 + $0x28] sm:$0xf]
        %v1674 = vld [vmem:[%s2 + $0x2c] sm:$0xf]
        %v1675 = vld [vmem:[%s2 + $0x30] sm:$0xf]
        %v1676 = vld [vmem:[%s2 + $0x34] sm:$0xf]
        %v1677 = vld [vmem:[%s2 + $0x38] sm:$0xf]
        %v1678 = vld [vmem:[%s2 + $0x3c] sm:$0xf]
        %v1679 = vld [vmem:[%s2 + $0x40] sm:$0xf]
        %v1680 = vld [vmem:[%s2 + $0x44] sm:$0xf]
        %v1699 = vunpack.c.l.b16 %v1663
        %v1700 = vunpack.c.l.b16 %v1664
        %v1701 = vunpack.c.l.b16 %v1665
        %v1702 = vunpack.c.l.b16 %v1666
        %v1703 = vunpack.c.l.b16 %v1667
        %v1704 = vunpack.c.l.b16 %v1668
        %v1705 = vunpack.c.l.b16 %v1669
        %v1706 = vunpack.c.l.b16 %v1670
        %v1707 = vunpack.c.l.b16 %v1671
        %v1708 = vunpack.c.l.b16 %v1672
        %v1709 = vunpack.c.l.b16 %v1673
        %v1710 = vunpack.c.l.b16 %v1674
        %v1711 = vunpack.c.l.b16 %v1675
        %v1712 = vunpack.c.l.b16 %v1676
        %v1713 = vunpack.c.l.b16 %v1677
        %v1714 = vunpack.c.l.b16 %v1678
        %v1715 = vunpack.c.l.b16 %v1679
        %v1716 = vunpack.c.l.b16 %v1680
        %v1717 = vpack.c.b16 %v1700, %v1699
        %v1718 = vpack.c.b16 %v1702, %v1701
        %v1719 = vpack.c.b16 %v1704, %v1703
        %v1720 = vpack.c.b16 %v1706, %v1705
        %v1721 = vpack.c.b16 %v1708, %v1707
        %v1722 = vpack.c.b16 %v1710, %v1709
        %v1723 = vpack.c.b16 %v1712, %v1711
        %v1724 = vpack.c.b16 %v1714, %v1713
        %v1725 = vpack.c.b16 %v1716, %v1715
        %v1736 = vsel %vm1400, %v1632, 0
        %v1739 = vsel %vm1400, %v1634, 0
        %v1742 = vsel %vm1400, %v1636, 0
        %v1745 = vsel %vm1400, %v1638, 0
        %v1748 = vsel %vm1400, %v1640, 0
        %v1751 = vsel %vm1400, %v1642, 0
        %v1754 = vsel %vm1400, %v1644, 0
        %v1757 = vsel %vm1400, %v1646, 0
        %v1760 = vsel %vm1400, %v1648, 0
        %v1763 = vsel %vm1400, %v1650, 0
        %v1766 = vsel %vm1400, %v1652, 0
        %v1769 = vsel %vm1400, %v1654, 0
        %v1772 = vsel %vm1400, %v1656, 0
        %v1775 = vsel %vm1400, %v1658, 0
        %v1778 = vsel %vm1400, %v1660, 0
        %v1781 = vsel %vm1400, %v1662, 0
        %1783 = vmatprep.subr.bf16.mxu0 0
        %1784 = vmatpush1.bf16.msra.mxu0 %v1717
        %1785 = vmatprep.subr.bf16.mxu0 0
        %1786 = vmatpush1.bf16.msra.mxu0 %v1718
        %1787 = vmatprep.subr.bf16.mxu0 0
        %1788 = vmatpush1.bf16.msra.mxu0 %v1719
        %1789 = vmatprep.subr.bf16.mxu0 0
        %1790 = vmatpush1.bf16.msra.mxu0 %v1720
        %1791 = vmatprep.subr.bf16.mxu0 0
        %1792 = vmatpush1.bf16.msra.mxu0 %v1721
        %1793 = vmatprep.subr.bf16.mxu0 0
        %1794 = vmatpush1.bf16.msra.mxu0 %v1722
        %1795 = vmatprep.subr.bf16.mxu0 0
        %1796 = vmatpush1.bf16.msra.mxu0 %v1723
        %1797 = vmatprep.subr.bf16.mxu0 0
        %1798 = vmatpush1.bf16.msra.mxu0 %v1724
        %1799 = vmatprep.subr.bf16.mxu0 0
        %1800 = vmatpush1.bf16.msra.mxu0 %v1725
        %1801 = vmatprep.subr.bf16.mxu0 0
        %1802 = vmatpush1.bf16.msra.mxu0 0
        %1803 = vmatprep.subr.bf16.mxu0 0
        %1804 = vmatpush1.bf16.msra.mxu0 0
        %1805 = vmatprep.subr.bf16.mxu0 0
        %1806 = vmatpush1.bf16.msra.mxu0 0
        %1807 = vmatprep.subr.bf16.mxu0 0
        %1808 = vmatpush1.bf16.msra.mxu0 0
        %1809 = vmatprep.subr.bf16.mxu0 0
        %1810 = vmatpush1.bf16.msra.mxu0 0
        %1811 = vmatprep.subr.bf16.mxu0 0
        %1812 = vmatpush1.bf16.msra.mxu0 0
        %1813 = vmatprep.subr.bf16.mxu0 0
        %1814 = vmatpush1.bf16.msra.mxu0 0
        %1815 = vmatprep.mubr.bf16.mxu0 %v1736
        %1816 = vmatmul.mubr.bf16.gmra.mrb[0].mxu0 %v1631
        %v1817 = vpop.f32.mrb[0].mxu0
        %v1818 = vadd.f32 0.0, %v1817
        %v1819 = vpop.f32.mrb[0].mxu0
        %v1820 = vpop.f32.mrb[0].mxu0
        %v1821 = vadd.f32 0.0, %v1820
        %v1822 = vpop.f32.mrb[0].mxu0
        %1823 = vmatprep.mubr.bf16.mxu0 %v1739
        %1824 = vmatmul.mubr.bf16.gmra.mrb[0].mxu0 %v1633
        %v1825 = vpop.f32.mrb[0].mxu0
        %v1826 = vadd.f32 0.0, %v1825
        %v1827 = vpop.f32.mrb[0].mxu0
        %v1828 = vpop.f32.mrb[0].mxu0
        %v1829 = vadd.f32 0.0, %v1828
        %v1830 = vpop.f32.mrb[0].mxu0
        %1831 = vmatprep.mubr.bf16.mxu0 %v1742
        %1832 = vmatmul.mubr.bf16.gmra.mrb[0].mxu0 %v1635
        %v1833 = vpop.f32.mrb[0].mxu0
        %v1834 = vadd.f32 0.0, %v1833
        %v1835 = vpop.f32.mrb[0].mxu0
        %v1836 = vpop.f32.mrb[0].mxu0
        %v1837 = vadd.f32 0.0, %v1836
        %v1838 = vpop.f32.mrb[0].mxu0
        %1839 = vmatprep.mubr.bf16.mxu0 %v1745
        %1840 = vmatmul.mubr.bf16.gmra.mrb[0].mxu0 %v1637
        %v1841 = vpop.f32.mrb[0].mxu0
        %v1842 = vadd.f32 0.0, %v1841
        %v1843 = vpop.f32.mrb[0].mxu0
        %v1844 = vpop.f32.mrb[0].mxu0
        %v1845 = vadd.f32 0.0, %v1844
        %v1846 = vpop.f32.mrb[0].mxu0
        %1847 = vmatprep.mubr.bf16.mxu0 %v1748
        %1848 = vmatmul.mubr.bf16.gmra.mrb[0].mxu0 %v1639
        %v1849 = vpop.f32.mrb[0].mxu0
        %v1850 = vadd.f32 0.0, %v1849
        %v1851 = vpop.f32.mrb[0].mxu0
        %v1852 = vpop.f32.mrb[0].mxu0
        %v1853 = vadd.f32 0.0, %v1852
        %v1854 = vpop.f32.mrb[0].mxu0
        %1855 = vmatprep.mubr.bf16.mxu0 %v1751
        %1856 = vmatmul.mubr.bf16.gmra.mrb[0].mxu0 %v1641
        %v1857 = vpop.f32.mrb[0].mxu0
        %v1858 = vadd.f32 0.0, %v1857
        %v1859 = vpop.f32.mrb[0].mxu0
        %v1860 = vpop.f32.mrb[0].mxu0
        %v1861 = vadd.f32 0.0, %v1860
        %v1862 = vpop.f32.mrb[0].mxu0
        %1863 = vmatprep.mubr.bf16.mxu0 %v1754
        %1864 = vmatmul.mubr.bf16.gmra.mrb[0].mxu0 %v1643
        %v1865 = vpop.f32.mrb[0].mxu0
        %v1866 = vadd.f32 0.0, %v1865
        %v1867 = vpop.f32.mrb[0].mxu0
        %v1868 = vpop.f32.mrb[0].mxu0
        %v1869 = vadd.f32 0.0, %v1868
        %v1870 = vpop.f32.mrb[0].mxu0
        %1871 = vmatprep.mubr.bf16.mxu0 %v1757
        %1872 = vmatmul.mubr.bf16.gmra.mrb[0].mxu0 %v1645
        %v1873 = vpop.f32.mrb[0].mxu0
        %v1874 = vadd.f32 0.0, %v1873
        %v1875 = vpop.f32.mrb[0].mxu0
        %v1876 = vpop.f32.mrb[0].mxu0
        %v1877 = vadd.f32 0.0, %v1876
        %v1878 = vpop.f32.mrb[0].mxu0
        %1879 = vmatprep.mubr.bf16.mxu0 %v1760
        %1880 = vmatmul.mubr.bf16.gmra.mrb[0].mxu0 %v1647
        %v1881 = vpop.f32.mrb[0].mxu0
        %v1882 = vadd.f32 0.0, %v1881
        %v1883 = vpop.f32.mrb[0].mxu0
        %v1884 = vpop.f32.mrb[0].mxu0
        %v1885 = vadd.f32 0.0, %v1884
        %v1886 = vpop.f32.mrb[0].mxu0
        %1887 = vmatprep.mubr.bf16.mxu0 %v1763
        %1888 = vmatmul.mubr.bf16.gmra.mrb[0].mxu0 %v1649
        %v1889 = vpop.f32.mrb[0].mxu0
        %v1890 = vadd.f32 0.0, %v1889
        %v1891 = vpop.f32.mrb[0].mxu0
        %v1892 = vpop.f32.mrb[0].mxu0
        %v1893 = vadd.f32 0.0, %v1892
        %v1894 = vpop.f32.mrb[0].mxu0
        %1895 = vmatprep.mubr.bf16.mxu0 %v1766
        %1896 = vmatmul.mubr.bf16.gmra.mrb[0].mxu0 %v1651
        %v1897 = vpop.f32.mrb[0].mxu0
        %v1898 = vadd.f32 0.0, %v1897
        %v1899 = vpop.f32.mrb[0].mxu0
        %v1900 = vpop.f32.mrb[0].mxu0
        %v1901 = vadd.f32 0.0, %v1900
        %v1902 = vpop.f32.mrb[0].mxu0
        %1903 = vmatprep.mubr.bf16.mxu0 %v1769
        %1904 = vmatmul.mubr.bf16.gmra.mrb[0].mxu0 %v1653
        %v1905 = vpop.f32.mrb[0].mxu0
        %v1906 = vadd.f32 0.0, %v1905
        %v1907 = vpop.f32.mrb[0].mxu0
        %v1908 = vpop.f32.mrb[0].mxu0
        %v1909 = vadd.f32 0.0, %v1908
        %v1910 = vpop.f32.mrb[0].mxu0
        %1911 = vmatprep.mubr.bf16.mxu0 %v1772
        %1912 = vmatmul.mubr.bf16.gmra.mrb[0].mxu0 %v1655
        %v1913 = vpop.f32.mrb[0].mxu0
        %v1914 = vadd.f32 0.0, %v1913
        %v1915 = vpop.f32.mrb[0].mxu0
        %v1916 = vpop.f32.mrb[0].mxu0
        %v1917 = vadd.f32 0.0, %v1916
        %v1918 = vpop.f32.mrb[0].mxu0
        %1919 = vmatprep.mubr.bf16.mxu0 %v1775
        %1920 = vmatmul.mubr.bf16.gmra.mrb[0].mxu0 %v1657
        %v1921 = vpop.f32.mrb[0].mxu0
        %v1922 = vadd.f32 0.0, %v1921
        %v1923 = vpop.f32.mrb[0].mxu0
        %v1924 = vpop.f32.mrb[0].mxu0
        %v1925 = vadd.f32 0.0, %v1924
        %v1926 = vpop.f32.mrb[0].mxu0
        %1927 = vmatprep.mubr.bf16.mxu0 %v1778
        %1928 = vmatmul.mubr.bf16.gmra.mrb[0].mxu0 %v1659
        %v1929 = vpop.f32.mrb[0].mxu0
        %v1930 = vadd.f32 0.0, %v1929
        %v1931 = vpop.f32.mrb[0].mxu0
        %v1932 = vpop.f32.mrb[0].mxu0
        %v1933 = vadd.f32 0.0, %v1932
        %v1934 = vpop.f32.mrb[0].mxu0
        %1935 = vmatprep.mubr.bf16.mxu0 %v1781
        %1936 = vmatmul.mubr.bf16.gmra.mrb[0].mxu0 %v1661
        %v1937 = vpop.f32.mrb[0].mxu0
        %v1938 = vadd.f32 0.0, %v1937
        %v1939 = vpop.f32.mrb[0].mxu0
        %v1940 = vpop.f32.mrb[0].mxu0
        %v1941 = vadd.f32 0.0, %v1940
        %v1942 = vpop.f32.mrb[0].mxu0
        %1943 = vdwg.mxu0
        %v1944 = vld [vmem:[%s3] sm:$0x1]
        %v1946 = vlaneseq
        %v1947 = vshrl.u32 %v1946, 7
        %v1948 = vsub.s32 0, %v1947
        %v1949 = vrot.slane %v1944, %v1948
        %v1951 = vmul.f32 %v1818, %v1949
        %v1952 = vmul.f32 %v1821, %v1949
        %v1953 = vmul.f32 %v1826, %v1949
        %v1954 = vmul.f32 %v1829, %v1949
        %v1955 = vmul.f32 %v1834, %v1949
        %v1956 = vmul.f32 %v1837, %v1949
        %v1957 = vmul.f32 %v1842, %v1949
        %v1958 = vmul.f32 %v1845, %v1949
        %v1959 = vmul.f32 %v1850, %v1949
        %v1960 = vmul.f32 %v1853, %v1949
        %v1961 = vmul.f32 %v1858, %v1949
        %v1962 = vmul.f32 %v1861, %v1949
        %v1963 = vmul.f32 %v1866, %v1949
        %v1964 = vmul.f32 %v1869, %v1949
        %v1965 = vmul.f32 %v1874, %v1949
        %v1966 = vmul.f32 %v1877, %v1949
        %v1967 = vmul.f32 %v1882, %v1949
        %v1968 = vmul.f32 %v1885, %v1949
        %v1969 = vmul.f32 %v1890, %v1949
        %v1970 = vmul.f32 %v1893, %v1949
        %v1971 = vmul.f32 %v1898, %v1949
        %v1972 = vmul.f32 %v1901, %v1949
        %v1973 = vmul.f32 %v1906, %v1949
        %v1974 = vmul.f32 %v1909, %v1949
        %v1975 = vmul.f32 %v1914, %v1949
        %v1976 = vmul.f32 %v1917, %v1949
        %v1977 = vmul.f32 %v1922, %v1949
        %v1978 = vmul.f32 %v1925, %v1949
        %v1979 = vmul.f32 %v1930, %v1949
        %v1980 = vmul.f32 %v1933, %v1949
        %v1981 = vmul.f32 %v1938, %v1949
        %v1982 = vmul.f32 %v1941, %v1949
        %v1983 = vld [vmem:[%s4] sm:$0x1]
        %v1985 = vlaneseq
        %v1986 = vshrl.u32 %v1985, 7
        %v1987 = vsub.s32 0, %v1986
        %v1988 = vrot.slane %v1983, %v1987
        %v1990 = vadd.f32 %v1951, %v1988
        %v1991 = vadd.f32 %v1952, %v1988
        %v1992 = vadd.f32 %v1953, %v1988
        %v1993 = vadd.f32 %v1954, %v1988
        %v1994 = vadd.f32 %v1955, %v1988
        %v1995 = vadd.f32 %v1956, %v1988
        %v1996 = vadd.f32 %v1957, %v1988
        %v1997 = vadd.f32 %v1958, %v1988
        %v1998 = vadd.f32 %v1959, %v1988
        %v1999 = vadd.f32 %v1960, %v1988
        %v2000 = vadd.f32 %v1961, %v1988
        %v2001 = vadd.f32 %v1962, %v1988
        %v2002 = vadd.f32 %v1963, %v1988
        %v2003 = vadd.f32 %v1964, %v1988
        %v2004 = vadd.f32 %v1965, %v1988
        %v2005 = vadd.f32 %v1966, %v1988
        %v2006 = vadd.f32 %v1967, %v1988
        %v2007 = vadd.f32 %v1968, %v1988
        %v2008 = vadd.f32 %v1969, %v1988
        %v2009 = vadd.f32 %v1970, %v1988
        %v2010 = vadd.f32 %v1971, %v1988
        %v2011 = vadd.f32 %v1972, %v1988
        %v2012 = vadd.f32 %v1973, %v1988
        %v2013 = vadd.f32 %v1974, %v1988
        %v2014 = vadd.f32 %v1975, %v1988
        %v2015 = vadd.f32 %v1976, %v1988
        %v2016 = vadd.f32 %v1977, %v1988
        %v2017 = vadd.f32 %v1978, %v1988
        %v2018 = vadd.f32 %v1979, %v1988
        %v2019 = vadd.f32 %v1980, %v1988
        %v2020 = vadd.f32 %v1981, %v1988
        %v2021 = vadd.f32 %v1982, %v1988
        %v2022 = vmax.f32 %v1990, 0.0
        %v2023 = vmax.f32 %v1991, 0.0
        %v2024 = vmax.f32 %v1992, 0.0
        %v2025 = vmax.f32 %v1993, 0.0
        %v2026 = vmax.f32 %v1994, 0.0
        %v2027 = vmax.f32 %v1995, 0.0
        %v2028 = vmax.f32 %v1996, 0.0
        %v2029 = vmax.f32 %v1997, 0.0
        %v2030 = vmax.f32 %v1998, 0.0
        %v2031 = vmax.f32 %v1999, 0.0
        %v2032 = vmax.f32 %v2000, 0.0
        %v2033 = vmax.f32 %v2001, 0.0
        %v2034 = vmax.f32 %v2002, 0.0
        %v2035 = vmax.f32 %v2003, 0.0
        %v2036 = vmax.f32 %v2004, 0.0
        %v2037 = vmax.f32 %v2005, 0.0
        %v2038 = vmax.f32 %v2006, 0.0
        %v2039 = vmax.f32 %v2007, 0.0
        %v2040 = vmax.f32 %v2008, 0.0
        %v2041 = vmax.f32 %v2009, 0.0
        %v2042 = vmax.f32 %v2010, 0.0
        %v2043 = vmax.f32 %v2011, 0.0
        %v2044 = vmax.f32 %v2012, 0.0
        %v2045 = vmax.f32 %v2013, 0.0
        %v2046 = vmax.f32 %v2014, 0.0
        %v2047 = vmax.f32 %v2015, 0.0
        %v2048 = vmax.f32 %v2016, 0.0
        %v2049 = vmax.f32 %v2017, 0.0
        %v2050 = vmax.f32 %v2018, 0.0
        %v2051 = vmax.f32 %v2019, 0.0
        %v2052 = vmax.f32 %v2020, 0.0
        %v2053 = vmax.f32 %v2021, 0.0
        %v2054 = vld [vmem:[%s399] sm:$0xff]
        %v2055 = vld [vmem:[%s399 + $0x8] sm:$0xff]
        %v2056 = vld [vmem:[%s399 + $0x10] sm:$0xff]
        %v2057 = vld [vmem:[%s399 + $0x18] sm:$0xff]
        %v2058 = vld [vmem:[%s399 + $0x20] sm:$0xff]
        %v2059 = vld [vmem:[%s399 + $0x28] sm:$0xff]
        %v2060 = vld [vmem:[%s399 + $0x30] sm:$0xff]
        %v2061 = vld [vmem:[%s399 + $0x38] sm:$0xff]
        %v2062 = vld [vmem:[%s399 + $0x40] sm:$0xff]
        %v2063 = vld [vmem:[%s399 + $0x48] sm:$0xff]
        %v2064 = vld [vmem:[%s399 + $0x50] sm:$0xff]
        %v2065 = vld [vmem:[%s399 + $0x58] sm:$0xff]
        %v2066 = vld [vmem:[%s399 + $0x60] sm:$0xff]
        %v2067 = vld [vmem:[%s399 + $0x68] sm:$0xff]
        %v2068 = vld [vmem:[%s399 + $0x70] sm:$0xff]
        %v2069 = vld [vmem:[%s399 + $0x78] sm:$0xff]
        %v2070 = vld [vmem:[%s399 + $0x80] sm:$0xff]
        %v2071 = vld [vmem:[%s399 + $0x88] sm:$0xff]
        %v2072 = vld [vmem:[%s399 + $0x90] sm:$0xff]
        %v2073 = vld [vmem:[%s399 + $0x98] sm:$0xff]
        %v2074 = vld [vmem:[%s399 + $0xa0] sm:$0xff]
        %v2075 = vld [vmem:[%s399 + $0xa8] sm:$0xff]
        %v2076 = vld [vmem:[%s399 + $0xb0] sm:$0xff]
        %v2077 = vld [vmem:[%s399 + $0xb8] sm:$0xff]
        %v2078 = vld [vmem:[%s399 + $0xc0] sm:$0xff]
        %v2079 = vld [vmem:[%s399 + $0xc8] sm:$0xff]
        %v2080 = vld [vmem:[%s399 + $0xd0] sm:$0xff]
        %v2081 = vld [vmem:[%s399 + $0xd8] sm:$0xff]
        %v2082 = vld [vmem:[%s399 + $0xe0] sm:$0xff]
        %v2083 = vld [vmem:[%s399 + $0xe8] sm:$0xff]
        %v2084 = vld [vmem:[%s399 + $0xf0] sm:$0xff]
        %v2085 = vld [vmem:[%s399 + $0xf8] sm:$0xff]
        %v2086 = vpack.c.bf16 %v2055, %v2054
        %v2087 = vpack.c.bf16 %v2057, %v2056
        %v2088 = vpack.c.bf16 %v2059, %v2058
        %v2089 = vpack.c.bf16 %v2061, %v2060
        %v2090 = vpack.c.bf16 %v2063, %v2062
        %v2091 = vpack.c.bf16 %v2065, %v2064
        %v2092 = vpack.c.bf16 %v2067, %v2066
        %v2093 = vpack.c.bf16 %v2069, %v2068
        %v2094 = vpack.c.bf16 %v2071, %v2070
        %v2095 = vpack.c.bf16 %v2073, %v2072
        %v2096 = vpack.c.bf16 %v2075, %v2074
        %v2097 = vpack.c.bf16 %v2077, %v2076
        %v2098 = vpack.c.bf16 %v2079, %v2078
        %v2099 = vpack.c.bf16 %v2081, %v2080
        %v2100 = vpack.c.bf16 %v2083, %v2082
        %v2101 = vpack.c.bf16 %v2085, %v2084
        %v2102 = vld [vmem:[%s5] sm:$0xf]
        %v2103 = vld [vmem:[%s5 + $0x4] sm:$0xf]
        %v2104 = vpack.c.bf16 %v2023, %v2022
        %v2105 = vpack.c.bf16 %v2025, %v2024
        %v2106 = vpack.c.bf16 %v2027, %v2026
        %v2107 = vpack.c.bf16 %v2029, %v2028
        %v2108 = vpack.c.bf16 %v2031, %v2030
        %v2109 = vpack.c.bf16 %v2033, %v2032
        %v2110 = vpack.c.bf16 %v2035, %v2034
        %v2111 = vpack.c.bf16 %v2037, %v2036
        %v2112 = vpack.c.bf16 %v2039, %v2038
        %v2113 = vpack.c.bf16 %v2041, %v2040
        %v2114 = vpack.c.bf16 %v2043, %v2042
        %v2115 = vpack.c.bf16 %v2045, %v2044
        %v2116 = vpack.c.bf16 %v2047, %v2046
        %v2117 = vpack.c.bf16 %v2049, %v2048
        %v2118 = vpack.c.bf16 %v2051, %v2050
        %v2119 = vpack.c.bf16 %v2053, %v2052
        %v2120 = vld [vmem:[%s6] sm:$0xf]
        %v2121 = vld [vmem:[%s6 + $0x4] sm:$0xf]
        %v2124 = vunpack.c.l.b16 %v2120
        %v2125 = vunpack.c.l.b16 %v2121
        %v2126 = vpack.c.b16 %v2125, %v2124
        %v2129 = vsel %vm1400, %v2104, 0
        %v2132 = vsel %vm1400, %v2105, 0
        %v2135 = vsel %vm1400, %v2106, 0
        %v2138 = vsel %vm1400, %v2107, 0
        %v2141 = vsel %vm1400, %v2108, 0
        %v2144 = vsel %vm1400, %v2109, 0
        %v2147 = vsel %vm1400, %v2110, 0
        %v2150 = vsel %vm1400, %v2111, 0
        %v2153 = vsel %vm1400, %v2112, 0
        %v2156 = vsel %vm1400, %v2113, 0
        %v2159 = vsel %vm1400, %v2114, 0
        %v2162 = vsel %vm1400, %v2115, 0
        %v2165 = vsel %vm1400, %v2116, 0
        %v2168 = vsel %vm1400, %v2117, 0
        %v2171 = vsel %vm1400, %v2118, 0
        %v2174 = vsel %vm1400, %v2119, 0
        %2176 = vmatprep.subr.bf16.mxu0 0
        %2177 = vmatpush1.bf16.msra.mxu0 %v2126
        %2178 = vmatprep.subr.bf16.mxu0 0
        %2179 = vmatpush1.bf16.msra.mxu0 0
        %2180 = vmatprep.subr.bf16.mxu0 0
        %2181 = vmatpush1.bf16.msra.mxu0 0
        %2182 = vmatprep.subr.bf16.mxu0 0
        %2183 = vmatpush1.bf16.msra.mxu0 0
        %2184 = vmatprep.subr.bf16.mxu0 0
        %2185 = vmatpush1.bf16.msra.mxu0 0
        %2186 = vmatprep.subr.bf16.mxu0 0
        %2187 = vmatpush1.bf16.msra.mxu0 0
        %2188 = vmatprep.subr.bf16.mxu0 0
        %2189 = vmatpush1.bf16.msra.mxu0 0
        %2190 = vmatprep.subr.bf16.mxu0 0
        %2191 = vmatpush1.bf16.msra.mxu0 0
        %2192 = vmatprep.subr.bf16.mxu0 0
        %2193 = vmatpush1.bf16.msra.mxu0 0
        %2194 = vmatprep.subr.bf16.mxu0 0
        %2195 = vmatpush1.bf16.msra.mxu0 0
        %2196 = vmatprep.subr.bf16.mxu0 0
        %2197 = vmatpush1.bf16.msra.mxu0 0
        %2198 = vmatprep.subr.bf16.mxu0 0
        %2199 = vmatpush1.bf16.msra.mxu0 0
        %2200 = vmatprep.subr.bf16.mxu0 0
        %2201 = vmatpush1.bf16.msra.mxu0 0
        %2202 = vmatprep.subr.bf16.mxu0 0
        %2203 = vmatpush1.bf16.msra.mxu0 0
        %2204 = vmatprep.subr.bf16.mxu0 0
        %2205 = vmatpush1.bf16.msra.mxu0 0
        %2206 = vmatprep.subr.bf16.mxu0 0
        %2207 = vmatpush1.bf16.msra.mxu0 0
        %2208 = vmatprep.mubr.bf16.mxu0 0
        %2209 = vmatmul.mubr.bf16.gmra.mrb[0].mxu0 %v2129
        %v2210 = vpop.f32.mrb[0].mxu0
        %v2211 = vadd.f32 0.0, %v2210
        %v2212 = vpop.f32.mrb[0].mxu0
        %v2213 = vpop.f32.mrb[0].mxu0
        %v2214 = vadd.f32 0.0, %v2213
        %v2215 = vpop.f32.mrb[0].mxu0
        %2216 = vmatprep.mubr.bf16.mxu0 0
        %2217 = vmatmul.mubr.bf16.gmra.mrb[0].mxu0 %v2132
        %v2218 = vpop.f32.mrb[0].mxu0
        %v2219 = vadd.f32 0.0, %v2218
        %v2220 = vpop.f32.mrb[0].mxu0
        %v2221 = vpop.f32.mrb[0].mxu0
        %v2222 = vadd.f32 0.0, %v2221
        %v2223 = vpop.f32.mrb[0].mxu0
        %2224 = vmatprep.mubr.bf16.mxu0 0
        %2225 = vmatmul.mubr.bf16.gmra.mrb[0].mxu0 %v2135
        %v2226 = vpop.f32.mrb[0].mxu0
        %v2227 = vadd.f32 0.0, %v2226
        %v2228 = vpop.f32.mrb[0].mxu0
        %v2229 = vpop.f32.mrb[0].mxu0
        %v2230 = vadd.f32 0.0, %v2229
        %v2231 = vpop.f32.mrb[0].mxu0
        %2232 = vmatprep.mubr.bf16.mxu0 0
        %2233 = vmatmul.mubr.bf16.gmra.mrb[0].mxu0 %v2138
        %v2234 = vpop.f32.mrb[0].mxu0
        %v2235 = vadd.f32 0.0, %v2234
        %v2236 = vpop.f32.mrb[0].mxu0
        %v2237 = vpop.f32.mrb[0].mxu0
        %v2238 = vadd.f32 0.0, %v2237
        %v2239 = vpop.f32.mrb[0].mxu0
        %2240 = vmatprep.mubr.bf16.mxu0 0
        %2241 = vmatmul.mubr.bf16.gmra.mrb[0].mxu0 %v2141
        %v2242 = vpop.f32.mrb[0].mxu0
        %v2243 = vadd.f32 0.0, %v2242
        %v2244 = vpop.f32.mrb[0].mxu0
        %v2245 = vpop.f32.mrb[0].mxu0
        %v2246 = vadd.f32 0.0, %v2245
        %v2247 = vpop.f32.mrb[0].mxu0
        %2248 = vmatprep.mubr.bf16.mxu0 0
        %2249 = vmatmul.mubr.bf16.gmra.mrb[0].mxu0 %v2144
        %v2250 = vpop.f32.mrb[0].mxu0
        %v2251 = vadd.f32 0.0, %v2250
        %v2252 = vpop.f32.mrb[0].mxu0
        %v2253 = vpop.f32.mrb[0].mxu0
        %v2254 = vadd.f32 0.0, %v2253
        %v2255 = vpop.f32.mrb[0].mxu0
        %2256 = vmatprep.mubr.bf16.mxu0 0
        %2257 = vmatmul.mubr.bf16.gmra.mrb[0].mxu0 %v2147
        %v2258 = vpop.f32.mrb[0].mxu0
        %v2259 = vadd.f32 0.0, %v2258
        %v2260 = vpop.f32.mrb[0].mxu0
        %v2261 = vpop.f32.mrb[0].mxu0
        %v2262 = vadd.f32 0.0, %v2261
        %v2263 = vpop.f32.mrb[0].mxu0
        %2264 = vmatprep.mubr.bf16.mxu0 0
        %2265 = vmatmul.mubr.bf16.gmra.mrb[0].mxu0 %v2150
        %v2266 = vpop.f32.mrb[0].mxu0
        %v2267 = vadd.f32 0.0, %v2266
        %v2268 = vpop.f32.mrb[0].mxu0
        %v2269 = vpop.f32.mrb[0].mxu0
        %v2270 = vadd.f32 0.0, %v2269
        %v2271 = vpop.f32.mrb[0].mxu0
        %2272 = vmatprep.mubr.bf16.mxu0 0
        %2273 = vmatmul.mubr.bf16.gmra.mrb[0].mxu0 %v2153
        %v2274 = vpop.f32.mrb[0].mxu0
        %v2275 = vadd.f32 0.0, %v2274
        %v2276 = vpop.f32.mrb[0].mxu0
        %v2277 = vpop.f32.mrb[0].mxu0
        %v2278 = vadd.f32 0.0, %v2277
        %v2279 = vpop.f32.mrb[0].mxu0
        %2280 = vmatprep.mubr.bf16.mxu0 0
        %2281 = vmatmul.mubr.bf16.gmra.mrb[0].mxu0 %v2156
        %v2282 = vpop.f32.mrb[0].mxu0
        %v2283 = vadd.f32 0.0, %v2282
        %v2284 = vpop.f32.mrb[0].mxu0
        %v2285 = vpop.f32.mrb[0].mxu0
        %v2286 = vadd.f32 0.0, %v2285
        %v2287 = vpop.f32.mrb[0].mxu0
        %2288 = vmatprep.mubr.bf16.mxu0 0
        %2289 = vmatmul.mubr.bf16.gmra.mrb[0].mxu0 %v2159
        %v2290 = vpop.f32.mrb[0].mxu0
        %v2291 = vadd.f32 0.0, %v2290
        %v2292 = vpop.f32.mrb[0].mxu0
        %v2293 = vpop.f32.mrb[0].mxu0
        %v2294 = vadd.f32 0.0, %v2293
        %v2295 = vpop.f32.mrb[0].mxu0
        %2296 = vmatprep.mubr.bf16.mxu0 0
        %2297 = vmatmul.mubr.bf16.gmra.mrb[0].mxu0 %v2162
        %v2298 = vpop.f32.mrb[0].mxu0
        %v2299 = vadd.f32 0.0, %v2298
        %v2300 = vpop.f32.mrb[0].mxu0
        %v2301 = vpop.f32.mrb[0].mxu0
        %v2302 = vadd.f32 0.0, %v2301
        %v2303 = vpop.f32.mrb[0].mxu0
        %2304 = vmatprep.mubr.bf16.mxu0 0
        %2305 = vmatmul.mubr.bf16.gmra.mrb[0].mxu0 %v2165
        %v2306 = vpop.f32.mrb[0].mxu0
        %v2307 = vadd.f32 0.0, %v2306
        %v2308 = vpop.f32.mrb[0].mxu0
        %v2309 = vpop.f32.mrb[0].mxu0
        %v2310 = vadd.f32 0.0, %v2309
        %v2311 = vpop.f32.mrb[0].mxu0
        %2312 = vmatprep.mubr.bf16.mxu0 0
        %2313 = vmatmul.mubr.bf16.gmra.mrb[0].mxu0 %v2168
        %v2314 = vpop.f32.mrb[0].mxu0
        %v2315 = vadd.f32 0.0, %v2314
        %v2316 = vpop.f32.mrb[0].mxu0
        %v2317 = vpop.f32.mrb[0].mxu0
        %v2318 = vadd.f32 0.0, %v2317
        %v2319 = vpop.f32.mrb[0].mxu0
        %2320 = vmatprep.mubr.bf16.mxu0 0
        %2321 = vmatmul.mubr.bf16.gmra.mrb[0].mxu0 %v2171
        %v2322 = vpop.f32.mrb[0].mxu0
        %v2323 = vadd.f32 0.0, %v2322
        %v2324 = vpop.f32.mrb[0].mxu0
        %v2325 = vpop.f32.mrb[0].mxu0
        %v2326 = vadd.f32 0.0, %v2325
        %v2327 = vpop.f32.mrb[0].mxu0
        %2328 = vmatprep.mubr.bf16.mxu0 0
        %2329 = vmatmul.mubr.bf16.gmra.mrb[0].mxu0 %v2174
        %v2330 = vpop.f32.mrb[0].mxu0
        %v2331 = vadd.f32 0.0, %v2330
        %v2332 = vpop.f32.mrb[0].mxu0
        %v2333 = vpop.f32.mrb[0].mxu0
        %v2334 = vadd.f32 0.0, %v2333
        %v2335 = vpop.f32.mrb[0].mxu0
        %2336 = vdwg.mxu0
        %v2339 = vunpack.c.l.b16 %v2102
        %v2340 = vunpack.c.l.b16 %v2103
        %v2341 = vpack.c.b16 %v2340, %v2339
        %v2344 = vsel %vm1400, %v2086, 0
        %v2347 = vsel %vm1400, %v2087, 0
        %v2350 = vsel %vm1400, %v2088, 0
        %v2353 = vsel %vm1400, %v2089, 0
        %v2356 = vsel %vm1400, %v2090, 0
        %v2359 = vsel %vm1400, %v2091, 0
        %v2362 = vsel %vm1400, %v2092, 0
        %v2365 = vsel %vm1400, %v2093, 0
        %v2368 = vsel %vm1400, %v2094, 0
        %v2371 = vsel %vm1400, %v2095, 0
        %v2374 = vsel %vm1400, %v2096, 0
        %v2377 = vsel %vm1400, %v2097, 0
        %v2380 = vsel %vm1400, %v2098, 0
        %v2383 = vsel %vm1400, %v2099, 0
        %v2386 = vsel %vm1400, %v2100, 0
        %v2389 = vsel %vm1400, %v2101, 0
        %2391 = vmatprep.subr.bf16.mxu0 0
        %2392 = vmatpush1.bf16.msra.mxu0 %v2341
        %2393 = vmatprep.subr.bf16.mxu0 0
        %2394 = vmatpush1.bf16.msra.mxu0 0
        %2395 = vmatprep.subr.bf16.mxu0 0
        %2396 = vmatpush1.bf16.msra.mxu0 0
        %2397 = vmatprep.subr.bf16.mxu0 0
        %2398 = vmatpush1.bf16.msra.mxu0 0
        %2399 = vmatprep.subr.bf16.mxu0 0
        %2400 = vmatpush1.bf16.msra.mxu0 0
        %2401 = vmatprep.subr.bf16.mxu0 0
        %2402 = vmatpush1.bf16.msra.mxu0 0
        %2403 = vmatprep.subr.bf16.mxu0 0
        %2404 = vmatpush1.bf16.msra.mxu0 0
        %2405 = vmatprep.subr.bf16.mxu0 0
        %2406 = vmatpush1.bf16.msra.mxu0 0
        %2407 = vmatprep.subr.bf16.mxu0 0
        %2408 = vmatpush1.bf16.msra.mxu0 0
        %2409 = vmatprep.subr.bf16.mxu0 0
        %2410 = vmatpush1.bf16.msra.mxu0 0
        %2411 = vmatprep.subr.bf16.mxu0 0
        %2412 = vmatpush1.bf16.msra.mxu0 0
        %2413 = vmatprep.subr.bf16.mxu0 0
        %2414 = vmatpush1.bf16.msra.mxu0 0
        %2415 = vmatprep.subr.bf16.mxu0 0
        %2416 = vmatpush1.bf16.msra.mxu0 0
        %2417 = vmatprep.subr.bf16.mxu0 0
        %2418 = vmatpush1.bf16.msra.mxu0 0
        %2419 = vmatprep.subr.bf16.mxu0 0
        %2420 = vmatpush1.bf16.msra.mxu0 0
        %2421 = vmatprep.subr.bf16.mxu0 0
        %2422 = vmatpush1.bf16.msra.mxu0 0
        %2423 = vmatprep.mubr.bf16.mxu0 0
        %2424 = vmatmul.mubr.bf16.gmra.mrb[0].mxu0 %v2344
        %v2425 = vpop.f32.mrb[0].mxu0
        %v2426 = vadd.f32 %v2211, %v2425
        %v2427 = vpop.f32.mrb[0].mxu0
        %v2428 = vpop.f32.mrb[0].mxu0
        %v2429 = vadd.f32 %v2214, %v2428
        %v2430 = vpop.f32.mrb[0].mxu0
        %2431 = vmatprep.mubr.bf16.mxu0 0
        %2432 = vmatmul.mubr.bf16.gmra.mrb[0].mxu0 %v2347
        %v2433 = vpop.f32.mrb[0].mxu0
        %v2434 = vadd.f32 %v2219, %v2433
        %v2435 = vpop.f32.mrb[0].mxu0
        %v2436 = vpop.f32.mrb[0].mxu0
        %v2437 = vadd.f32 %v2222, %v2436
        %v2438 = vpop.f32.mrb[0].mxu0
        %2439 = vmatprep.mubr.bf16.mxu0 0
        %2440 = vmatmul.mubr.bf16.gmra.mrb[0].mxu0 %v2350
        %v2441 = vpop.f32.mrb[0].mxu0
        %v2442 = vadd.f32 %v2227, %v2441
        %v2443 = vpop.f32.mrb[0].mxu0
        %v2444 = vpop.f32.mrb[0].mxu0
        %v2445 = vadd.f32 %v2230, %v2444
        %v2446 = vpop.f32.mrb[0].mxu0
        %2447 = vmatprep.mubr.bf16.mxu0 0
        %2448 = vmatmul.mubr.bf16.gmra.mrb[0].mxu0 %v2353
        %v2449 = vpop.f32.mrb[0].mxu0
        %v2450 = vadd.f32 %v2235, %v2449
        %v2451 = vpop.f32.mrb[0].mxu0
        %v2452 = vpop.f32.mrb[0].mxu0
        %v2453 = vadd.f32 %v2238, %v2452
        %v2454 = vpop.f32.mrb[0].mxu0
        %2455 = vmatprep.mubr.bf16.mxu0 0
        %2456 = vmatmul.mubr.bf16.gmra.mrb[0].mxu0 %v2356
        %v2457 = vpop.f32.mrb[0].mxu0
        %v2458 = vadd.f32 %v2243, %v2457
        %v2459 = vpop.f32.mrb[0].mxu0
        %v2460 = vpop.f32.mrb[0].mxu0
        %v2461 = vadd.f32 %v2246, %v2460
        %v2462 = vpop.f32.mrb[0].mxu0
        %2463 = vmatprep.mubr.bf16.mxu0 0
        %2464 = vmatmul.mubr.bf16.gmra.mrb[0].mxu0 %v2359
        %v2465 = vpop.f32.mrb[0].mxu0
        %v2466 = vadd.f32 %v2251, %v2465
        %v2467 = vpop.f32.mrb[0].mxu0
        %v2468 = vpop.f32.mrb[0].mxu0
        %v2469 = vadd.f32 %v2254, %v2468
        %v2470 = vpop.f32.mrb[0].mxu0
        %2471 = vmatprep.mubr.bf16.mxu0 0
        %2472 = vmatmul.mubr.bf16.gmra.mrb[0].mxu0 %v2362
        %v2473 = vpop.f32.mrb[0].mxu0
        %v2474 = vadd.f32 %v2259, %v2473
        %v2475 = vpop.f32.mrb[0].mxu0
        %v2476 = vpop.f32.mrb[0].mxu0
        %v2477 = vadd.f32 %v2262, %v2476
        %v2478 = vpop.f32.mrb[0].mxu0
        %2479 = vmatprep.mubr.bf16.mxu0 0
        %2480 = vmatmul.mubr.bf16.gmra.mrb[0].mxu0 %v2365
        %v2481 = vpop.f32.mrb[0].mxu0
        %v2482 = vadd.f32 %v2267, %v2481
        %v2483 = vpop.f32.mrb[0].mxu0
        %v2484 = vpop.f32.mrb[0].mxu0
        %v2485 = vadd.f32 %v2270, %v2484
        %v2486 = vpop.f32.mrb[0].mxu0
        %2487 = vmatprep.mubr.bf16.mxu0 0
        %2488 = vmatmul.mubr.bf16.gmra.mrb[0].mxu0 %v2368
        %v2489 = vpop.f32.mrb[0].mxu0
        %v2490 = vadd.f32 %v2275, %v2489
        %v2491 = vpop.f32.mrb[0].mxu0
        %v2492 = vpop.f32.mrb[0].mxu0
        %v2493 = vadd.f32 %v2278, %v2492
        %v2494 = vpop.f32.mrb[0].mxu0
        %2495 = vmatprep.mubr.bf16.mxu0 0
        %2496 = vmatmul.mubr.bf16.gmra.mrb[0].mxu0 %v2371
        %v2497 = vpop.f32.mrb[0].mxu0
        %v2498 = vadd.f32 %v2283, %v2497
        %v2499 = vpop.f32.mrb[0].mxu0
        %v2500 = vpop.f32.mrb[0].mxu0
        %v2501 = vadd.f32 %v2286, %v2500
        %v2502 = vpop.f32.mrb[0].mxu0
        %2503 = vmatprep.mubr.bf16.mxu0 0
        %2504 = vmatmul.mubr.bf16.gmra.mrb[0].mxu0 %v2374
        %v2505 = vpop.f32.mrb[0].mxu0
        %v2506 = vadd.f32 %v2291, %v2505
        %v2507 = vpop.f32.mrb[0].mxu0
        %v2508 = vpop.f32.mrb[0].mxu0
        %v2509 = vadd.f32 %v2294, %v2508
        %v2510 = vpop.f32.mrb[0].mxu0
        %2511 = vmatprep.mubr.bf16.mxu0 0
        %2512 = vmatmul.mubr.bf16.gmra.mrb[0].mxu0 %v2377
        %v2513 = vpop.f32.mrb[0].mxu0
        %v2514 = vadd.f32 %v2299, %v2513
        %v2515 = vpop.f32.mrb[0].mxu0
        %v2516 = vpop.f32.mrb[0].mxu0
        %v2517 = vadd.f32 %v2302, %v2516
        %v2518 = vpop.f32.mrb[0].mxu0
        %2519 = vmatprep.mubr.bf16.mxu0 0
        %2520 = vmatmul.mubr.bf16.gmra.mrb[0].mxu0 %v2380
        %v2521 = vpop.f32.mrb[0].mxu0
        %v2522 = vadd.f32 %v2307, %v2521
        %v2523 = vpop.f32.mrb[0].mxu0
        %v2524 = vpop.f32.mrb[0].mxu0
        %v2525 = vadd.f32 %v2310, %v2524
        %v2526 = vpop.f32.mrb[0].mxu0
        %2527 = vmatprep.mubr.bf16.mxu0 0
        %2528 = vmatmul.mubr.bf16.gmra.mrb[0].mxu0 %v2383
        %v2529 = vpop.f32.mrb[0].mxu0
        %v2530 = vadd.f32 %v2315, %v2529
        %v2531 = vpop.f32.mrb[0].mxu0
        %v2532 = vpop.f32.mrb[0].mxu0
        %v2533 = vadd.f32 %v2318, %v2532
        %v2534 = vpop.f32.mrb[0].mxu0
        %2535 = vmatprep.mubr.bf16.mxu0 0
        %2536 = vmatmul.mubr.bf16.gmra.mrb[0].mxu0 %v2386
        %v2537 = vpop.f32.mrb[0].mxu0
        %v2538 = vadd.f32 %v2323, %v2537
        %v2539 = vpop.f32.mrb[0].mxu0
        %v2540 = vpop.f32.mrb[0].mxu0
        %v2541 = vadd.f32 %v2326, %v2540
        %v2542 = vpop.f32.mrb[0].mxu0
        %2543 = vmatprep.mubr.bf16.mxu0 0
        %2544 = vmatmul.mubr.bf16.gmra.mrb[0].mxu0 %v2389
        %v2545 = vpop.f32.mrb[0].mxu0
        %v2546 = vadd.f32 %v2331, %v2545
        %v2547 = vpop.f32.mrb[0].mxu0
        %v2548 = vpop.f32.mrb[0].mxu0
        %v2549 = vadd.f32 %v2334, %v2548
        %v2550 = vpop.f32.mrb[0].mxu0
        %2551 = vdwg.mxu0
        %v2552 = vld [vmem:[%s7] sm:$0x1]
        %v2554 = vlaneseq
        %v2555 = vshrl.u32 %v2554, 7
        %v2556 = vsub.s32 0, %v2555
        %v2557 = vrot.slane %v2552, %v2556
        %v2559 = vmul.f32 %v2426, %v2557
        %v2560 = vmul.f32 %v2429, %v2557
        %v2561 = vmul.f32 %v2434, %v2557
        %v2562 = vmul.f32 %v2437, %v2557
        %v2563 = vmul.f32 %v2442, %v2557
        %v2564 = vmul.f32 %v2445, %v2557
        %v2565 = vmul.f32 %v2450, %v2557
        %v2566 = vmul.f32 %v2453, %v2557
        %v2567 = vmul.f32 %v2458, %v2557
        %v2568 = vmul.f32 %v2461, %v2557
        %v2569 = vmul.f32 %v2466, %v2557
        %v2570 = vmul.f32 %v2469, %v2557
        %v2571 = vmul.f32 %v2474, %v2557
        %v2572 = vmul.f32 %v2477, %v2557
        %v2573 = vmul.f32 %v2482, %v2557
        %v2574 = vmul.f32 %v2485, %v2557
        %v2575 = vmul.f32 %v2490, %v2557
        %v2576 = vmul.f32 %v2493, %v2557
        %v2577 = vmul.f32 %v2498, %v2557
        %v2578 = vmul.f32 %v2501, %v2557
        %v2579 = vmul.f32 %v2506, %v2557
        %v2580 = vmul.f32 %v2509, %v2557
        %v2581 = vmul.f32 %v2514, %v2557
        %v2582 = vmul.f32 %v2517, %v2557
        %v2583 = vmul.f32 %v2522, %v2557
        %v2584 = vmul.f32 %v2525, %v2557
        %v2585 = vmul.f32 %v2530, %v2557
        %v2586 = vmul.f32 %v2533, %v2557
        %v2587 = vmul.f32 %v2538, %v2557
        %v2588 = vmul.f32 %v2541, %v2557
        %v2589 = vmul.f32 %v2546, %v2557
        %v2590 = vmul.f32 %v2549, %v2557
        %v2591 = vld [vmem:[%s8] sm:$0x1]
        %v2593 = vlaneseq
        %v2594 = vshrl.u32 %v2593, 7
        %v2595 = vsub.s32 0, %v2594
        %v2596 = vrot.slane %v2591, %v2595
        %v2598 = vadd.f32 %v2559, %v2596
        %v2599 = vadd.f32 %v2560, %v2596
        %v2600 = vadd.f32 %v2561, %v2596
        %v2601 = vadd.f32 %v2562, %v2596
        %v2602 = vadd.f32 %v2563, %v2596
        %v2603 = vadd.f32 %v2564, %v2596
        %v2604 = vadd.f32 %v2565, %v2596
        %v2605 = vadd.f32 %v2566, %v2596
        %v2606 = vadd.f32 %v2567, %v2596
        %v2607 = vadd.f32 %v2568, %v2596
        %v2608 = vadd.f32 %v2569, %v2596
        %v2609 = vadd.f32 %v2570, %v2596
        %v2610 = vadd.f32 %v2571, %v2596
        %v2611 = vadd.f32 %v2572, %v2596
        %v2612 = vadd.f32 %v2573, %v2596
        %v2613 = vadd.f32 %v2574, %v2596
        %v2614 = vadd.f32 %v2575, %v2596
        %v2615 = vadd.f32 %v2576, %v2596
        %v2616 = vadd.f32 %v2577, %v2596
        %v2617 = vadd.f32 %v2578, %v2596
        %v2618 = vadd.f32 %v2579, %v2596
        %v2619 = vadd.f32 %v2580, %v2596
        %v2620 = vadd.f32 %v2581, %v2596
        %v2621 = vadd.f32 %v2582, %v2596
        %v2622 = vadd.f32 %v2583, %v2596
        %v2623 = vadd.f32 %v2584, %v2596
        %v2624 = vadd.f32 %v2585, %v2596
        %v2625 = vadd.f32 %v2586, %v2596
        %v2626 = vadd.f32 %v2587, %v2596
        %v2627 = vadd.f32 %v2588, %v2596
        %v2628 = vadd.f32 %v2589, %v2596
        %v2629 = vadd.f32 %v2590, %v2596
        %v2630 = vxor.u32 %v2598, 2147483648
        %v2631 = vxor.u32 %v2599, 2147483648
        %v2632 = vxor.u32 %v2600, 2147483648
        %v2633 = vxor.u32 %v2601, 2147483648
        %v2634 = vxor.u32 %v2602, 2147483648
        %v2635 = vxor.u32 %v2603, 2147483648
        %v2636 = vxor.u32 %v2604, 2147483648
        %v2637 = vxor.u32 %v2605, 2147483648
        %v2638 = vxor.u32 %v2606, 2147483648
        %v2639 = vxor.u32 %v2607, 2147483648
        %v2640 = vxor.u32 %v2608, 2147483648
        %v2641 = vxor.u32 %v2609, 2147483648
        %v2642 = vxor.u32 %v2610, 2147483648
        %v2643 = vxor.u32 %v2611, 2147483648
        %v2644 = vxor.u32 %v2612, 2147483648
        %v2645 = vxor.u32 %v2613, 2147483648
        %v2646 = vxor.u32 %v2614, 2147483648
        %v2647 = vxor.u32 %v2615, 2147483648
        %v2648 = vxor.u32 %v2616, 2147483648
        %v2649 = vxor.u32 %v2617, 2147483648
        %v2650 = vxor.u32 %v2618, 2147483648
        %v2651 = vxor.u32 %v2619, 2147483648
        %v2652 = vxor.u32 %v2620, 2147483648
        %v2653 = vxor.u32 %v2621, 2147483648
        %v2654 = vxor.u32 %v2622, 2147483648
        %v2655 = vxor.u32 %v2623, 2147483648
        %v2656 = vxor.u32 %v2624, 2147483648
        %v2657 = vxor.u32 %v2625, 2147483648
        %v2658 = vxor.u32 %v2626, 2147483648
        %v2659 = vxor.u32 %v2627, 2147483648
        %v2660 = vxor.u32 %v2628, 2147483648
        %v2661 = vxor.u32 %v2629, 2147483648
        %v2662 = vmul.f32 %v2630, 1.442695
        %v2663 = vpow.pop %v2662
        %v2664 = vmul.f32 %v2631, 1.442695
        %v2665 = vpow.pop %v2664
        %v2666 = vmul.f32 %v2632, 1.442695
        %v2667 = vpow.pop %v2666
        %v2668 = vmul.f32 %v2633, 1.442695
        %v2669 = vpow.pop %v2668
        %v2670 = vmul.f32 %v2634, 1.442695
        %v2671 = vpow.pop %v2670
        %v2672 = vmul.f32 %v2635, 1.442695
        %v2673 = vpow.pop %v2672
        %v2674 = vmul.f32 %v2636, 1.442695
        %v2675 = vpow.pop %v2674
        %v2676 = vmul.f32 %v2637, 1.442695
        %v2677 = vpow.pop %v2676
        %v2678 = vmul.f32 %v2638, 1.442695
        %v2679 = vpow.pop %v2678
        %v2680 = vmul.f32 %v2639, 1.442695
        %v2681 = vpow.pop %v2680
        %v2682 = vmul.f32 %v2640, 1.442695
        %v2683 = vpow.pop %v2682
        %v2684 = vmul.f32 %v2641, 1.442695
        %v2685 = vpow.pop %v2684
        %v2686 = vmul.f32 %v2642, 1.442695
        %v2687 = vpow.pop %v2686
        %v2688 = vmul.f32 %v2643, 1.442695
        %v2689 = vpow.pop %v2688
        %v2690 = vmul.f32 %v2644, 1.442695
        %v2691 = vpow.pop %v2690
        %v2692 = vmul.f32 %v2645, 1.442695
        %v2693 = vpow.pop %v2692
        %v2694 = vmul.f32 %v2646, 1.442695
        %v2695 = vpow.pop %v2694
        %v2696 = vmul.f32 %v2647, 1.442695
        %v2697 = vpow.pop %v2696
        %v2698 = vmul.f32 %v2648, 1.442695
        %v2699 = vpow.pop %v2698
        %v2700 = vmul.f32 %v2649, 1.442695
        %v2701 = vpow.pop %v2700
        %v2702 = vmul.f32 %v2650, 1.442695
        %v2703 = vpow.pop %v2702
        %v2704 = vmul.f32 %v2651, 1.442695
        %v2705 = vpow.pop %v2704
        %v2706 = vmul.f32 %v2652, 1.442695
        %v2707 = vpow.pop %v2706
        %v2708 = vmul.f32 %v2653, 1.442695
        %v2709 = vpow.pop %v2708
        %v2710 = vmul.f32 %v2654, 1.442695
        %v2711 = vpow.pop %v2710
        %v2712 = vmul.f32 %v2655, 1.442695
        %v2713 = vpow.pop %v2712
        %v2714 = vmul.f32 %v2656, 1.442695
        %v2715 = vpow.pop %v2714
        %v2716 = vmul.f32 %v2657, 1.442695
        %v2717 = vpow.pop %v2716
        %v2718 = vmul.f32 %v2658, 1.442695
        %v2719 = vpow.pop %v2718
        %v2720 = vmul.f32 %v2659, 1.442695
        %v2721 = vpow.pop %v2720
        %v2722 = vmul.f32 %v2660, 1.442695
        %v2723 = vpow.pop %v2722
        %v2724 = vmul.f32 %v2661, 1.442695
        %v2725 = vpow.pop %v2724
        %v2726 = vadd.f32 %v2663, 1.0
        %v2727 = vadd.f32 %v2665, 1.0
        %v2728 = vadd.f32 %v2667, 1.0
        %v2729 = vadd.f32 %v2669, 1.0
        %v2730 = vadd.f32 %v2671, 1.0
        %v2731 = vadd.f32 %v2673, 1.0
        %v2732 = vadd.f32 %v2675, 1.0
        %v2733 = vadd.f32 %v2677, 1.0
        %v2734 = vadd.f32 %v2679, 1.0
        %v2735 = vadd.f32 %v2681, 1.0
        %v2736 = vadd.f32 %v2683, 1.0
        %v2737 = vadd.f32 %v2685, 1.0
        %v2738 = vadd.f32 %v2687, 1.0
        %v2739 = vadd.f32 %v2689, 1.0
        %v2740 = vadd.f32 %v2691, 1.0
        %v2741 = vadd.f32 %v2693, 1.0
        %v2742 = vadd.f32 %v2695, 1.0
        %v2743 = vadd.f32 %v2697, 1.0
        %v2744 = vadd.f32 %v2699, 1.0
        %v2745 = vadd.f32 %v2701, 1.0
        %v2746 = vadd.f32 %v2703, 1.0
        %v2747 = vadd.f32 %v2705, 1.0
        %v2748 = vadd.f32 %v2707, 1.0
        %v2749 = vadd.f32 %v2709, 1.0
        %v2750 = vadd.f32 %v2711, 1.0
        %v2751 = vadd.f32 %v2713, 1.0
        %v2752 = vadd.f32 %v2715, 1.0
        %v2753 = vadd.f32 %v2717, 1.0
        %v2754 = vadd.f32 %v2719, 1.0
        %v2755 = vadd.f32 %v2721, 1.0
        %v2756 = vadd.f32 %v2723, 1.0
        %v2757 = vadd.f32 %v2725, 1.0
        %v2758 = vrcp.pop %v2726
        %v2759 = vmul.f32 1.0, %v2758
        %v2760 = vrcp.pop %v2727
        %v2761 = vmul.f32 1.0, %v2760
        %v2762 = vrcp.pop %v2728
        %v2763 = vmul.f32 1.0, %v2762
        %v2764 = vrcp.pop %v2729
        %v2765 = vmul.f32 1.0, %v2764
        %v2766 = vrcp.pop %v2730
        %v2767 = vmul.f32 1.0, %v2766
        %v2768 = vrcp.pop %v2731
        %v2769 = vmul.f32 1.0, %v2768
        %v2770 = vrcp.pop %v2732
        %v2771 = vmul.f32 1.0, %v2770
        %v2772 = vrcp.pop %v2733
        %v2773 = vmul.f32 1.0, %v2772
        %v2774 = vrcp.pop %v2734
        %v2775 = vmul.f32 1.0, %v2774
        %v2776 = vrcp.pop %v2735
        %v2777 = vmul.f32 1.0, %v2776
        %v2778 = vrcp.pop %v2736
        %v2779 = vmul.f32 1.0, %v2778
        %v2780 = vrcp.pop %v2737
        %v2781 = vmul.f32 1.0, %v2780
        %v2782 = vrcp.pop %v2738
        %v2783 = vmul.f32 1.0, %v2782
        %v2784 = vrcp.pop %v2739
        %v2785 = vmul.f32 1.0, %v2784
        %v2786 = vrcp.pop %v2740
        %v2787 = vmul.f32 1.0, %v2786
        %v2788 = vrcp.pop %v2741
        %v2789 = vmul.f32 1.0, %v2788
        %v2790 = vrcp.pop %v2742
        %v2791 = vmul.f32 1.0, %v2790
        %v2792 = vrcp.pop %v2743
        %v2793 = vmul.f32 1.0, %v2792
        %v2794 = vrcp.pop %v2744
        %v2795 = vmul.f32 1.0, %v2794
        %v2796 = vrcp.pop %v2745
        %v2797 = vmul.f32 1.0, %v2796
        %v2798 = vrcp.pop %v2746
        %v2799 = vmul.f32 1.0, %v2798
        %v2800 = vrcp.pop %v2747
        %v2801 = vmul.f32 1.0, %v2800
        %v2802 = vrcp.pop %v2748
        %v2803 = vmul.f32 1.0, %v2802
        %v2804 = vrcp.pop %v2749
        %v2805 = vmul.f32 1.0, %v2804
        %v2806 = vrcp.pop %v2750
        %v2807 = vmul.f32 1.0, %v2806
        %v2808 = vrcp.pop %v2751
        %v2809 = vmul.f32 1.0, %v2808
        %v2810 = vrcp.pop %v2752
        %v2811 = vmul.f32 1.0, %v2810
        %v2812 = vrcp.pop %v2753
        %v2813 = vmul.f32 1.0, %v2812
        %v2814 = vrcp.pop %v2754
        %v2815 = vmul.f32 1.0, %v2814
        %v2816 = vrcp.pop %v2755
        %v2817 = vmul.f32 1.0, %v2816
        %v2818 = vrcp.pop %v2756
        %v2819 = vmul.f32 1.0, %v2818
        %v2820 = vrcp.pop %v2757
        %v2821 = vmul.f32 1.0, %v2820
        %v2822 = vmul.f32 %v2054, %v2759
        %v2823 = vmul.f32 %v2055, %v2761
        %v2824 = vmul.f32 %v2056, %v2763
        %v2825 = vmul.f32 %v2057, %v2765
        %v2826 = vmul.f32 %v2058, %v2767
        %v2827 = vmul.f32 %v2059, %v2769
        %v2828 = vmul.f32 %v2060, %v2771
        %v2829 = vmul.f32 %v2061, %v2773
        %v2830 = vmul.f32 %v2062, %v2775
        %v2831 = vmul.f32 %v2063, %v2777
        %v2832 = vmul.f32 %v2064, %v2779
        %v2833 = vmul.f32 %v2065, %v2781
        %v2834 = vmul.f32 %v2066, %v2783
        %v2835 = vmul.f32 %v2067, %v2785
        %v2836 = vmul.f32 %v2068, %v2787
        %v2837 = vmul.f32 %v2069, %v2789
        %v2838 = vmul.f32 %v2070, %v2791
        %v2839 = vmul.f32 %v2071, %v2793
        %v2840 = vmul.f32 %v2072, %v2795
        %v2841 = vmul.f32 %v2073, %v2797
        %v2842 = vmul.f32 %v2074, %v2799
        %v2843 = vmul.f32 %v2075, %v2801
        %v2844 = vmul.f32 %v2076, %v2803
        %v2845 = vmul.f32 %v2077, %v2805
        %v2846 = vmul.f32 %v2078, %v2807
        %v2847 = vmul.f32 %v2079, %v2809
        %v2848 = vmul.f32 %v2080, %v2811
        %v2849 = vmul.f32 %v2081, %v2813
        %v2850 = vmul.f32 %v2082, %v2815
        %v2851 = vmul.f32 %v2083, %v2817
        %v2852 = vmul.f32 %v2084, %v2819
        %v2853 = vmul.f32 %v2085, %v2821
        %2886 = vrot.lane.b32.xlu0 %v2759, 112
        %v2887 = vpop.permute.xlu0 %2886
        %2888 = vrot.lane.b32.xlu0 %v2761, 112
        %v2889 = vpop.permute.xlu0 %2888
        %2890 = vrot.lane.b32.xlu0 %v2763, 112
        %v2891 = vpop.permute.xlu0 %2890
        %2892 = vrot.lane.b32.xlu0 %v2765, 112
        %v2893 = vpop.permute.xlu0 %2892
        %2894 = vrot.lane.b32.xlu0 %v2767, 112
        %v2895 = vpop.permute.xlu0 %2894
        %2896 = vrot.lane.b32.xlu0 %v2769, 112
        %v2897 = vpop.permute.xlu0 %2896
        %2898 = vrot.lane.b32.xlu0 %v2771, 112
        %v2899 = vpop.permute.xlu0 %2898
        %2900 = vrot.lane.b32.xlu0 %v2773, 112
        %v2901 = vpop.permute.xlu0 %2900
        %2902 = vrot.lane.b32.xlu0 %v2775, 112
        %v2903 = vpop.permute.xlu0 %2902
        %2904 = vrot.lane.b32.xlu0 %v2777, 112
        %v2905 = vpop.permute.xlu0 %2904
        %2906 = vrot.lane.b32.xlu0 %v2779, 112
        %v2907 = vpop.permute.xlu0 %2906
        %2908 = vrot.lane.b32.xlu0 %v2781, 112
        %v2909 = vpop.permute.xlu0 %2908
        %2910 = vrot.lane.b32.xlu0 %v2783, 112
        %v2911 = vpop.permute.xlu0 %2910
        %2912 = vrot.lane.b32.xlu0 %v2785, 112
        %v2913 = vpop.permute.xlu0 %2912
        %2914 = vrot.lane.b32.xlu0 %v2787, 112
        %v2915 = vpop.permute.xlu0 %2914
        %2916 = vrot.lane.b32.xlu0 %v2789, 112
        %v2917 = vpop.permute.xlu0 %2916
        %2918 = vrot.lane.b32.xlu0 %v2791, 112
        %v2919 = vpop.permute.xlu0 %2918
        %2920 = vrot.lane.b32.xlu0 %v2793, 112
        %v2921 = vpop.permute.xlu0 %2920
        %2922 = vrot.lane.b32.xlu0 %v2795, 112
        %v2923 = vpop.permute.xlu0 %2922
        %2924 = vrot.lane.b32.xlu0 %v2797, 112
        %v2925 = vpop.permute.xlu0 %2924
        %2926 = vrot.lane.b32.xlu0 %v2799, 112
        %v2927 = vpop.permute.xlu0 %2926
        %2928 = vrot.lane.b32.xlu0 %v2801, 112
        %v2929 = vpop.permute.xlu0 %2928
        %2930 = vrot.lane.b32.xlu0 %v2803, 112
        %v2931 = vpop.permute.xlu0 %2930
        %2932 = vrot.lane.b32.xlu0 %v2805, 112
        %v2933 = vpop.permute.xlu0 %2932
        %2934 = vrot.lane.b32.xlu0 %v2807, 112
        %v2935 = vpop.permute.xlu0 %2934
        %2936 = vrot.lane.b32.xlu0 %v2809, 112
        %v2937 = vpop.permute.xlu0 %2936
        %2938 = vrot.lane.b32.xlu0 %v2811, 112
        %v2939 = vpop.permute.xlu0 %2938
        %2940 = vrot.lane.b32.xlu0 %v2813, 112
        %v2941 = vpop.permute.xlu0 %2940
        %2942 = vrot.lane.b32.xlu0 %v2815, 112
        %v2943 = vpop.permute.xlu0 %2942
        %2944 = vrot.lane.b32.xlu0 %v2817, 112
        %v2945 = vpop.permute.xlu0 %2944
        %2946 = vrot.lane.b32.xlu0 %v2819, 112
        %v2947 = vpop.permute.xlu0 %2946
        %2948 = vrot.lane.b32.xlu0 %v2821, 112
        %v2949 = vpop.permute.xlu0 %2948
        %v2982 = vmul.f32 %v2022, %v2887
        %v2983 = vmul.f32 %v2023, %v2889
        %v2984 = vmul.f32 %v2024, %v2891
        %v2985 = vmul.f32 %v2025, %v2893
        %v2986 = vmul.f32 %v2026, %v2895
        %v2987 = vmul.f32 %v2027, %v2897
        %v2988 = vmul.f32 %v2028, %v2899
        %v2989 = vmul.f32 %v2029, %v2901
        %v2990 = vmul.f32 %v2030, %v2903
        %v2991 = vmul.f32 %v2031, %v2905
        %v2992 = vmul.f32 %v2032, %v2907
        %v2993 = vmul.f32 %v2033, %v2909
        %v2994 = vmul.f32 %v2034, %v2911
        %v2995 = vmul.f32 %v2035, %v2913
        %v2996 = vmul.f32 %v2036, %v2915
        %v2997 = vmul.f32 %v2037, %v2917
        %v2998 = vmul.f32 %v2038, %v2919
        %v2999 = vmul.f32 %v2039, %v2921
        %v3000 = vmul.f32 %v2040, %v2923
        %v3001 = vmul.f32 %v2041, %v2925
        %v3002 = vmul.f32 %v2042, %v2927
        %v3003 = vmul.f32 %v2043, %v2929
        %v3004 = vmul.f32 %v2044, %v2931
        %v3005 = vmul.f32 %v2045, %v2933
        %v3006 = vmul.f32 %v2046, %v2935
        %v3007 = vmul.f32 %v2047, %v2937
        %v3008 = vmul.f32 %v2048, %v2939
        %v3009 = vmul.f32 %v2049, %v2941
        %v3010 = vmul.f32 %v2050, %v2943
        %v3011 = vmul.f32 %v2051, %v2945
        %v3012 = vmul.f32 %v2052, %v2947
        %v3013 = vmul.f32 %v2053, %v2949
        %v3014 = vsel %vm1400, %v2822, 0.0
        %v3015 = vsel %vm1400, %v2823, 0.0
        %v3016 = vadd.f32 %v3014, %v3015
        %v3017 = vsel %vm1400, %v2824, 0.0
        %v3018 = vadd.f32 %v3016, %v3017
        %v3019 = vsel %vm1400, %v2825, 0.0
        %v3020 = vadd.f32 %v3018, %v3019
        %v3021 = vsel %vm1400, %v2826, 0.0
        %v3022 = vadd.f32 %v3020, %v3021
        %v3023 = vsel %vm1400, %v2827, 0.0
        %v3024 = vadd.f32 %v3022, %v3023
        %v3025 = vsel %vm1400, %v2828, 0.0
        %v3026 = vadd.f32 %v3024, %v3025
        %v3027 = vsel %vm1400, %v2829, 0.0
        %v3028 = vadd.f32 %v3026, %v3027
        %v3029 = vsel %vm1400, %v2830, 0.0
        %v3030 = vadd.f32 %v3028, %v3029
        %v3031 = vsel %vm1400, %v2831, 0.0
        %v3032 = vadd.f32 %v3030, %v3031
        %v3033 = vsel %vm1400, %v2832, 0.0
        %v3034 = vadd.f32 %v3032, %v3033
        %v3035 = vsel %vm1400, %v2833, 0.0
        %v3036 = vadd.f32 %v3034, %v3035
        %v3037 = vsel %vm1400, %v2834, 0.0
        %v3038 = vadd.f32 %v3036, %v3037
        %v3039 = vsel %vm1400, %v2835, 0.0
        %v3040 = vadd.f32 %v3038, %v3039
        %v3041 = vsel %vm1400, %v2836, 0.0
        %v3042 = vadd.f32 %v3040, %v3041
        %v3043 = vsel %vm1400, %v2837, 0.0
        %v3044 = vadd.f32 %v3042, %v3043
        %v3045 = vsel %vm1400, %v2838, 0.0
        %v3046 = vadd.f32 %v3044, %v3045
        %v3047 = vsel %vm1400, %v2839, 0.0
        %v3048 = vadd.f32 %v3046, %v3047
        %v3049 = vsel %vm1400, %v2840, 0.0
        %v3050 = vadd.f32 %v3048, %v3049
        %v3051 = vsel %vm1400, %v2841, 0.0
        %v3052 = vadd.f32 %v3050, %v3051
        %v3053 = vsel %vm1400, %v2842, 0.0
        %v3054 = vadd.f32 %v3052, %v3053
        %v3055 = vsel %vm1400, %v2843, 0.0
        %v3056 = vadd.f32 %v3054, %v3055
        %v3057 = vsel %vm1400, %v2844, 0.0
        %v3058 = vadd.f32 %v3056, %v3057
        %v3059 = vsel %vm1400, %v2845, 0.0
        %v3060 = vadd.f32 %v3058, %v3059
        %v3061 = vsel %vm1400, %v2846, 0.0
        %v3062 = vadd.f32 %v3060, %v3061
        %v3063 = vsel %vm1400, %v2847, 0.0
        %v3064 = vadd.f32 %v3062, %v3063
        %v3065 = vsel %vm1400, %v2848, 0.0
        %v3066 = vadd.f32 %v3064, %v3065
        %v3067 = vsel %vm1400, %v2849, 0.0
        %v3068 = vadd.f32 %v3066, %v3067
        %v3069 = vsel %vm1400, %v2850, 0.0
        %v3070 = vadd.f32 %v3068, %v3069
        %v3071 = vsel %vm1400, %v2851, 0.0
        %v3072 = vadd.f32 %v3070, %v3071
        %v3073 = vsel %vm1400, %v2852, 0.0
        %v3074 = vadd.f32 %v3072, %v3073
        %v3075 = vsel %vm1400, %v2853, 0.0
        %v3076 = vadd.f32 %v3074, %v3075
        %v3077 = vrot.slane %v3076, 4
        %v3078 = vadd.f32 %v3076, %v3077
        %v3079 = vrot.slane %v3078, 2
        %v3080 = vadd.f32 %v3078, %v3079
        %v3081 = vrot.slane %v3080, 1
        %v3082 = vadd.f32 %v3080, %v3081
        %v3083 = vrcp.pop 256.0
        %v3084 = vmul.f32 %v3082, %v3083
        %v3085 = vsel %vm1400, %v2982, 0.0
        %v3086 = vsel %vm1400, %v2983, 0.0
        %v3087 = vadd.f32 %v3085, %v3086
        %v3088 = vsel %vm1400, %v2984, 0.0
        %v3089 = vadd.f32 %v3087, %v3088
        %v3090 = vsel %vm1400, %v2985, 0.0
        %v3091 = vadd.f32 %v3089, %v3090
        %v3092 = vsel %vm1400, %v2986, 0.0
        %v3093 = vadd.f32 %v3091, %v3092
        %v3094 = vsel %vm1400, %v2987, 0.0
        %v3095 = vadd.f32 %v3093, %v3094
        %v3096 = vsel %vm1400, %v2988, 0.0
        %v3097 = vadd.f32 %v3095, %v3096
        %v3098 = vsel %vm1400, %v2989, 0.0
        %v3099 = vadd.f32 %v3097, %v3098
        %v3100 = vsel %vm1400, %v2990, 0.0
        %v3101 = vadd.f32 %v3099, %v3100
        %v3102 = vsel %vm1400, %v2991, 0.0
        %v3103 = vadd.f32 %v3101, %v3102
        %v3104 = vsel %vm1400, %v2992, 0.0
        %v3105 = vadd.f32 %v3103, %v3104
        %v3106 = vsel %vm1400, %v2993, 0.0
        %v3107 = vadd.f32 %v3105, %v3106
        %v3108 = vsel %vm1400, %v2994, 0.0
        %v3109 = vadd.f32 %v3107, %v3108
        %v3110 = vsel %vm1400, %v2995, 0.0
        %v3111 = vadd.f32 %v3109, %v3110
        %v3112 = vsel %vm1400, %v2996, 0.0
        %v3113 = vadd.f32 %v3111, %v3112
        %v3114 = vsel %vm1400, %v2997, 0.0
        %v3115 = vadd.f32 %v3113, %v3114
        %v3116 = vsel %vm1400, %v2998, 0.0
        %v3117 = vadd.f32 %v3115, %v3116
        %v3118 = vsel %vm1400, %v2999, 0.0
        %v3119 = vadd.f32 %v3117, %v3118
        %v3120 = vsel %vm1400, %v3000, 0.0
        %v3121 = vadd.f32 %v3119, %v3120
        %v3122 = vsel %vm1400, %v3001, 0.0
        %v3123 = vadd.f32 %v3121, %v3122
        %v3124 = vsel %vm1400, %v3002, 0.0
        %v3125 = vadd.f32 %v3123, %v3124
        %v3126 = vsel %vm1400, %v3003, 0.0
        %v3127 = vadd.f32 %v3125, %v3126
        %v3128 = vsel %vm1400, %v3004, 0.0
        %v3129 = vadd.f32 %v3127, %v3128
        %v3130 = vsel %vm1400, %v3005, 0.0
        %v3131 = vadd.f32 %v3129, %v3130
        %v3132 = vsel %vm1400, %v3006, 0.0
        %v3133 = vadd.f32 %v3131, %v3132
        %v3134 = vsel %vm1400, %v3007, 0.0
        %v3135 = vadd.f32 %v3133, %v3134
        %v3136 = vsel %vm1400, %v3008, 0.0
        %v3137 = vadd.f32 %v3135, %v3136
        %v3138 = vsel %vm1400, %v3009, 0.0
        %v3139 = vadd.f32 %v3137, %v3138
        %v3140 = vsel %vm1400, %v3010, 0.0
        %v3141 = vadd.f32 %v3139, %v3140
        %v3142 = vsel %vm1400, %v3011, 0.0
        %v3143 = vadd.f32 %v3141, %v3142
        %v3144 = vsel %vm1400, %v3012, 0.0
        %v3145 = vadd.f32 %v3143, %v3144
        %v3146 = vsel %vm1400, %v3013, 0.0
        %v3147 = vadd.f32 %v3145, %v3146
        %v3148 = vrot.slane %v3147, 4
        %v3149 = vadd.f32 %v3147, %v3148
        %v3150 = vrot.slane %v3149, 2
        %v3151 = vadd.f32 %v3149, %v3150
        %v3152 = vrot.slane %v3151, 1
        %v3153 = vadd.f32 %v3151, %v3152
        %v3154 = vmul.f32 %v3153, %v3083
        %3156 = vrot.lane.b32.xlu0 %v3154, 16
        %v3157 = vpop.permute.xlu0 %3156
        %v3159 = vsel %vm1400, %v3084, %v3157
        %v3160 = vld [vmem:[%s9] sm:$0xff]
        %v3161 = vld [vmem:[%s9 + $0x8] sm:$0xff]
        %v3162 = vld [vmem:[%s9 + $0x10] sm:$0xff]
        %v3163 = vld [vmem:[%s9 + $0x18] sm:$0xff]
        %v3165 = vsel %vm1433, %v3159, 0
        %3167 = vmatprep.subr.mxu0 0.0
        %3168 = vmatpush1.msra.mxu0 %v3160
        %3169 = vmatprep.subr.mxu0 0.0
        %3170 = vmatpush1.msra.mxu0 %v3161
        %3171 = vmatprep.subr.mxu0 0.0
        %3172 = vmatpush1.msra.mxu0 %v3162
        %3173 = vmatprep.subr.mxu0 0.0
        %3174 = vmatpush1.msra.mxu0 %v3163
        %3175 = vmatprep.subr.mxu0 0.0
        %3176 = vmatpush1.msra.mxu0 0.0
        %3177 = vmatprep.subr.mxu0 0.0
        %3178 = vmatpush1.msra.mxu0 0.0
        %3179 = vmatprep.subr.mxu0 0.0
        %3180 = vmatpush1.msra.mxu0 0.0
        %3181 = vmatprep.subr.mxu0 0.0
        %3182 = vmatpush1.msra.mxu0 0.0
        %3183 = vmatprep.subr.mxu0 0.0
        %3184 = vmatpush1.msra.mxu0 0.0
        %3185 = vmatprep.subr.mxu0 0.0
        %3186 = vmatpush1.msra.mxu0 0.0
        %3187 = vmatprep.subr.mxu0 0.0
        %3188 = vmatpush1.msra.mxu0 0.0
        %3189 = vmatprep.subr.mxu0 0.0
        %3190 = vmatpush1.msra.mxu0 0.0
        %3191 = vmatprep.subr.mxu0 0.0
        %3192 = vmatpush1.msra.mxu0 0.0
        %3193 = vmatprep.subr.mxu0 0.0
        %3194 = vmatpush1.msra.mxu0 0.0
        %3195 = vmatprep.subr.mxu0 0.0
        %3196 = vmatpush1.msra.mxu0 0.0
        %3197 = vmatprep.subr.mxu0 0.0
        %3198 = vmatpush1.msra.mxu0 0.0
        %3199 = vmatprep.subr.mxu0 0.0
        %3200 = vmatpush1.msra.mxu0 0.0
        %3201 = vmatprep.subr.mxu0 0.0
        %3202 = vmatpush1.msra.mxu0 0.0
        %3203 = vmatprep.subr.mxu0 0.0
        %3204 = vmatpush1.msra.mxu0 0.0
        %3205 = vmatprep.subr.mxu0 0.0
        %3206 = vmatpush1.msra.mxu0 0.0
        %3207 = vmatprep.subr.mxu0 0.0
        %3208 = vmatpush1.msra.mxu0 0.0
        %3209 = vmatprep.subr.mxu0 0.0
        %3210 = vmatpush1.msra.mxu0 0.0
        %3211 = vmatprep.subr.mxu0 0.0
        %3212 = vmatpush1.msra.mxu0 0.0
        %3213 = vmatprep.subr.mxu0 0.0
        %3214 = vmatpush1.msra.mxu0 0.0
        %3215 = vmatprep.subr.mxu0 0.0
        %3216 = vmatpush1.msra.mxu0 0.0
        %3217 = vmatprep.subr.mxu0 0.0
        %3218 = vmatpush1.msra.mxu0 0.0
        %3219 = vmatprep.subr.mxu0 0.0
        %3220 = vmatpush1.msra.mxu0 0.0
        %3221 = vmatprep.subr.mxu0 0.0
        %3222 = vmatpush1.msra.mxu0 0.0
        %3223 = vmatprep.subr.mxu0 0.0
        %3224 = vmatpush1.msra.mxu0 0.0
        %3225 = vmatprep.subr.mxu0 0.0
        %3226 = vmatpush1.msra.mxu0 0.0
        %3227 = vmatprep.subr.mxu0 0.0
        %3228 = vmatpush1.msra.mxu0 0.0
        %3229 = vmatprep.subr.mxu0 0.0
        %3230 = vmatpush1.msra.mxu0 0.0
        %3231 = vmatprep.mubr.f32.mxu0 0.0
        %3232 = vmatmul.mubr.f32.gmra.mrb[0].mxu0 %v3165
        %v3233 = vpop.f32.mrb[0].mxu0
        %v3234 = vadd.f32 0.0, %v3233
        %v3235 = vpop.f32.mrb[0].mxu0
        %3236 = vdwg.mxu0
        %v3237 = vmax.f32 %v3234, 0.0
        %v3238 = vld [vmem:[%s10] sm:$0x3]
        %vm3239 = vcmask 15360
        %v3241 = vsel %vm3239, %v3237, 0
        %vm3243 = vcmask 1041408
        %v3245 = vsel %vm3243, %v3238, 0
        %3247 = vmatprep.subr.mxu0 0.0
        %3248 = vmatpush1.msra.mxu0 %v3245
        %3249 = vmatprep.subr.mxu0 0.0
        %3250 = vmatpush1.msra.mxu0 0.0
        %3251 = vmatprep.subr.mxu0 0.0
        %3252 = vmatpush1.msra.mxu0 0.0
        %3253 = vmatprep.subr.mxu0 0.0
        %3254 = vmatpush1.msra.mxu0 0.0
        %3255 = vmatprep.subr.mxu0 0.0
        %3256 = vmatpush1.msra.mxu0 0.0
        %3257 = vmatprep.subr.mxu0 0.0
        %3258 = vmatpush1.msra.mxu0 0.0
        %3259 = vmatprep.subr.mxu0 0.0
        %3260 = vmatpush1.msra.mxu0 0.0
        %3261 = vmatprep.subr.mxu0 0.0
        %3262 = vmatpush1.msra.mxu0 0.0
        %3263 = vmatprep.subr.mxu0 0.0
        %3264 = vmatpush1.msra.mxu0 0.0
        %3265 = vmatprep.subr.mxu0 0.0
        %3266 = vmatpush1.msra.mxu0 0.0
        %3267 = vmatprep.subr.mxu0 0.0
        %3268 = vmatpush1.msra.mxu0 0.0
        %3269 = vmatprep.subr.mxu0 0.0
        %3270 = vmatpush1.msra.mxu0 0.0
        %3271 = vmatprep.subr.mxu0 0.0
        %3272 = vmatpush1.msra.mxu0 0.0
        %3273 = vmatprep.subr.mxu0 0.0
        %3274 = vmatpush1.msra.mxu0 0.0
        %3275 = vmatprep.subr.mxu0 0.0
        %3276 = vmatpush1.msra.mxu0 0.0
        %3277 = vmatprep.subr.mxu0 0.0
        %3278 = vmatpush1.msra.mxu0 0.0
        %3279 = vmatprep.subr.mxu0 0.0
        %3280 = vmatpush1.msra.mxu0 0.0
        %3281 = vmatprep.subr.mxu0 0.0
        %3282 = vmatpush1.msra.mxu0 0.0
        %3283 = vmatprep.subr.mxu0 0.0
        %3284 = vmatpush1.msra.mxu0 0.0
        %3285 = vmatprep.subr.mxu0 0.0
        %3286 = vmatpush1.msra.mxu0 0.0
        %3287 = vmatprep.subr.mxu0 0.0
        %3288 = vmatpush1.msra.mxu0 0.0
        %3289 = vmatprep.subr.mxu0 0.0
        %3290 = vmatpush1.msra.mxu0 0.0
        %3291 = vmatprep.subr.mxu0 0.0
        %3292 = vmatpush1.msra.mxu0 0.0
        %3293 = vmatprep.subr.mxu0 0.0
        %3294 = vmatpush1.msra.mxu0 0.0
        %3295 = vmatprep.subr.mxu0 0.0
        %3296 = vmatpush1.msra.mxu0 0.0
        %3297 = vmatprep.subr.mxu0 0.0
        %3298 = vmatpush1.msra.mxu0 0.0
        %3299 = vmatprep.subr.mxu0 0.0
        %3300 = vmatpush1.msra.mxu0 0.0
        %3301 = vmatprep.subr.mxu0 0.0
        %3302 = vmatpush1.msra.mxu0 0.0
        %3303 = vmatprep.subr.mxu0 0.0
        %3304 = vmatpush1.msra.mxu0 0.0
        %3305 = vmatprep.subr.mxu0 0.0
        %3306 = vmatpush1.msra.mxu0 0.0
        %3307 = vmatprep.subr.mxu0 0.0
        %3308 = vmatpush1.msra.mxu0 0.0
        %3309 = vmatprep.subr.mxu0 0.0
        %3310 = vmatpush1.msra.mxu0 0.0
        %3311 = vmatprep.mubr.f32.mxu0 0.0
        %3312 = vmatmul.mubr.f32.gmra.mrb[0].mxu0 %v3241
        %v3313 = vpop.f32.mrb[0].mxu0
        %v3314 = vadd.f32 0.0, %v3313
        %v3315 = vpop.f32.mrb[0].mxu0
        %3316 = vdwg.mxu0
        %v3317 = vxor.u32 %v3314, 2147483648
        %v3318 = vmul.f32 %v3317, 1.442695
        %v3319 = vpow.pop %v3318
        %v3320 = vadd.f32 %v3319, 1.0
        %v3321 = vrcp.pop %v3320
        %v3322 = vmul.f32 1.0, %v3321
        %v3323 = vlaneseq
        %v3324 = vshrl.u32 %v3323, 7
        %v3325 = vsub.s32 0, %v3324
        %v3326 = vrot.slane %v3322, %v3325
        %v3327 = vmul.f32 %v2822, %v3326
        %v3328 = vmul.f32 %v2823, %v3326
        %v3329 = vmul.f32 %v2824, %v3326
        %v3330 = vmul.f32 %v2825, %v3326
        %v3331 = vmul.f32 %v2826, %v3326
        %v3332 = vmul.f32 %v2827, %v3326
        %v3333 = vmul.f32 %v2828, %v3326
        %v3334 = vmul.f32 %v2829, %v3326
        %v3335 = vmul.f32 %v2830, %v3326
        %v3336 = vmul.f32 %v2831, %v3326
        %v3337 = vmul.f32 %v2832, %v3326
        %v3338 = vmul.f32 %v2833, %v3326
        %v3339 = vmul.f32 %v2834, %v3326
        %v3340 = vmul.f32 %v2835, %v3326
        %v3341 = vmul.f32 %v2836, %v3326
        %v3342 = vmul.f32 %v2837, %v3326
        %v3343 = vmul.f32 %v2838, %v3326
        %v3344 = vmul.f32 %v2839, %v3326
        %v3345 = vmul.f32 %v2840, %v3326
        %v3346 = vmul.f32 %v2841, %v3326
        %v3347 = vmul.f32 %v2842, %v3326
        %v3348 = vmul.f32 %v2843, %v3326
        %v3349 = vmul.f32 %v2844, %v3326
        %v3350 = vmul.f32 %v2845, %v3326
        %v3351 = vmul.f32 %v2846, %v3326
        %v3352 = vmul.f32 %v2847, %v3326
        %v3353 = vmul.f32 %v2848, %v3326
        %v3354 = vmul.f32 %v2849, %v3326
        %v3355 = vmul.f32 %v2850, %v3326
        %v3356 = vmul.f32 %v2851, %v3326
        %v3357 = vmul.f32 %v2852, %v3326
        %v3358 = vmul.f32 %v2853, %v3326
        %3360 = vrot.lane.b32.xlu0 %v3326, 112
        %v3361 = vpop.permute.xlu0 %3360
        %v3363 = vmul.f32 %v2982, %v3361
        %v3364 = vmul.f32 %v2983, %v3361
        %v3365 = vmul.f32 %v2984, %v3361
        %v3366 = vmul.f32 %v2985, %v3361
        %v3367 = vmul.f32 %v2986, %v3361
        %v3368 = vmul.f32 %v2987, %v3361
        %v3369 = vmul.f32 %v2988, %v3361
        %v3370 = vmul.f32 %v2989, %v3361
        %v3371 = vmul.f32 %v2990, %v3361
        %v3372 = vmul.f32 %v2991, %v3361
        %v3373 = vmul.f32 %v2992, %v3361
        %v3374 = vmul.f32 %v2993, %v3361
        %v3375 = vmul.f32 %v2994, %v3361
        %v3376 = vmul.f32 %v2995, %v3361
        %v3377 = vmul.f32 %v2996, %v3361
        %v3378 = vmul.f32 %v2997, %v3361
        %v3379 = vmul.f32 %v2998, %v3361
        %v3380 = vmul.f32 %v2999, %v3361
        %v3381 = vmul.f32 %v3000, %v3361
        %v3382 = vmul.f32 %v3001, %v3361
        %v3383 = vmul.f32 %v3002, %v3361
        %v3384 = vmul.f32 %v3003, %v3361
        %v3385 = vmul.f32 %v3004, %v3361
        %v3386 = vmul.f32 %v3005, %v3361
        %v3387 = vmul.f32 %v3006, %v3361
        %v3388 = vmul.f32 %v3007, %v3361
        %v3389 = vmul.f32 %v3008, %v3361
        %v3390 = vmul.f32 %v3009, %v3361
        %v3391 = vmul.f32 %v3010, %v3361
        %v3392 = vmul.f32 %v3011, %v3361
        %v3393 = vmul.f32 %v3012, %v3361
        %v3394 = vmul.f32 %v3013, %v3361
        %3427 = vrot.lane.b32.xlu0 %v3363, 16
        %v3428 = vpop.permute.xlu0 %3427
        %3429 = vrot.lane.b32.xlu0 %v3364, 16
        %v3430 = vpop.permute.xlu0 %3429
        %3431 = vrot.lane.b32.xlu0 %v3365, 16
        %v3432 = vpop.permute.xlu0 %3431
        %3433 = vrot.lane.b32.xlu0 %v3366, 16
        %v3434 = vpop.permute.xlu0 %3433
        %3435 = vrot.lane.b32.xlu0 %v3367, 16
        %v3436 = vpop.permute.xlu0 %3435
        %3437 = vrot.lane.b32.xlu0 %v3368, 16
        %v3438 = vpop.permute.xlu0 %3437
        %3439 = vrot.lane.b32.xlu0 %v3369, 16
        %v3440 = vpop.permute.xlu0 %3439
        %3441 = vrot.lane.b32.xlu0 %v3370, 16
        %v3442 = vpop.permute.xlu0 %3441
        %3443 = vrot.lane.b32.xlu0 %v3371, 16
        %v3444 = vpop.permute.xlu0 %3443
        %3445 = vrot.lane.b32.xlu0 %v3372, 16
        %v3446 = vpop.permute.xlu0 %3445
        %3447 = vrot.lane.b32.xlu0 %v3373, 16
        %v3448 = vpop.permute.xlu0 %3447
        %3449 = vrot.lane.b32.xlu0 %v3374, 16
        %v3450 = vpop.permute.xlu0 %3449
        %3451 = vrot.lane.b32.xlu0 %v3375, 16
        %v3452 = vpop.permute.xlu0 %3451
        %3453 = vrot.lane.b32.xlu0 %v3376, 16
        %v3454 = vpop.permute.xlu0 %3453
        %3455 = vrot.lane.b32.xlu0 %v3377, 16
        %v3456 = vpop.permute.xlu0 %3455
        %3457 = vrot.lane.b32.xlu0 %v3378, 16
        %v3458 = vpop.permute.xlu0 %3457
        %3459 = vrot.lane.b32.xlu0 %v3379, 16
        %v3460 = vpop.permute.xlu0 %3459
        %3461 = vrot.lane.b32.xlu0 %v3380, 16
        %v3462 = vpop.permute.xlu0 %3461
        %3463 = vrot.lane.b32.xlu0 %v3381, 16
        %v3464 = vpop.permute.xlu0 %3463
        %3465 = vrot.lane.b32.xlu0 %v3382, 16
        %v3466 = vpop.permute.xlu0 %3465
        %3467 = vrot.lane.b32.xlu0 %v3383, 16
        %v3468 = vpop.permute.xlu0 %3467
        %3469 = vrot.lane.b32.xlu0 %v3384, 16
        %v3470 = vpop.permute.xlu0 %3469
        %3471 = vrot.lane.b32.xlu0 %v3385, 16
        %v3472 = vpop.permute.xlu0 %3471
        %3473 = vrot.lane.b32.xlu0 %v3386, 16
        %v3474 = vpop.permute.xlu0 %3473
        %3475 = vrot.lane.b32.xlu0 %v3387, 16
        %v3476 = vpop.permute.xlu0 %3475
        %3477 = vrot.lane.b32.xlu0 %v3388, 16
        %v3478 = vpop.permute.xlu0 %3477
        %3479 = vrot.lane.b32.xlu0 %v3389, 16
        %v3480 = vpop.permute.xlu0 %3479
        %3481 = vrot.lane.b32.xlu0 %v3390, 16
        %v3482 = vpop.permute.xlu0 %3481
        %3483 = vrot.lane.b32.xlu0 %v3391, 16
        %v3484 = vpop.permute.xlu0 %3483
        %3485 = vrot.lane.b32.xlu0 %v3392, 16
        %v3486 = vpop.permute.xlu0 %3485
        %3487 = vrot.lane.b32.xlu0 %v3393, 16
        %v3488 = vpop.permute.xlu0 %3487
        %3489 = vrot.lane.b32.xlu0 %v3394, 16
        %v3490 = vpop.permute.xlu0 %3489
        %v3523 = vsel %vm1400, %v3327, %v3428
        %v3524 = vsel %vm1400, %v3328, %v3430
        %v3525 = vsel %vm1400, %v3329, %v3432
        %v3526 = vsel %vm1400, %v3330, %v3434
        %v3527 = vsel %vm1400, %v3331, %v3436
        %v3528 = vsel %vm1400, %v3332, %v3438
        %v3529 = vsel %vm1400, %v3333, %v3440
        %v3530 = vsel %vm1400, %v3334, %v3442
        %v3531 = vsel %vm1400, %v3335, %v3444
        %v3532 = vsel %vm1400, %v3336, %v3446
        %v3533 = vsel %vm1400, %v3337, %v3448
        %v3534 = vsel %vm1400, %v3338, %v3450
        %v3535 = vsel %vm1400, %v3339, %v3452
        %v3536 = vsel %vm1400, %v3340, %v3454
        %v3537 = vsel %vm1400, %v3341, %v3456
        %v3538 = vsel %vm1400, %v3342, %v3458
        %v3539 = vsel %vm1400, %v3343, %v3460
        %v3540 = vsel %vm1400, %v3344, %v3462
        %v3541 = vsel %vm1400, %v3345, %v3464
        %v3542 = vsel %vm1400, %v3346, %v3466
        %v3543 = vsel %vm1400, %v3347, %v3468
        %v3544 = vsel %vm1400, %v3348, %v3470
        %v3545 = vsel %vm1400, %v3349, %v3472
        %v3546 = vsel %vm1400, %v3350, %v3474
        %v3547 = vsel %vm1400, %v3351, %v3476
        %v3548 = vsel %vm1400, %v3352, %v3478
        %v3549 = vsel %vm1400, %v3353, %v3480
        %v3550 = vsel %vm1400, %v3354, %v3482
        %v3551 = vsel %vm1400, %v3355, %v3484
        %v3552 = vsel %vm1400, %v3356, %v3486
        %v3553 = vsel %vm1400, %v3357, %v3488
        %v3554 = vsel %vm1400, %v3358, %v3490
        %v3587 = vcombine.high %v3523, %v3523
        %v3588 = vcombine.high %v3524, %v3524
        %v3589 = vcombine.high %v3525, %v3525
        %v3590 = vcombine.high %v3526, %v3526
        %v3591 = vcombine.high %v3527, %v3527
        %v3592 = vcombine.high %v3528, %v3528
        %v3593 = vcombine.high %v3529, %v3529
        %v3594 = vcombine.high %v3530, %v3530
        %v3595 = vcombine.high %v3531, %v3531
        %v3596 = vcombine.high %v3532, %v3532
        %v3597 = vcombine.high %v3533, %v3533
        %v3598 = vcombine.high %v3534, %v3534
        %v3599 = vcombine.high %v3535, %v3535
        %v3600 = vcombine.high %v3536, %v3536
        %v3601 = vcombine.high %v3537, %v3537
        %v3602 = vcombine.high %v3538, %v3538
        %v3603 = vcombine.high %v3539, %v3539
        %v3604 = vcombine.high %v3540, %v3540
        %v3605 = vcombine.high %v3541, %v3541
        %v3606 = vcombine.high %v3542, %v3542
        %v3607 = vcombine.high %v3543, %v3543
        %v3608 = vcombine.high %v3544, %v3544
        %v3609 = vcombine.high %v3545, %v3545
        %v3610 = vcombine.high %v3546, %v3546
        %v3611 = vcombine.high %v3547, %v3547
        %v3612 = vcombine.high %v3548, %v3548
        %v3613 = vcombine.high %v3549, %v3549
        %v3614 = vcombine.high %v3550, %v3550
        %v3615 = vcombine.high %v3551, %v3551
        %v3616 = vcombine.high %v3552, %v3552
        %v3617 = vcombine.high %v3553, %v3553
        %v3618 = vcombine.high %v3554, %v3554
        %v3619 = vlaneseq
        %v3620 = vshrl.u32 %v3619, 7
        %v3621 = vsub.s32 0, %v3620
        %v3622 = vrot.slane %v3523, %v3621
        %v3623 = vlaneseq
        %v3624 = vshrl.u32 %v3623, 7
        %v3625 = vsub.s32 0, %v3624
        %v3626 = vrot.slane %v3587, %v3625
        %v3627 = vlaneseq
        %v3628 = vshrl.u32 %v3627, 7
        %v3629 = vsub.s32 0, %v3628
        %v3630 = vrot.slane %v3524, %v3629
        %v3631 = vlaneseq
        %v3632 = vshrl.u32 %v3631, 7
        %v3633 = vsub.s32 0, %v3632
        %v3634 = vrot.slane %v3588, %v3633
        %v3635 = vlaneseq
        %v3636 = vshrl.u32 %v3635, 7
        %v3637 = vsub.s32 0, %v3636
        %v3638 = vrot.slane %v3525, %v3637
        %v3639 = vlaneseq
        %v3640 = vshrl.u32 %v3639, 7
        %v3641 = vsub.s32 0, %v3640
        %v3642 = vrot.slane %v3589, %v3641
        %v3643 = vlaneseq
        %v3644 = vshrl.u32 %v3643, 7
        %v3645 = vsub.s32 0, %v3644
        %v3646 = vrot.slane %v3526, %v3645
        %v3647 = vlaneseq
        %v3648 = vshrl.u32 %v3647, 7
        %v3649 = vsub.s32 0, %v3648
        %v3650 = vrot.slane %v3590, %v3649
        %v3651 = vlaneseq
        %v3652 = vshrl.u32 %v3651, 7
        %v3653 = vsub.s32 0, %v3652
        %v3654 = vrot.slane %v3527, %v3653
        %v3655 = vlaneseq
        %v3656 = vshrl.u32 %v3655, 7
        %v3657 = vsub.s32 0, %v3656
        %v3658 = vrot.slane %v3591, %v3657
        %v3659 = vlaneseq
        %v3660 = vshrl.u32 %v3659, 7
        %v3661 = vsub.s32 0, %v3660
        %v3662 = vrot.slane %v3528, %v3661
        %v3663 = vlaneseq
        %v3664 = vshrl.u32 %v3663, 7
        %v3665 = vsub.s32 0, %v3664
        %v3666 = vrot.slane %v3592, %v3665
        %v3667 = vlaneseq
        %v3668 = vshrl.u32 %v3667, 7
        %v3669 = vsub.s32 0, %v3668
        %v3670 = vrot.slane %v3529, %v3669
        %v3671 = vlaneseq
        %v3672 = vshrl.u32 %v3671, 7
        %v3673 = vsub.s32 0, %v3672
        %v3674 = vrot.slane %v3593, %v3673
        %v3675 = vlaneseq
        %v3676 = vshrl.u32 %v3675, 7
        %v3677 = vsub.s32 0, %v3676
        %v3678 = vrot.slane %v3530, %v3677
        %v3679 = vlaneseq
        %v3680 = vshrl.u32 %v3679, 7
        %v3681 = vsub.s32 0, %v3680
        %v3682 = vrot.slane %v3594, %v3681
        %v3683 = vlaneseq
        %v3684 = vshrl.u32 %v3683, 7
        %v3685 = vsub.s32 0, %v3684
        %v3686 = vrot.slane %v3531, %v3685
        %v3687 = vlaneseq
        %v3688 = vshrl.u32 %v3687, 7
        %v3689 = vsub.s32 0, %v3688
        %v3690 = vrot.slane %v3595, %v3689
        %v3691 = vlaneseq
        %v3692 = vshrl.u32 %v3691, 7
        %v3693 = vsub.s32 0, %v3692
        %v3694 = vrot.slane %v3532, %v3693
        %v3695 = vlaneseq
        %v3696 = vshrl.u32 %v3695, 7
        %v3697 = vsub.s32 0, %v3696
        %v3698 = vrot.slane %v3596, %v3697
        %v3699 = vlaneseq
        %v3700 = vshrl.u32 %v3699, 7
        %v3701 = vsub.s32 0, %v3700
        %v3702 = vrot.slane %v3533, %v3701
        %v3703 = vlaneseq
        %v3704 = vshrl.u32 %v3703, 7
        %v3705 = vsub.s32 0, %v3704
        %v3706 = vrot.slane %v3597, %v3705
        %v3707 = vlaneseq
        %v3708 = vshrl.u32 %v3707, 7
        %v3709 = vsub.s32 0, %v3708
        %v3710 = vrot.slane %v3534, %v3709
        %v3711 = vlaneseq
        %v3712 = vshrl.u32 %v3711, 7
        %v3713 = vsub.s32 0, %v3712
        %v3714 = vrot.slane %v3598, %v3713
        %v3715 = vlaneseq
        %v3716 = vshrl.u32 %v3715, 7
        %v3717 = vsub.s32 0, %v3716
        %v3718 = vrot.slane %v3535, %v3717
        %v3719 = vlaneseq
        %v3720 = vshrl.u32 %v3719, 7
        %v3721 = vsub.s32 0, %v3720
        %v3722 = vrot.slane %v3599, %v3721
        %v3723 = vlaneseq
        %v3724 = vshrl.u32 %v3723, 7
        %v3725 = vsub.s32 0, %v3724
        %v3726 = vrot.slane %v3536, %v3725
        %v3727 = vlaneseq
        %v3728 = vshrl.u32 %v3727, 7
        %v3729 = vsub.s32 0, %v3728
        %v3730 = vrot.slane %v3600, %v3729
        %v3731 = vlaneseq
        %v3732 = vshrl.u32 %v3731, 7
        %v3733 = vsub.s32 0, %v3732
        %v3734 = vrot.slane %v3537, %v3733
        %v3735 = vlaneseq
        %v3736 = vshrl.u32 %v3735, 7
        %v3737 = vsub.s32 0, %v3736
        %v3738 = vrot.slane %v3601, %v3737
        %v3739 = vlaneseq
        %v3740 = vshrl.u32 %v3739, 7
        %v3741 = vsub.s32 0, %v3740
        %v3742 = vrot.slane %v3538, %v3741
        %v3743 = vlaneseq
        %v3744 = vshrl.u32 %v3743, 7
        %v3745 = vsub.s32 0, %v3744
        %v3746 = vrot.slane %v3602, %v3745
        %v3747 = vlaneseq
        %v3748 = vshrl.u32 %v3747, 7
        %v3749 = vsub.s32 0, %v3748
        %v3750 = vrot.slane %v3539, %v3749
        %v3751 = vlaneseq
        %v3752 = vshrl.u32 %v3751, 7
        %v3753 = vsub.s32 0, %v3752
        %v3754 = vrot.slane %v3603, %v3753
        %v3755 = vlaneseq
        %v3756 = vshrl.u32 %v3755, 7
        %v3757 = vsub.s32 0, %v3756
        %v3758 = vrot.slane %v3540, %v3757
        %v3759 = vlaneseq
        %v3760 = vshrl.u32 %v3759, 7
        %v3761 = vsub.s32 0, %v3760
        %v3762 = vrot.slane %v3604, %v3761
        %v3763 = vlaneseq
        %v3764 = vshrl.u32 %v3763, 7
        %v3765 = vsub.s32 0, %v3764
        %v3766 = vrot.slane %v3541, %v3765
        %v3767 = vlaneseq
        %v3768 = vshrl.u32 %v3767, 7
        %v3769 = vsub.s32 0, %v3768
        %v3770 = vrot.slane %v3605, %v3769
        %v3771 = vlaneseq
        %v3772 = vshrl.u32 %v3771, 7
        %v3773 = vsub.s32 0, %v3772
        %v3774 = vrot.slane %v3542, %v3773
        %v3775 = vlaneseq
        %v3776 = vshrl.u32 %v3775, 7
        %v3777 = vsub.s32 0, %v3776
        %v3778 = vrot.slane %v3606, %v3777
        %v3779 = vlaneseq
        %v3780 = vshrl.u32 %v3779, 7
        %v3781 = vsub.s32 0, %v3780
        %v3782 = vrot.slane %v3543, %v3781
        %v3783 = vlaneseq
        %v3784 = vshrl.u32 %v3783, 7
        %v3785 = vsub.s32 0, %v3784
        %v3786 = vrot.slane %v3607, %v3785
        %v3787 = vlaneseq
        %v3788 = vshrl.u32 %v3787, 7
        %v3789 = vsub.s32 0, %v3788
        %v3790 = vrot.slane %v3544, %v3789
        %v3791 = vlaneseq
        %v3792 = vshrl.u32 %v3791, 7
        %v3793 = vsub.s32 0, %v3792
        %v3794 = vrot.slane %v3608, %v3793
        %v3795 = vlaneseq
        %v3796 = vshrl.u32 %v3795, 7
        %v3797 = vsub.s32 0, %v3796
        %v3798 = vrot.slane %v3545, %v3797
        %v3799 = vlaneseq
        %v3800 = vshrl.u32 %v3799, 7
        %v3801 = vsub.s32 0, %v3800
        %v3802 = vrot.slane %v3609, %v3801
        %v3803 = vlaneseq
        %v3804 = vshrl.u32 %v3803, 7
        %v3805 = vsub.s32 0, %v3804
        %v3806 = vrot.slane %v3546, %v3805
        %v3807 = vlaneseq
        %v3808 = vshrl.u32 %v3807, 7
        %v3809 = vsub.s32 0, %v3808
        %v3810 = vrot.slane %v3610, %v3809
        %v3811 = vlaneseq
        %v3812 = vshrl.u32 %v3811, 7
        %v3813 = vsub.s32 0, %v3812
        %v3814 = vrot.slane %v3547, %v3813
        %v3815 = vlaneseq
        %v3816 = vshrl.u32 %v3815, 7
        %v3817 = vsub.s32 0, %v3816
        %v3818 = vrot.slane %v3611, %v3817
        %v3819 = vlaneseq
        %v3820 = vshrl.u32 %v3819, 7
        %v3821 = vsub.s32 0, %v3820
        %v3822 = vrot.slane %v3548, %v3821
        %v3823 = vlaneseq
        %v3824 = vshrl.u32 %v3823, 7
        %v3825 = vsub.s32 0, %v3824
        %v3826 = vrot.slane %v3612, %v3825
        %v3827 = vlaneseq
        %v3828 = vshrl.u32 %v3827, 7
        %v3829 = vsub.s32 0, %v3828
        %v3830 = vrot.slane %v3549, %v3829
        %v3831 = vlaneseq
        %v3832 = vshrl.u32 %v3831, 7
        %v3833 = vsub.s32 0, %v3832
        %v3834 = vrot.slane %v3613, %v3833
        %v3835 = vlaneseq
        %v3836 = vshrl.u32 %v3835, 7
        %v3837 = vsub.s32 0, %v3836
        %v3838 = vrot.slane %v3550, %v3837
        %v3839 = vlaneseq
        %v3840 = vshrl.u32 %v3839, 7
        %v3841 = vsub.s32 0, %v3840
        %v3842 = vrot.slane %v3614, %v3841
        %v3843 = vlaneseq
        %v3844 = vshrl.u32 %v3843, 7
        %v3845 = vsub.s32 0, %v3844
        %v3846 = vrot.slane %v3551, %v3845
        %v3847 = vlaneseq
        %v3848 = vshrl.u32 %v3847, 7
        %v3849 = vsub.s32 0, %v3848
        %v3850 = vrot.slane %v3615, %v3849
        %v3851 = vlaneseq
        %v3852 = vshrl.u32 %v3851, 7
        %v3853 = vsub.s32 0, %v3852
        %v3854 = vrot.slane %v3552, %v3853
        %v3855 = vlaneseq
        %v3856 = vshrl.u32 %v3855, 7
        %v3857 = vsub.s32 0, %v3856
        %v3858 = vrot.slane %v3616, %v3857
        %v3859 = vlaneseq
        %v3860 = vshrl.u32 %v3859, 7
        %v3861 = vsub.s32 0, %v3860
        %v3862 = vrot.slane %v3553, %v3861
        %v3863 = vlaneseq
        %v3864 = vshrl.u32 %v3863, 7
        %v3865 = vsub.s32 0, %v3864
        %v3866 = vrot.slane %v3617, %v3865
        %v3867 = vlaneseq
        %v3868 = vshrl.u32 %v3867, 7
        %v3869 = vsub.s32 0, %v3868
        %v3870 = vrot.slane %v3554, %v3869
        %v3871 = vlaneseq
        %v3872 = vshrl.u32 %v3871, 7
        %v3873 = vsub.s32 0, %v3872
        %v3874 = vrot.slane %v3618, %v3873
        %vm3875 = vcmask 1041409
        %v3876 = vsel %vm3875, %v3626, %v3622
        %vm3877 = vcmask 1042434
        %v3878 = vsel %vm3877, %v3630, %v3876
        %vm3879 = vcmask 1043459
        %v3880 = vsel %vm3879, %v3634, %v3878
        %vm3881 = vcmask 1044484
        %v3882 = vsel %vm3881, %v3638, %v3880
        %vm3883 = vcmask 1045509
        %v3884 = vsel %vm3883, %v3642, %v3882
        %vm3885 = vcmask 1046534
        %v3886 = vsel %vm3885, %v3646, %v3884
        %vm3887 = vcmask 1047559
        %v3888 = vsel %vm3887, %v3650, %v3886
        %v3889 = vsel %vm3875, %v3658, %v3654
        %v3890 = vsel %vm3877, %v3662, %v3889
        %v3891 = vsel %vm3879, %v3666, %v3890
        %v3892 = vsel %vm3881, %v3670, %v3891
        %v3893 = vsel %vm3883, %v3674, %v3892
        %v3894 = vsel %vm3885, %v3678, %v3893
        %v3895 = vsel %vm3887, %v3682, %v3894
        %v3896 = vsel %vm3875, %v3690, %v3686
        %v3897 = vsel %vm3877, %v3694, %v3896
        %v3898 = vsel %vm3879, %v3698, %v3897
        %v3899 = vsel %vm3881, %v3702, %v3898
        %v3900 = vsel %vm3883, %v3706, %v3899
        %v3901 = vsel %vm3885, %v3710, %v3900
        %v3902 = vsel %vm3887, %v3714, %v3901
        %v3903 = vsel %vm3875, %v3722, %v3718
        %v3904 = vsel %vm3877, %v3726, %v3903
        %v3905 = vsel %vm3879, %v3730, %v3904
        %v3906 = vsel %vm3881, %v3734, %v3905
        %v3907 = vsel %vm3883, %v3738, %v3906
        %v3908 = vsel %vm3885, %v3742, %v3907
        %v3909 = vsel %vm3887, %v3746, %v3908
        %v3910 = vsel %vm3875, %v3754, %v3750
        %v3911 = vsel %vm3877, %v3758, %v3910
        %v3912 = vsel %vm3879, %v3762, %v3911
        %v3913 = vsel %vm3881, %v3766, %v3912
        %v3914 = vsel %vm3883, %v3770, %v3913
        %v3915 = vsel %vm3885, %v3774, %v3914
        %v3916 = vsel %vm3887, %v3778, %v3915
        %v3917 = vsel %vm3875, %v3786, %v3782
        %v3918 = vsel %vm3877, %v3790, %v3917
        %v3919 = vsel %vm3879, %v3794, %v3918
        %v3920 = vsel %vm3881, %v3798, %v3919
        %v3921 = vsel %vm3883, %v3802, %v3920
        %v3922 = vsel %vm3885, %v3806, %v3921
        %v3923 = vsel %vm3887, %v3810, %v3922
        %v3924 = vsel %vm3875, %v3818, %v3814
        %v3925 = vsel %vm3877, %v3822, %v3924
        %v3926 = vsel %vm3879, %v3826, %v3925
        %v3927 = vsel %vm3881, %v3830, %v3926
        %v3928 = vsel %vm3883, %v3834, %v3927
        %v3929 = vsel %vm3885, %v3838, %v3928
        %v3930 = vsel %vm3887, %v3842, %v3929
        %v3931 = vsel %vm3875, %v3850, %v3846
        %v3932 = vsel %vm3877, %v3854, %v3931
        %v3933 = vsel %vm3879, %v3858, %v3932
        %v3934 = vsel %vm3881, %v3862, %v3933
        %v3935 = vsel %vm3883, %v3866, %v3934
        %v3936 = vsel %vm3885, %v3870, %v3935
        %v3937 = vsel %vm3887, %v3874, %v3936
        %v3946 = vlaneseq
        %v3947 = vshrl.u32 %v3946, 7
        %v3948 = vsub.s32 1, %v3947
        %v3949 = vrot.slane %v3523, %v3948
        %v3950 = vlaneseq
        %v3951 = vshrl.u32 %v3950, 7
        %v3952 = vsub.s32 1, %v3951
        %v3953 = vrot.slane %v3587, %v3952
        %v3954 = vlaneseq
        %v3955 = vshrl.u32 %v3954, 7
        %v3956 = vsub.s32 1, %v3955
        %v3957 = vrot.slane %v3524, %v3956
        %v3958 = vlaneseq
        %v3959 = vshrl.u32 %v3958, 7
        %v3960 = vsub.s32 1, %v3959
        %v3961 = vrot.slane %v3588, %v3960
        %v3962 = vlaneseq
        %v3963 = vshrl.u32 %v3962, 7
        %v3964 = vsub.s32 1, %v3963
        %v3965 = vrot.slane %v3525, %v3964
        %v3966 = vlaneseq
        %v3967 = vshrl.u32 %v3966, 7
        %v3968 = vsub.s32 1, %v3967
        %v3969 = vrot.slane %v3589, %v3968
        %v3970 = vlaneseq
        %v3971 = vshrl.u32 %v3970, 7
        %v3972 = vsub.s32 1, %v3971
        %v3973 = vrot.slane %v3526, %v3972
        %v3974 = vlaneseq
        %v3975 = vshrl.u32 %v3974, 7
        %v3976 = vsub.s32 1, %v3975
        %v3977 = vrot.slane %v3590, %v3976
        %v3978 = vlaneseq
        %v3979 = vshrl.u32 %v3978, 7
        %v3980 = vsub.s32 1, %v3979
        %v3981 = vrot.slane %v3527, %v3980
        %v3982 = vlaneseq
        %v3983 = vshrl.u32 %v3982, 7
        %v3984 = vsub.s32 1, %v3983
        %v3985 = vrot.slane %v3591, %v3984
        %v3986 = vlaneseq
        %v3987 = vshrl.u32 %v3986, 7
        %v3988 = vsub.s32 1, %v3987
        %v3989 = vrot.slane %v3528, %v3988
        %v3990 = vlaneseq
        %v3991 = vshrl.u32 %v3990, 7
        %v3992 = vsub.s32 1, %v3991
        %v3993 = vrot.slane %v3592, %v3992
        %v3994 = vlaneseq
        %v3995 = vshrl.u32 %v3994, 7
        %v3996 = vsub.s32 1, %v3995
        %v3997 = vrot.slane %v3529, %v3996
        %v3998 = vlaneseq
        %v3999 = vshrl.u32 %v3998, 7
        %v4000 = vsub.s32 1, %v3999
        %v4001 = vrot.slane %v3593, %v4000
        %v4002 = vlaneseq
        %v4003 = vshrl.u32 %v4002, 7
        %v4004 = vsub.s32 1, %v4003
        %v4005 = vrot.slane %v3530, %v4004
        %v4006 = vlaneseq
        %v4007 = vshrl.u32 %v4006, 7
        %v4008 = vsub.s32 1, %v4007
        %v4009 = vrot.slane %v3594, %v4008
        %v4010 = vlaneseq
        %v4011 = vshrl.u32 %v4010, 7
        %v4012 = vsub.s32 1, %v4011
        %v4013 = vrot.slane %v3531, %v4012
        %v4014 = vlaneseq
        %v4015 = vshrl.u32 %v4014, 7
        %v4016 = vsub.s32 1, %v4015
        %v4017 = vrot.slane %v3595, %v4016
        %v4018 = vlaneseq
        %v4019 = vshrl.u32 %v4018, 7
        %v4020 = vsub.s32 1, %v4019
        %v4021 = vrot.slane %v3532, %v4020
        %v4022 = vlaneseq
        %v4023 = vshrl.u32 %v4022, 7
        %v4024 = vsub.s32 1, %v4023
        %v4025 = vrot.slane %v3596, %v4024
        %v4026 = vlaneseq
        %v4027 = vshrl.u32 %v4026, 7
        %v4028 = vsub.s32 1, %v4027
        %v4029 = vrot.slane %v3533, %v4028
        %v4030 = vlaneseq
        %v4031 = vshrl.u32 %v4030, 7
        %v4032 = vsub.s32 1, %v4031
        %v4033 = vrot.slane %v3597, %v4032
        %v4034 = vlaneseq
        %v4035 = vshrl.u32 %v4034, 7
        %v4036 = vsub.s32 1, %v4035
        %v4037 = vrot.slane %v3534, %v4036
        %v4038 = vlaneseq
        %v4039 = vshrl.u32 %v4038, 7
        %v4040 = vsub.s32 1, %v4039
        %v4041 = vrot.slane %v3598, %v4040
        %v4042 = vlaneseq
        %v4043 = vshrl.u32 %v4042, 7
        %v4044 = vsub.s32 1, %v4043
        %v4045 = vrot.slane %v3535, %v4044
        %v4046 = vlaneseq
        %v4047 = vshrl.u32 %v4046, 7
        %v4048 = vsub.s32 1, %v4047
        %v4049 = vrot.slane %v3599, %v4048
        %v4050 = vlaneseq
        %v4051 = vshrl.u32 %v4050, 7
        %v4052 = vsub.s32 1, %v4051
        %v4053 = vrot.slane %v3536, %v4052
        %v4054 = vlaneseq
        %v4055 = vshrl.u32 %v4054, 7
        %v4056 = vsub.s32 1, %v4055
        %v4057 = vrot.slane %v3600, %v4056
        %v4058 = vlaneseq
        %v4059 = vshrl.u32 %v4058, 7
        %v4060 = vsub.s32 1, %v4059
        %v4061 = vrot.slane %v3537, %v4060
        %v4062 = vlaneseq
        %v4063 = vshrl.u32 %v4062, 7
        %v4064 = vsub.s32 1, %v4063
        %v4065 = vrot.slane %v3601, %v4064
        %v4066 = vlaneseq
        %v4067 = vshrl.u32 %v4066, 7
        %v4068 = vsub.s32 1, %v4067
        %v4069 = vrot.slane %v3538, %v4068
        %v4070 = vlaneseq
        %v4071 = vshrl.u32 %v4070, 7
        %v4072 = vsub.s32 1, %v4071
        %v4073 = vrot.slane %v3602, %v4072
        %v4074 = vlaneseq
        %v4075 = vshrl.u32 %v4074, 7
        %v4076 = vsub.s32 1, %v4075
        %v4077 = vrot.slane %v3539, %v4076
        %v4078 = vlaneseq
        %v4079 = vshrl.u32 %v4078, 7
        %v4080 = vsub.s32 1, %v4079
        %v4081 = vrot.slane %v3603, %v4080
        %v4082 = vlaneseq
        %v4083 = vshrl.u32 %v4082, 7
        %v4084 = vsub.s32 1, %v4083
        %v4085 = vrot.slane %v3540, %v4084
        %v4086 = vlaneseq
        %v4087 = vshrl.u32 %v4086, 7
        %v4088 = vsub.s32 1, %v4087
        %v4089 = vrot.slane %v3604, %v4088
        %v4090 = vlaneseq
        %v4091 = vshrl.u32 %v4090, 7
        %v4092 = vsub.s32 1, %v4091
        %v4093 = vrot.slane %v3541, %v4092
        %v4094 = vlaneseq
        %v4095 = vshrl.u32 %v4094, 7
        %v4096 = vsub.s32 1, %v4095
        %v4097 = vrot.slane %v3605, %v4096
        %v4098 = vlaneseq
        %v4099 = vshrl.u32 %v4098, 7
        %v4100 = vsub.s32 1, %v4099
        %v4101 = vrot.slane %v3542, %v4100
        %v4102 = vlaneseq
        %v4103 = vshrl.u32 %v4102, 7
        %v4104 = vsub.s32 1, %v4103
        %v4105 = vrot.slane %v3606, %v4104
        %v4106 = vlaneseq
        %v4107 = vshrl.u32 %v4106, 7
        %v4108 = vsub.s32 1, %v4107
        %v4109 = vrot.slane %v3543, %v4108
        %v4110 = vlaneseq
        %v4111 = vshrl.u32 %v4110, 7
        %v4112 = vsub.s32 1, %v4111
        %v4113 = vrot.slane %v3607, %v4112
        %v4114 = vlaneseq
        %v4115 = vshrl.u32 %v4114, 7
        %v4116 = vsub.s32 1, %v4115
        %v4117 = vrot.slane %v3544, %v4116
        %v4118 = vlaneseq
        %v4119 = vshrl.u32 %v4118, 7
        %v4120 = vsub.s32 1, %v4119
        %v4121 = vrot.slane %v3608, %v4120
        %v4122 = vlaneseq
        %v4123 = vshrl.u32 %v4122, 7
        %v4124 = vsub.s32 1, %v4123
        %v4125 = vrot.slane %v3545, %v4124
        %v4126 = vlaneseq
        %v4127 = vshrl.u32 %v4126, 7
        %v4128 = vsub.s32 1, %v4127
        %v4129 = vrot.slane %v3609, %v4128
        %v4130 = vlaneseq
        %v4131 = vshrl.u32 %v4130, 7
        %v4132 = vsub.s32 1, %v4131
        %v4133 = vrot.slane %v3546, %v4132
        %v4134 = vlaneseq
        %v4135 = vshrl.u32 %v4134, 7
        %v4136 = vsub.s32 1, %v4135
        %v4137 = vrot.slane %v3610, %v4136
        %v4138 = vlaneseq
        %v4139 = vshrl.u32 %v4138, 7
        %v4140 = vsub.s32 1, %v4139
        %v4141 = vrot.slane %v3547, %v4140
        %v4142 = vlaneseq
        %v4143 = vshrl.u32 %v4142, 7
        %v4144 = vsub.s32 1, %v4143
        %v4145 = vrot.slane %v3611, %v4144
        %v4146 = vlaneseq
        %v4147 = vshrl.u32 %v4146, 7
        %v4148 = vsub.s32 1, %v4147
        %v4149 = vrot.slane %v3548, %v4148
        %v4150 = vlaneseq
        %v4151 = vshrl.u32 %v4150, 7
        %v4152 = vsub.s32 1, %v4151
        %v4153 = vrot.slane %v3612, %v4152
        %v4154 = vlaneseq
        %v4155 = vshrl.u32 %v4154, 7
        %v4156 = vsub.s32 1, %v4155
        %v4157 = vrot.slane %v3549, %v4156
        %v4158 = vlaneseq
        %v4159 = vshrl.u32 %v4158, 7
        %v4160 = vsub.s32 1, %v4159
        %v4161 = vrot.slane %v3613, %v4160
        %v4162 = vlaneseq
        %v4163 = vshrl.u32 %v4162, 7
        %v4164 = vsub.s32 1, %v4163
        %v4165 = vrot.slane %v3550, %v4164
        %v4166 = vlaneseq
        %v4167 = vshrl.u32 %v4166, 7
        %v4168 = vsub.s32 1, %v4167
        %v4169 = vrot.slane %v3614, %v4168
        %v4170 = vlaneseq
        %v4171 = vshrl.u32 %v4170, 7
        %v4172 = vsub.s32 1, %v4171
        %v4173 = vrot.slane %v3551, %v4172
        %v4174 = vlaneseq
        %v4175 = vshrl.u32 %v4174, 7
        %v4176 = vsub.s32 1, %v4175
        %v4177 = vrot.slane %v3615, %v4176
        %v4178 = vlaneseq
        %v4179 = vshrl.u32 %v4178, 7
        %v4180 = vsub.s32 1, %v4179
        %v4181 = vrot.slane %v3552, %v4180
        %v4182 = vlaneseq
        %v4183 = vshrl.u32 %v4182, 7
        %v4184 = vsub.s32 1, %v4183
        %v4185 = vrot.slane %v3616, %v4184
        %v4186 = vlaneseq
        %v4187 = vshrl.u32 %v4186, 7
        %v4188 = vsub.s32 1, %v4187
        %v4189 = vrot.slane %v3553, %v4188
        %v4190 = vlaneseq
        %v4191 = vshrl.u32 %v4190, 7
        %v4192 = vsub.s32 1, %v4191
        %v4193 = vrot.slane %v3617, %v4192
        %v4194 = vlaneseq
        %v4195 = vshrl.u32 %v4194, 7
        %v4196 = vsub.s32 1, %v4195
        %v4197 = vrot.slane %v3554, %v4196
        %v4198 = vlaneseq
        %v4199 = vshrl.u32 %v4198, 7
        %v4200 = vsub.s32 1, %v4199
        %v4201 = vrot.slane %v3618, %v4200
        %v4202 = vsel %vm3875, %v3953, %v3949
        %v4203 = vsel %vm3877, %v3957, %v4202
        %v4204 = vsel %vm3879, %v3961, %v4203
        %v4205 = vsel %vm3881, %v3965, %v4204
        %v4206 = vsel %vm3883, %v3969, %v4205
        %v4207 = vsel %vm3885, %v3973, %v4206
        %v4208 = vsel %vm3887, %v3977, %v4207
        %v4209 = vsel %vm3875, %v3985, %v3981
        %v4210 = vsel %vm3877, %v3989, %v4209
        %v4211 = vsel %vm3879, %v3993, %v4210
        %v4212 = vsel %vm3881, %v3997, %v4211
        %v4213 = vsel %vm3883, %v4001, %v4212
        %v4214 = vsel %vm3885, %v4005, %v4213
        %v4215 = vsel %vm3887, %v4009, %v4214
        %v4216 = vsel %vm3875, %v4017, %v4013
        %v4217 = vsel %vm3877, %v4021, %v4216
        %v4218 = vsel %vm3879, %v4025, %v4217
        %v4219 = vsel %vm3881, %v4029, %v4218
        %v4220 = vsel %vm3883, %v4033, %v4219
        %v4221 = vsel %vm3885, %v4037, %v4220
        %v4222 = vsel %vm3887, %v4041, %v4221
        %v4223 = vsel %vm3875, %v4049, %v4045
        %v4224 = vsel %vm3877, %v4053, %v4223
        %v4225 = vsel %vm3879, %v4057, %v4224
        %v4226 = vsel %vm3881, %v4061, %v4225
        %v4227 = vsel %vm3883, %v4065, %v4226
        %v4228 = vsel %vm3885, %v4069, %v4227
        %v4229 = vsel %vm3887, %v4073, %v4228
        %v4230 = vsel %vm3875, %v4081, %v4077
        %v4231 = vsel %vm3877, %v4085, %v4230
        %v4232 = vsel %vm3879, %v4089, %v4231
        %v4233 = vsel %vm3881, %v4093, %v4232
        %v4234 = vsel %vm3883, %v4097, %v4233
        %v4235 = vsel %vm3885, %v4101, %v4234
        %v4236 = vsel %vm3887, %v4105, %v4235
        %v4237 = vsel %vm3875, %v4113, %v4109
        %v4238 = vsel %vm3877, %v4117, %v4237
        %v4239 = vsel %vm3879, %v4121, %v4238
        %v4240 = vsel %vm3881, %v4125, %v4239
        %v4241 = vsel %vm3883, %v4129, %v4240
        %v4242 = vsel %vm3885, %v4133, %v4241
        %v4243 = vsel %vm3887, %v4137, %v4242
        %v4244 = vsel %vm3875, %v4145, %v4141
        %v4245 = vsel %vm3877, %v4149, %v4244
        %v4246 = vsel %vm3879, %v4153, %v4245
        %v4247 = vsel %vm3881, %v4157, %v4246
        %v4248 = vsel %vm3883, %v4161, %v4247
        %v4249 = vsel %vm3885, %v4165, %v4248
        %v4250 = vsel %vm3887, %v4169, %v4249
        %v4251 = vsel %vm3875, %v4177, %v4173
        %v4252 = vsel %vm3877, %v4181, %v4251
        %v4253 = vsel %vm3879, %v4185, %v4252
        %v4254 = vsel %vm3881, %v4189, %v4253
        %v4255 = vsel %vm3883, %v4193, %v4254
        %v4256 = vsel %vm3885, %v4197, %v4255
        %v4257 = vsel %vm3887, %v4201, %v4256
        %4258 = vrot.lane.b32.xlu0 %v4208, 32
        %v4259 = vpop.permute.xlu0 %4258
        %4260 = vrot.lane.b32.xlu0 %v4215, 32
        %v4261 = vpop.permute.xlu0 %4260
        %4262 = vrot.lane.b32.xlu0 %v4222, 32
        %v4263 = vpop.permute.xlu0 %4262
        %4264 = vrot.lane.b32.xlu0 %v4229, 32
        %v4265 = vpop.permute.xlu0 %4264
        %4266 = vrot.lane.b32.xlu0 %v4236, 32
        %v4267 = vpop.permute.xlu0 %4266
        %4268 = vrot.lane.b32.xlu0 %v4243, 32
        %v4269 = vpop.permute.xlu0 %4268
        %4270 = vrot.lane.b32.xlu0 %v4250, 32
        %v4271 = vpop.permute.xlu0 %4270
        %4272 = vrot.lane.b32.xlu0 %v4257, 32
        %v4273 = vpop.permute.xlu0 %4272
        %v4282 = vlaneseq
        %v4283 = vshrl.u32 %v4282, 7
        %v4284 = vsub.s32 2, %v4283
        %v4285 = vrot.slane %v3523, %v4284
        %v4286 = vlaneseq
        %v4287 = vshrl.u32 %v4286, 7
        %v4288 = vsub.s32 2, %v4287
        %v4289 = vrot.slane %v3587, %v4288
        %v4290 = vlaneseq
        %v4291 = vshrl.u32 %v4290, 7
        %v4292 = vsub.s32 2, %v4291
        %v4293 = vrot.slane %v3524, %v4292
        %v4294 = vlaneseq
        %v4295 = vshrl.u32 %v4294, 7
        %v4296 = vsub.s32 2, %v4295
        %v4297 = vrot.slane %v3588, %v4296
        %v4298 = vlaneseq
        %v4299 = vshrl.u32 %v4298, 7
        %v4300 = vsub.s32 2, %v4299
        %v4301 = vrot.slane %v3525, %v4300
        %v4302 = vlaneseq
        %v4303 = vshrl.u32 %v4302, 7
        %v4304 = vsub.s32 2, %v4303
        %v4305 = vrot.slane %v3589, %v4304
        %v4306 = vlaneseq
        %v4307 = vshrl.u32 %v4306, 7
        %v4308 = vsub.s32 2, %v4307
        %v4309 = vrot.slane %v3526, %v4308
        %v4310 = vlaneseq
        %v4311 = vshrl.u32 %v4310, 7
        %v4312 = vsub.s32 2, %v4311
        %v4313 = vrot.slane %v3590, %v4312
        %v4314 = vlaneseq
        %v4315 = vshrl.u32 %v4314, 7
        %v4316 = vsub.s32 2, %v4315
        %v4317 = vrot.slane %v3527, %v4316
        %v4318 = vlaneseq
        %v4319 = vshrl.u32 %v4318, 7
        %v4320 = vsub.s32 2, %v4319
        %v4321 = vrot.slane %v3591, %v4320
        %v4322 = vlaneseq
        %v4323 = vshrl.u32 %v4322, 7
        %v4324 = vsub.s32 2, %v4323
        %v4325 = vrot.slane %v3528, %v4324
        %v4326 = vlaneseq
        %v4327 = vshrl.u32 %v4326, 7
        %v4328 = vsub.s32 2, %v4327
        %v4329 = vrot.slane %v3592, %v4328
        %v4330 = vlaneseq
        %v4331 = vshrl.u32 %v4330, 7
        %v4332 = vsub.s32 2, %v4331
        %v4333 = vrot.slane %v3529, %v4332
        %v4334 = vlaneseq
        %v4335 = vshrl.u32 %v4334, 7
        %v4336 = vsub.s32 2, %v4335
        %v4337 = vrot.slane %v3593, %v4336
        %v4338 = vlaneseq
        %v4339 = vshrl.u32 %v4338, 7
        %v4340 = vsub.s32 2, %v4339
        %v4341 = vrot.slane %v3530, %v4340
        %v4342 = vlaneseq
        %v4343 = vshrl.u32 %v4342, 7
        %v4344 = vsub.s32 2, %v4343
        %v4345 = vrot.slane %v3594, %v4344
        %v4346 = vlaneseq
        %v4347 = vshrl.u32 %v4346, 7
        %v4348 = vsub.s32 2, %v4347
        %v4349 = vrot.slane %v3531, %v4348
        %v4350 = vlaneseq
        %v4351 = vshrl.u32 %v4350, 7
        %v4352 = vsub.s32 2, %v4351
        %v4353 = vrot.slane %v3595, %v4352
        %v4354 = vlaneseq
        %v4355 = vshrl.u32 %v4354, 7
        %v4356 = vsub.s32 2, %v4355
        %v4357 = vrot.slane %v3532, %v4356
        %v4358 = vlaneseq
        %v4359 = vshrl.u32 %v4358, 7
        %v4360 = vsub.s32 2, %v4359
        %v4361 = vrot.slane %v3596, %v4360
        %v4362 = vlaneseq
        %v4363 = vshrl.u32 %v4362, 7
        %v4364 = vsub.s32 2, %v4363
        %v4365 = vrot.slane %v3533, %v4364
        %v4366 = vlaneseq
        %v4367 = vshrl.u32 %v4366, 7
        %v4368 = vsub.s32 2, %v4367
        %v4369 = vrot.slane %v3597, %v4368
        %v4370 = vlaneseq
        %v4371 = vshrl.u32 %v4370, 7
        %v4372 = vsub.s32 2, %v4371
        %v4373 = vrot.slane %v3534, %v4372
        %v4374 = vlaneseq
        %v4375 = vshrl.u32 %v4374, 7
        %v4376 = vsub.s32 2, %v4375
        %v4377 = vrot.slane %v3598, %v4376
        %v4378 = vlaneseq
        %v4379 = vshrl.u32 %v4378, 7
        %v4380 = vsub.s32 2, %v4379
        %v4381 = vrot.slane %v3535, %v4380
        %v4382 = vlaneseq
        %v4383 = vshrl.u32 %v4382, 7
        %v4384 = vsub.s32 2, %v4383
        %v4385 = vrot.slane %v3599, %v4384
        %v4386 = vlaneseq
        %v4387 = vshrl.u32 %v4386, 7
        %v4388 = vsub.s32 2, %v4387
        %v4389 = vrot.slane %v3536, %v4388
        %v4390 = vlaneseq
        %v4391 = vshrl.u32 %v4390, 7
        %v4392 = vsub.s32 2, %v4391
        %v4393 = vrot.slane %v3600, %v4392
        %v4394 = vlaneseq
        %v4395 = vshrl.u32 %v4394, 7
        %v4396 = vsub.s32 2, %v4395
        %v4397 = vrot.slane %v3537, %v4396
        %v4398 = vlaneseq
        %v4399 = vshrl.u32 %v4398, 7
        %v4400 = vsub.s32 2, %v4399
        %v4401 = vrot.slane %v3601, %v4400
        %v4402 = vlaneseq
        %v4403 = vshrl.u32 %v4402, 7
        %v4404 = vsub.s32 2, %v4403
        %v4405 = vrot.slane %v3538, %v4404
        %v4406 = vlaneseq
        %v4407 = vshrl.u32 %v4406, 7
        %v4408 = vsub.s32 2, %v4407
        %v4409 = vrot.slane %v3602, %v4408
        %v4410 = vlaneseq
        %v4411 = vshrl.u32 %v4410, 7
        %v4412 = vsub.s32 2, %v4411
        %v4413 = vrot.slane %v3539, %v4412
        %v4414 = vlaneseq
        %v4415 = vshrl.u32 %v4414, 7
        %v4416 = vsub.s32 2, %v4415
        %v4417 = vrot.slane %v3603, %v4416
        %v4418 = vlaneseq
        %v4419 = vshrl.u32 %v4418, 7
        %v4420 = vsub.s32 2, %v4419
        %v4421 = vrot.slane %v3540, %v4420
        %v4422 = vlaneseq
        %v4423 = vshrl.u32 %v4422, 7
        %v4424 = vsub.s32 2, %v4423
        %v4425 = vrot.slane %v3604, %v4424
        %v4426 = vlaneseq
        %v4427 = vshrl.u32 %v4426, 7
        %v4428 = vsub.s32 2, %v4427
        %v4429 = vrot.slane %v3541, %v4428
        %v4430 = vlaneseq
        %v4431 = vshrl.u32 %v4430, 7
        %v4432 = vsub.s32 2, %v4431
        %v4433 = vrot.slane %v3605, %v4432
        %v4434 = vlaneseq
        %v4435 = vshrl.u32 %v4434, 7
        %v4436 = vsub.s32 2, %v4435
        %v4437 = vrot.slane %v3542, %v4436
        %v4438 = vlaneseq
        %v4439 = vshrl.u32 %v4438, 7
        %v4440 = vsub.s32 2, %v4439
        %v4441 = vrot.slane %v3606, %v4440
        %v4442 = vlaneseq
        %v4443 = vshrl.u32 %v4442, 7
        %v4444 = vsub.s32 2, %v4443
        %v4445 = vrot.slane %v3543, %v4444
        %v4446 = vlaneseq
        %v4447 = vshrl.u32 %v4446, 7
        %v4448 = vsub.s32 2, %v4447
        %v4449 = vrot.slane %v3607, %v4448
        %v4450 = vlaneseq
        %v4451 = vshrl.u32 %v4450, 7
        %v4452 = vsub.s32 2, %v4451
        %v4453 = vrot.slane %v3544, %v4452
        %v4454 = vlaneseq
        %v4455 = vshrl.u32 %v4454, 7
        %v4456 = vsub.s32 2, %v4455
        %v4457 = vrot.slane %v3608, %v4456
        %v4458 = vlaneseq
        %v4459 = vshrl.u32 %v4458, 7
        %v4460 = vsub.s32 2, %v4459
        %v4461 = vrot.slane %v3545, %v4460
        %v4462 = vlaneseq
        %v4463 = vshrl.u32 %v4462, 7
        %v4464 = vsub.s32 2, %v4463
        %v4465 = vrot.slane %v3609, %v4464
        %v4466 = vlaneseq
        %v4467 = vshrl.u32 %v4466, 7
        %v4468 = vsub.s32 2, %v4467
        %v4469 = vrot.slane %v3546, %v4468
        %v4470 = vlaneseq
        %v4471 = vshrl.u32 %v4470, 7
        %v4472 = vsub.s32 2, %v4471
        %v4473 = vrot.slane %v3610, %v4472
        %v4474 = vlaneseq
        %v4475 = vshrl.u32 %v4474, 7
        %v4476 = vsub.s32 2, %v4475
        %v4477 = vrot.slane %v3547, %v4476
        %v4478 = vlaneseq
        %v4479 = vshrl.u32 %v4478, 7
        %v4480 = vsub.s32 2, %v4479
        %v4481 = vrot.slane %v3611, %v4480
        %v4482 = vlaneseq
        %v4483 = vshrl.u32 %v4482, 7
        %v4484 = vsub.s32 2, %v4483
        %v4485 = vrot.slane %v3548, %v4484
        %v4486 = vlaneseq
        %v4487 = vshrl.u32 %v4486, 7
        %v4488 = vsub.s32 2, %v4487
        %v4489 = vrot.slane %v3612, %v4488
        %v4490 = vlaneseq
        %v4491 = vshrl.u32 %v4490, 7
        %v4492 = vsub.s32 2, %v4491
        %v4493 = vrot.slane %v3549, %v4492
        %v4494 = vlaneseq
        %v4495 = vshrl.u32 %v4494, 7
        %v4496 = vsub.s32 2, %v4495
        %v4497 = vrot.slane %v3613, %v4496
        %v4498 = vlaneseq
        %v4499 = vshrl.u32 %v4498, 7
        %v4500 = vsub.s32 2, %v4499
        %v4501 = vrot.slane %v3550, %v4500
        %v4502 = vlaneseq
        %v4503 = vshrl.u32 %v4502, 7
        %v4504 = vsub.s32 2, %v4503
        %v4505 = vrot.slane %v3614, %v4504
        %v4506 = vlaneseq
        %v4507 = vshrl.u32 %v4506, 7
        %v4508 = vsub.s32 2, %v4507
        %v4509 = vrot.slane %v3551, %v4508
        %v4510 = vlaneseq
        %v4511 = vshrl.u32 %v4510, 7
        %v4512 = vsub.s32 2, %v4511
        %v4513 = vrot.slane %v3615, %v4512
        %v4514 = vlaneseq
        %v4515 = vshrl.u32 %v4514, 7
        %v4516 = vsub.s32 2, %v4515
        %v4517 = vrot.slane %v3552, %v4516
        %v4518 = vlaneseq
        %v4519 = vshrl.u32 %v4518, 7
        %v4520 = vsub.s32 2, %v4519
        %v4521 = vrot.slane %v3616, %v4520
        %v4522 = vlaneseq
        %v4523 = vshrl.u32 %v4522, 7
        %v4524 = vsub.s32 2, %v4523
        %v4525 = vrot.slane %v3553, %v4524
        %v4526 = vlaneseq
        %v4527 = vshrl.u32 %v4526, 7
        %v4528 = vsub.s32 2, %v4527
        %v4529 = vrot.slane %v3617, %v4528
        %v4530 = vlaneseq
        %v4531 = vshrl.u32 %v4530, 7
        %v4532 = vsub.s32 2, %v4531
        %v4533 = vrot.slane %v3554, %v4532
        %v4534 = vlaneseq
        %v4535 = vshrl.u32 %v4534, 7
        %v4536 = vsub.s32 2, %v4535
        %v4537 = vrot.slane %v3618, %v4536
        %v4538 = vsel %vm3875, %v4289, %v4285
        %v4539 = vsel %vm3877, %v4293, %v4538
        %v4540 = vsel %vm3879, %v4297, %v4539
        %v4541 = vsel %vm3881, %v4301, %v4540
        %v4542 = vsel %vm3883, %v4305, %v4541
        %v4543 = vsel %vm3885, %v4309, %v4542
        %v4544 = vsel %vm3887, %v4313, %v4543
        %v4545 = vsel %vm3875, %v4321, %v4317
        %v4546 = vsel %vm3877, %v4325, %v4545
        %v4547 = vsel %vm3879, %v4329, %v4546
        %v4548 = vsel %vm3881, %v4333, %v4547
        %v4549 = vsel %vm3883, %v4337, %v4548
        %v4550 = vsel %vm3885, %v4341, %v4549
        %v4551 = vsel %vm3887, %v4345, %v4550
        %v4552 = vsel %vm3875, %v4353, %v4349
        %v4553 = vsel %vm3877, %v4357, %v4552
        %v4554 = vsel %vm3879, %v4361, %v4553
        %v4555 = vsel %vm3881, %v4365, %v4554
        %v4556 = vsel %vm3883, %v4369, %v4555
        %v4557 = vsel %vm3885, %v4373, %v4556
        %v4558 = vsel %vm3887, %v4377, %v4557
        %v4559 = vsel %vm3875, %v4385, %v4381
        %v4560 = vsel %vm3877, %v4389, %v4559
        %v4561 = vsel %vm3879, %v4393, %v4560
        %v4562 = vsel %vm3881, %v4397, %v4561
        %v4563 = vsel %vm3883, %v4401, %v4562
        %v4564 = vsel %vm3885, %v4405, %v4563
        %v4565 = vsel %vm3887, %v4409, %v4564
        %v4566 = vsel %vm3875, %v4417, %v4413
        %v4567 = vsel %vm3877, %v4421, %v4566
        %v4568 = vsel %vm3879, %v4425, %v4567
        %v4569 = vsel %vm3881, %v4429, %v4568
        %v4570 = vsel %vm3883, %v4433, %v4569
        %v4571 = vsel %vm3885, %v4437, %v4570
        %v4572 = vsel %vm3887, %v4441, %v4571
        %v4573 = vsel %vm3875, %v4449, %v4445
        %v4574 = vsel %vm3877, %v4453, %v4573
        %v4575 = vsel %vm3879, %v4457, %v4574
        %v4576 = vsel %vm3881, %v4461, %v4575
        %v4577 = vsel %vm3883, %v4465, %v4576
        %v4578 = vsel %vm3885, %v4469, %v4577
        %v4579 = vsel %vm3887, %v4473, %v4578
        %v4580 = vsel %vm3875, %v4481, %v4477
        %v4581 = vsel %vm3877, %v4485, %v4580
        %v4582 = vsel %vm3879, %v4489, %v4581
        %v4583 = vsel %vm3881, %v4493, %v4582
        %v4584 = vsel %vm3883, %v4497, %v4583
        %v4585 = vsel %vm3885, %v4501, %v4584
        %v4586 = vsel %vm3887, %v4505, %v4585
        %v4587 = vsel %vm3875, %v4513, %v4509
        %v4588 = vsel %vm3877, %v4517, %v4587
        %v4589 = vsel %vm3879, %v4521, %v4588
        %v4590 = vsel %vm3881, %v4525, %v4589
        %v4591 = vsel %vm3883, %v4529, %v4590
        %v4592 = vsel %vm3885, %v4533, %v4591
        %v4593 = vsel %vm3887, %v4537, %v4592
        %4594 = vrot.lane.b32.xlu0 %v4544, 64
        %v4595 = vpop.permute.xlu0 %4594
        %4596 = vrot.lane.b32.xlu0 %v4551, 64
        %v4597 = vpop.permute.xlu0 %4596
        %4598 = vrot.lane.b32.xlu0 %v4558, 64
        %v4599 = vpop.permute.xlu0 %4598
        %4600 = vrot.lane.b32.xlu0 %v4565, 64
        %v4601 = vpop.permute.xlu0 %4600
        %4602 = vrot.lane.b32.xlu0 %v4572, 64
        %v4603 = vpop.permute.xlu0 %4602
        %4604 = vrot.lane.b32.xlu0 %v4579, 64
        %v4605 = vpop.permute.xlu0 %4604
        %4606 = vrot.lane.b32.xlu0 %v4586, 64
        %v4607 = vpop.permute.xlu0 %4606
        %4608 = vrot.lane.b32.xlu0 %v4593, 64
        %v4609 = vpop.permute.xlu0 %4608
        %v4618 = vlaneseq
        %v4619 = vshrl.u32 %v4618, 7
        %v4620 = vsub.s32 3, %v4619
        %v4621 = vrot.slane %v3523, %v4620
        %v4622 = vlaneseq
        %v4623 = vshrl.u32 %v4622, 7
        %v4624 = vsub.s32 3, %v4623
        %v4625 = vrot.slane %v3587, %v4624
        %v4626 = vlaneseq
        %v4627 = vshrl.u32 %v4626, 7
        %v4628 = vsub.s32 3, %v4627
        %v4629 = vrot.slane %v3524, %v4628
        %v4630 = vlaneseq
        %v4631 = vshrl.u32 %v4630, 7
        %v4632 = vsub.s32 3, %v4631
        %v4633 = vrot.slane %v3588, %v4632
        %v4634 = vlaneseq
        %v4635 = vshrl.u32 %v4634, 7
        %v4636 = vsub.s32 3, %v4635
        %v4637 = vrot.slane %v3525, %v4636
        %v4638 = vlaneseq
        %v4639 = vshrl.u32 %v4638, 7
        %v4640 = vsub.s32 3, %v4639
        %v4641 = vrot.slane %v3589, %v4640
        %v4642 = vlaneseq
        %v4643 = vshrl.u32 %v4642, 7
        %v4644 = vsub.s32 3, %v4643
        %v4645 = vrot.slane %v3526, %v4644
        %v4646 = vlaneseq
        %v4647 = vshrl.u32 %v4646, 7
        %v4648 = vsub.s32 3, %v4647
        %v4649 = vrot.slane %v3590, %v4648
        %v4650 = vlaneseq
        %v4651 = vshrl.u32 %v4650, 7
        %v4652 = vsub.s32 3, %v4651
        %v4653 = vrot.slane %v3527, %v4652
        %v4654 = vlaneseq
        %v4655 = vshrl.u32 %v4654, 7
        %v4656 = vsub.s32 3, %v4655
        %v4657 = vrot.slane %v3591, %v4656
        %v4658 = vlaneseq
        %v4659 = vshrl.u32 %v4658, 7
        %v4660 = vsub.s32 3, %v4659
        %v4661 = vrot.slane %v3528, %v4660
        %v4662 = vlaneseq
        %v4663 = vshrl.u32 %v4662, 7
        %v4664 = vsub.s32 3, %v4663
        %v4665 = vrot.slane %v3592, %v4664
        %v4666 = vlaneseq
        %v4667 = vshrl.u32 %v4666, 7
        %v4668 = vsub.s32 3, %v4667
        %v4669 = vrot.slane %v3529, %v4668
        %v4670 = vlaneseq
        %v4671 = vshrl.u32 %v4670, 7
        %v4672 = vsub.s32 3, %v4671
        %v4673 = vrot.slane %v3593, %v4672
        %v4674 = vlaneseq
        %v4675 = vshrl.u32 %v4674, 7
        %v4676 = vsub.s32 3, %v4675
        %v4677 = vrot.slane %v3530, %v4676
        %v4678 = vlaneseq
        %v4679 = vshrl.u32 %v4678, 7
        %v4680 = vsub.s32 3, %v4679
        %v4681 = vrot.slane %v3594, %v4680
        %v4682 = vlaneseq
        %v4683 = vshrl.u32 %v4682, 7
        %v4684 = vsub.s32 3, %v4683
        %v4685 = vrot.slane %v3531, %v4684
        %v4686 = vlaneseq
        %v4687 = vshrl.u32 %v4686, 7
        %v4688 = vsub.s32 3, %v4687
        %v4689 = vrot.slane %v3595, %v4688
        %v4690 = vlaneseq
        %v4691 = vshrl.u32 %v4690, 7
        %v4692 = vsub.s32 3, %v4691
        %v4693 = vrot.slane %v3532, %v4692
        %v4694 = vlaneseq
        %v4695 = vshrl.u32 %v4694, 7
        %v4696 = vsub.s32 3, %v4695
        %v4697 = vrot.slane %v3596, %v4696
        %v4698 = vlaneseq
        %v4699 = vshrl.u32 %v4698, 7
        %v4700 = vsub.s32 3, %v4699
        %v4701 = vrot.slane %v3533, %v4700
        %v4702 = vlaneseq
        %v4703 = vshrl.u32 %v4702, 7
        %v4704 = vsub.s32 3, %v4703
        %v4705 = vrot.slane %v3597, %v4704
        %v4706 = vlaneseq
        %v4707 = vshrl.u32 %v4706, 7
        %v4708 = vsub.s32 3, %v4707
        %v4709 = vrot.slane %v3534, %v4708
        %v4710 = vlaneseq
        %v4711 = vshrl.u32 %v4710, 7
        %v4712 = vsub.s32 3, %v4711
        %v4713 = vrot.slane %v3598, %v4712
        %v4714 = vlaneseq
        %v4715 = vshrl.u32 %v4714, 7
        %v4716 = vsub.s32 3, %v4715
        %v4717 = vrot.slane %v3535, %v4716
        %v4718 = vlaneseq
        %v4719 = vshrl.u32 %v4718, 7
        %v4720 = vsub.s32 3, %v4719
        %v4721 = vrot.slane %v3599, %v4720
        %v4722 = vlaneseq
        %v4723 = vshrl.u32 %v4722, 7
        %v4724 = vsub.s32 3, %v4723
        %v4725 = vrot.slane %v3536, %v4724
        %v4726 = vlaneseq
        %v4727 = vshrl.u32 %v4726, 7
        %v4728 = vsub.s32 3, %v4727
        %v4729 = vrot.slane %v3600, %v4728
        %v4730 = vlaneseq
        %v4731 = vshrl.u32 %v4730, 7
        %v4732 = vsub.s32 3, %v4731
        %v4733 = vrot.slane %v3537, %v4732
        %v4734 = vlaneseq
        %v4735 = vshrl.u32 %v4734, 7
        %v4736 = vsub.s32 3, %v4735
        %v4737 = vrot.slane %v3601, %v4736
        %v4738 = vlaneseq
        %v4739 = vshrl.u32 %v4738, 7
        %v4740 = vsub.s32 3, %v4739
        %v4741 = vrot.slane %v3538, %v4740
        %v4742 = vlaneseq
        %v4743 = vshrl.u32 %v4742, 7
        %v4744 = vsub.s32 3, %v4743
        %v4745 = vrot.slane %v3602, %v4744
        %v4746 = vlaneseq
        %v4747 = vshrl.u32 %v4746, 7
        %v4748 = vsub.s32 3, %v4747
        %v4749 = vrot.slane %v3539, %v4748
        %v4750 = vlaneseq
        %v4751 = vshrl.u32 %v4750, 7
        %v4752 = vsub.s32 3, %v4751
        %v4753 = vrot.slane %v3603, %v4752
        %v4754 = vlaneseq
        %v4755 = vshrl.u32 %v4754, 7
        %v4756 = vsub.s32 3, %v4755
        %v4757 = vrot.slane %v3540, %v4756
        %v4758 = vlaneseq
        %v4759 = vshrl.u32 %v4758, 7
        %v4760 = vsub.s32 3, %v4759
        %v4761 = vrot.slane %v3604, %v4760
        %v4762 = vlaneseq
        %v4763 = vshrl.u32 %v4762, 7
        %v4764 = vsub.s32 3, %v4763
        %v4765 = vrot.slane %v3541, %v4764
        %v4766 = vlaneseq
        %v4767 = vshrl.u32 %v4766, 7
        %v4768 = vsub.s32 3, %v4767
        %v4769 = vrot.slane %v3605, %v4768
        %v4770 = vlaneseq
        %v4771 = vshrl.u32 %v4770, 7
        %v4772 = vsub.s32 3, %v4771
        %v4773 = vrot.slane %v3542, %v4772
        %v4774 = vlaneseq
        %v4775 = vshrl.u32 %v4774, 7
        %v4776 = vsub.s32 3, %v4775
        %v4777 = vrot.slane %v3606, %v4776
        %v4778 = vlaneseq
        %v4779 = vshrl.u32 %v4778, 7
        %v4780 = vsub.s32 3, %v4779
        %v4781 = vrot.slane %v3543, %v4780
        %v4782 = vlaneseq
        %v4783 = vshrl.u32 %v4782, 7
        %v4784 = vsub.s32 3, %v4783
        %v4785 = vrot.slane %v3607, %v4784
        %v4786 = vlaneseq
        %v4787 = vshrl.u32 %v4786, 7
        %v4788 = vsub.s32 3, %v4787
        %v4789 = vrot.slane %v3544, %v4788
        %v4790 = vlaneseq
        %v4791 = vshrl.u32 %v4790, 7
        %v4792 = vsub.s32 3, %v4791
        %v4793 = vrot.slane %v3608, %v4792
        %v4794 = vlaneseq
        %v4795 = vshrl.u32 %v4794, 7
        %v4796 = vsub.s32 3, %v4795
        %v4797 = vrot.slane %v3545, %v4796
        %v4798 = vlaneseq
        %v4799 = vshrl.u32 %v4798, 7
        %v4800 = vsub.s32 3, %v4799
        %v4801 = vrot.slane %v3609, %v4800
        %v4802 = vlaneseq
        %v4803 = vshrl.u32 %v4802, 7
        %v4804 = vsub.s32 3, %v4803
        %v4805 = vrot.slane %v3546, %v4804
        %v4806 = vlaneseq
        %v4807 = vshrl.u32 %v4806, 7
        %v4808 = vsub.s32 3, %v4807
        %v4809 = vrot.slane %v3610, %v4808
        %v4810 = vlaneseq
        %v4811 = vshrl.u32 %v4810, 7
        %v4812 = vsub.s32 3, %v4811
        %v4813 = vrot.slane %v3547, %v4812
        %v4814 = vlaneseq
        %v4815 = vshrl.u32 %v4814, 7
        %v4816 = vsub.s32 3, %v4815
        %v4817 = vrot.slane %v3611, %v4816
        %v4818 = vlaneseq
        %v4819 = vshrl.u32 %v4818, 7
        %v4820 = vsub.s32 3, %v4819
        %v4821 = vrot.slane %v3548, %v4820
        %v4822 = vlaneseq
        %v4823 = vshrl.u32 %v4822, 7
        %v4824 = vsub.s32 3, %v4823
        %v4825 = vrot.slane %v3612, %v4824
        %v4826 = vlaneseq
        %v4827 = vshrl.u32 %v4826, 7
        %v4828 = vsub.s32 3, %v4827
        %v4829 = vrot.slane %v3549, %v4828
        %v4830 = vlaneseq
        %v4831 = vshrl.u32 %v4830, 7
        %v4832 = vsub.s32 3, %v4831
        %v4833 = vrot.slane %v3613, %v4832
        %v4834 = vlaneseq
        %v4835 = vshrl.u32 %v4834, 7
        %v4836 = vsub.s32 3, %v4835
        %v4837 = vrot.slane %v3550, %v4836
        %v4838 = vlaneseq
        %v4839 = vshrl.u32 %v4838, 7
        %v4840 = vsub.s32 3, %v4839
        %v4841 = vrot.slane %v3614, %v4840
        %v4842 = vlaneseq
        %v4843 = vshrl.u32 %v4842, 7
        %v4844 = vsub.s32 3, %v4843
        %v4845 = vrot.slane %v3551, %v4844
        %v4846 = vlaneseq
        %v4847 = vshrl.u32 %v4846, 7
        %v4848 = vsub.s32 3, %v4847
        %v4849 = vrot.slane %v3615, %v4848
        %v4850 = vlaneseq
        %v4851 = vshrl.u32 %v4850, 7
        %v4852 = vsub.s32 3, %v4851
        %v4853 = vrot.slane %v3552, %v4852
        %v4854 = vlaneseq
        %v4855 = vshrl.u32 %v4854, 7
        %v4856 = vsub.s32 3, %v4855
        %v4857 = vrot.slane %v3616, %v4856
        %v4858 = vlaneseq
        %v4859 = vshrl.u32 %v4858, 7
        %v4860 = vsub.s32 3, %v4859
        %v4861 = vrot.slane %v3553, %v4860
        %v4862 = vlaneseq
        %v4863 = vshrl.u32 %v4862, 7
        %v4864 = vsub.s32 3, %v4863
        %v4865 = vrot.slane %v3617, %v4864
        %v4866 = vlaneseq
        %v4867 = vshrl.u32 %v4866, 7
        %v4868 = vsub.s32 3, %v4867
        %v4869 = vrot.slane %v3554, %v4868
        %v4870 = vlaneseq
        %v4871 = vshrl.u32 %v4870, 7
        %v4872 = vsub.s32 3, %v4871
        %v4873 = vrot.slane %v3618, %v4872
        %v4874 = vsel %vm3875, %v4625, %v4621
        %v4875 = vsel %vm3877, %v4629, %v4874
        %v4876 = vsel %vm3879, %v4633, %v4875
        %v4877 = vsel %vm3881, %v4637, %v4876
        %v4878 = vsel %vm3883, %v4641, %v4877
        %v4879 = vsel %vm3885, %v4645, %v4878
        %v4880 = vsel %vm3887, %v4649, %v4879
        %v4881 = vsel %vm3875, %v4657, %v4653
        %v4882 = vsel %vm3877, %v4661, %v4881
        %v4883 = vsel %vm3879, %v4665, %v4882
        %v4884 = vsel %vm3881, %v4669, %v4883
        %v4885 = vsel %vm3883, %v4673, %v4884
        %v4886 = vsel %vm3885, %v4677, %v4885
        %v4887 = vsel %vm3887, %v4681, %v4886
        %v4888 = vsel %vm3875, %v4689, %v4685
        %v4889 = vsel %vm3877, %v4693, %v4888
        %v4890 = vsel %vm3879, %v4697, %v4889
        %v4891 = vsel %vm3881, %v4701, %v4890
        %v4892 = vsel %vm3883, %v4705, %v4891
        %v4893 = vsel %vm3885, %v4709, %v4892
        %v4894 = vsel %vm3887, %v4713, %v4893
        %v4895 = vsel %vm3875, %v4721, %v4717
        %v4896 = vsel %vm3877, %v4725, %v4895
        %v4897 = vsel %vm3879, %v4729, %v4896
        %v4898 = vsel %vm3881, %v4733, %v4897
        %v4899 = vsel %vm3883, %v4737, %v4898
        %v4900 = vsel %vm3885, %v4741, %v4899
        %v4901 = vsel %vm3887, %v4745, %v4900
        %v4902 = vsel %vm3875, %v4753, %v4749
        %v4903 = vsel %vm3877, %v4757, %v4902
        %v4904 = vsel %vm3879, %v4761, %v4903
        %v4905 = vsel %vm3881, %v4765, %v4904
        %v4906 = vsel %vm3883, %v4769, %v4905
        %v4907 = vsel %vm3885, %v4773, %v4906
        %v4908 = vsel %vm3887, %v4777, %v4907
        %v4909 = vsel %vm3875, %v4785, %v4781
        %v4910 = vsel %vm3877, %v4789, %v4909
        %v4911 = vsel %vm3879, %v4793, %v4910
        %v4912 = vsel %vm3881, %v4797, %v4911
        %v4913 = vsel %vm3883, %v4801, %v4912
        %v4914 = vsel %vm3885, %v4805, %v4913
        %v4915 = vsel %vm3887, %v4809, %v4914
        %v4916 = vsel %vm3875, %v4817, %v4813
        %v4917 = vsel %vm3877, %v4821, %v4916
        %v4918 = vsel %vm3879, %v4825, %v4917
        %v4919 = vsel %vm3881, %v4829, %v4918
        %v4920 = vsel %vm3883, %v4833, %v4919
        %v4921 = vsel %vm3885, %v4837, %v4920
        %v4922 = vsel %vm3887, %v4841, %v4921
        %v4923 = vsel %vm3875, %v4849, %v4845
        %v4924 = vsel %vm3877, %v4853, %v4923
        %v4925 = vsel %vm3879, %v4857, %v4924
        %v4926 = vsel %vm3881, %v4861, %v4925
        %v4927 = vsel %vm3883, %v4865, %v4926
        %v4928 = vsel %vm3885, %v4869, %v4927
        %v4929 = vsel %vm3887, %v4873, %v4928
        %4930 = vrot.lane.b32.xlu0 %v4880, 96
        %v4931 = vpop.permute.xlu0 %4930
        %4932 = vrot.lane.b32.xlu0 %v4887, 96
        %v4933 = vpop.permute.xlu0 %4932
        %4934 = vrot.lane.b32.xlu0 %v4894, 96
        %v4935 = vpop.permute.xlu0 %4934
        %4936 = vrot.lane.b32.xlu0 %v4901, 96
        %v4937 = vpop.permute.xlu0 %4936
        %4938 = vrot.lane.b32.xlu0 %v4908, 96
        %v4939 = vpop.permute.xlu0 %4938
        %4940 = vrot.lane.b32.xlu0 %v4915, 96
        %v4941 = vpop.permute.xlu0 %4940
        %4942 = vrot.lane.b32.xlu0 %v4922, 96
        %v4943 = vpop.permute.xlu0 %4942
        %4944 = vrot.lane.b32.xlu0 %v4929, 96
        %v4945 = vpop.permute.xlu0 %4944
        %v4954 = vsel %vm1433, %v3888, %v4259
        %v4955 = vsel %vm1433, %v3895, %v4261
        %v4956 = vsel %vm1433, %v3902, %v4263
        %v4957 = vsel %vm1433, %v3909, %v4265
        %v4958 = vsel %vm1433, %v3916, %v4267
        %v4959 = vsel %vm1433, %v3923, %v4269
        %v4960 = vsel %vm1433, %v3930, %v4271
        %v4961 = vsel %vm1433, %v3937, %v4273
        %v4962 = vsel %vm1499, %v4954, %v4595
        %v4963 = vsel %vm1499, %v4955, %v4597
        %v4964 = vsel %vm1499, %v4956, %v4599
        %v4965 = vsel %vm1499, %v4957, %v4601
        %v4966 = vsel %vm1499, %v4958, %v4603
        %v4967 = vsel %vm1499, %v4959, %v4605
        %v4968 = vsel %vm1499, %v4960, %v4607
        %v4969 = vsel %vm1499, %v4961, %v4609
        %v4970 = vsel %vm1565, %v4962, %v4931
        %v4971 = vsel %vm1565, %v4963, %v4933
        %v4972 = vsel %vm1565, %v4964, %v4935
        %v4973 = vsel %vm1565, %v4965, %v4937
        %v4974 = vsel %vm1565, %v4966, %v4939
        %v4975 = vsel %vm1565, %v4967, %v4941
        %v4976 = vsel %vm1565, %v4968, %v4943
        %v4977 = vsel %vm1565, %v4969, %v4945
        %4978 = vst [vmem:[%s394] sm:$0xff] %v4970
        %4979 = vst [vmem:[%s394 + $0x8] sm:$0xff] %v4971
        %4980 = vst [vmem:[%s394 + $0x10] sm:$0xff] %v4972
        %4981 = vst [vmem:[%s394 + $0x18] sm:$0xff] %v4973
        %4982 = vst [vmem:[%s394 + $0x20] sm:$0xff] %v4974
        %4983 = vst [vmem:[%s394 + $0x28] sm:$0xff] %v4975
        %4984 = vst [vmem:[%s394 + $0x30] sm:$0xff] %v4976
        %4985 = vst [vmem:[%s394 + $0x38] sm:$0xff] %v4977
        %s4986 = sand.u32 %s274, 1
        %s4987 = scalar_lea.sflag [#allocation3], %s4986
        %s4988 = sand.u32 %s274, 1
        %s4989 = smul.addr %s4988, 64
        %s4990 = scalar_lea.vmem [#allocation2], %s4989
        // Predicated region
        $region65: #{tpu_custom_call.1} parent=63 // pred_check
          %p4991 = pneg %p284
        $region66: #{tpu_custom_call.1} parent=63 // pred_check_branch
          %4993 = sbr.rel (%p4991) target = $region68
        $region67: #{tpu_custom_call.1} parent=63 // pred_region
          %s4995 = ssub.s32 1024, 1024
          %4996 = vsyncadd %s4987, %s4995
          %s4997 = smul.addr %s25, 8
          %s4998 = smul.addr %s4997, 128
          %s4999 = scalar_lea.hbm %s11, %s4998
          %s5000 = sshll.u32 %s4990, 4
          %s5001 = int_to_ptr.vmem [resolvable:$true] %s5000
          %5006 = dma.vmem_to_hbm [thread:$0]  %s5001, 1024, %s4999, %s4987, 128, 128, 8
        $region68: #{tpu_custom_call.1} parent=63 // pred_fallthru
          _
      $region64: #{tpu_custom_call.1} parent=5 // pred_fallthru
        _
      %p5007 = scmp.le.s32.totalorder 2, %s20
      // Predicated region
      $region69: #{tpu_custom_call.1} parent=5 // pred_check
        %p5008 = pneg %p5007
      $region70: #{tpu_custom_call.1} parent=5 // pred_check_branch
        %5010 = sbr.rel (%p5008) target = $region72
      $region71: #{tpu_custom_call.1} parent=5 // pred_region
        %s5011 = ssub.s32 %s20, 2
        // Predicated region
        $region73: #{tpu_custom_call.1} parent=71 // pred_check
          %p5012 = pneg %p290
        $region74: #{tpu_custom_call.1} parent=71 // pred_check_branch
          %5014 = sbr.rel (%p5012) target = $region76
        $region75: #{tpu_custom_call.1} parent=71 // pred_region
          %s5015 = sand.u32 %s275, 1
          %s5016 = scalar_lea.sflag [#allocation3], %s5015
          %s5017 = sand.u32 %s275, 1
          %s5018 = smul.addr %s5017, 64
          %s5019 = scalar_lea.vmem [#allocation2], %s5018
          %5020 = dma.done %s5016, 1024
        $region76: #{tpu_custom_call.1} parent=71 // pred_fallthru
          _
      $region72: #{tpu_custom_call.1} parent=5 // pred_fallthru
        _
    $region6: #{tpu_custom_call.1} parent=1 // loop_footer
      %s24 = sadd.s32 1, %s20
    $region7: #{tpu_custom_call.1} parent=1 // loop_footer_branch
      %19 = sbr.rel target = $region3
    $region8: #{tpu_custom_call.1} parent=1 // loop_exit
      _
    %5021 = vsyncpa [#allocation3], 1
    %s5022 = scalar_lea.sflag [#allocation3], 1
    %5023 = vsyncpa %s5022, 1

</llo_original>
